<compile_context>
chip_gen: v7x
topology: tpu7x:2x2x1
jax: 0.10.0
libtpu: 0.0.40
codegen_flags: <defaults>
</compile_context>

<pallas_src>
import jax
import jax.numpy as jnp
from jax import lax
from jax.experimental import pallas as pl
from jax.experimental.pallas import tpu as pltpu


# ----------------------------------------------------------------------------
# Fused kernel: whole CCNN1 forward = 8 chained matmuls, all VMEM resident.
# Activations are flat matrices (rows = padded batch, lanes = flattened
# (channel, h, w)), so every layer is one lane-dense MXU matmul.
# ----------------------------------------------------------------------------
def _ccnn1_fused_kernel(x_ref,
                        w1, b1, w2, b2, w3, b3, w4, b4,
                        w5, b5, w6, b6, w7, b7, w8, b8,
                        o_ref):
    def layer(a_bf16, w_ref, b_ref, relu, skip=None):
        # bf16 operands -> MXU, f32 accumulation; epilogue in f32 on the VPU.
        y = jnp.dot(a_bf16, w_ref[...], preferred_element_type=jnp.float32)
        y = y + b_ref[...]
        if relu:                       # complex ReLU == CReLU (ReLU on re & im)
            y = jnp.maximum(y, 0.0)
        if skip is not None:           # U-Net skip add fused into the epilogue
            y = y + skip
        return y

    a0 = x_ref[...].astype(jnp.bfloat16)
    f1 = layer(a0, w1, b1, True)                                   # down1
    f2 = layer(f1.astype(jnp.bfloat16), w2, b2, True)              # down2
    f3 = layer(f2.astype(jnp.bfloat16), w3, b3, True)              # down3
    f4 = layer(f3.astype(jnp.bfloat16), w4, b4, True)              # down4
    g4 = layer(f4.astype(jnp.bfloat16), w5, b5, True, skip=f3)     # up4 + out3
    g3 = layer(g4.astype(jnp.bfloat16), w6, b6, True, skip=f2)     # up3 + out2
    g2 = layer(g3.astype(jnp.bfloat16), w7, b7, True, skip=f1)     # up2 + out1
    g1 = layer(g2.astype(jnp.bfloat16), w8, b8, False)             # up1 (CUp2)
    o_ref[...] = g1


def _fused_forward_call(x_pad, layers):
    m = x_pad.shape[0]
    fout = layers[-1][0].shape[1]
    args = [x_pad]
    in_specs = [pl.BlockSpec(x_pad.shape, lambda i: (0, 0))]
    flops = 0
    bytes_accessed = x_pad.size * x_pad.dtype.itemsize + m * fout * 4
    for wmat, brow in layers:
        args += [wmat, brow]
        in_specs += [pl.BlockSpec(wmat.shape, lambda i: (0, 0)),
                     pl.BlockSpec(brow.shape, lambda i: (0, 0))]
        flops += 2 * m * wmat.shape[0] * wmat.shape[1]
        bytes_accessed += wmat.size * 2 + brow.size * 4

    return pl.pallas_call(
        _ccnn1_fused_kernel,
        out_shape=jax.ShapeDtypeStruct((m, fout), jnp.float32),
        grid=(1,),
        in_specs=in_specs,
        out_specs=pl.BlockSpec((m, fout), lambda i: (0, 0)),
        compiler_params=pltpu.CompilerParams(
            dimension_semantics=("arbitrary",)),
        cost_estimate=pl.CostEstimate(flops=int(flops), transcendentals=0,
                                      bytes_accessed=int(bytes_accessed)),
    )(*args)


# ----------------------------------------------------------------------------
# One-time parameter prep (outside jit): build the exact dense linear operator
# of every complex (transpose) conv at the fixed 16x16 input size.
# ----------------------------------------------------------------------------
def _block_oihw(wr, wi):
    """Real block weight of a complex conv in OIHW: [[Wr, -Wi], [Wi, Wr]].

    yr = wr*xr - wi*xi,  yi = wi*xr + wr*xi   (input block = [xr; xi])."""
    top = jnp.concatenate([wr, -wi], axis=1)
    bot = jnp.concatenate([wi, wr], axis=1)
    return jnp.concatenate([top, bot], axis=0)


def _dense_operator(block_w, cin2, h, w, *, stride, padding, lhs_dilation):
    """Exact dense operator M of a (strided / lhs-dilated) conv:
    conv(x).reshape(-1) == x.reshape(-1) @ M, flattening channel-major (C,H,W).
    Built by pushing an identity basis batch through lax.conv_general_dilated."""
    fin = cin2 * h * w
    eye = jnp.eye(fin, dtype=jnp.float32).reshape(fin, cin2, h, w)
    out = lax.conv_general_dilated(
        eye, block_w.astype(jnp.float32),
        window_strides=(stride, stride),
        padding=((padding, padding), (padding, padding)),
        lhs_dilation=(lhs_dilation, lhs_dilation),
        dimension_numbers=("NCHW", "OIHW", "NCHW"))
    _, cout2, ho, wo = out.shape
    return out.reshape(fin, cout2 * ho * wo), (ho, wo)


_DOWN = (("down1", 1, 4), ("down2", 4, 8), ("down3", 8, 16), ("down4", 16, 32))
_UP = (("up4", 32, 16), ("up3", 16, 8), ("up2", 8, 4), ("up1", 4, 1))


def prepare_params(raw):
    prepared = []
    h = w = 16
    for name, cin, cout in _DOWN:
        wr, wi, br, bi = raw[name]                      # (cout, cin, 3, 3)
        blk = _block_oihw(wr, wi)                       # (2cout, 2cin, 3, 3)
        mat, (ho, wo) = _dense_operator(blk, 2 * cin, h, w,
                                        stride=2, padding=1, lhs_dilation=1)
        bias = jnp.repeat(jnp.concatenate([br, bi]), ho * wo)
        prepared.append((mat.astype(jnp.bfloat16),
                         bias.reshape(1, -1).astype(jnp.float32)))
        h, w = ho, wo
    for name, cin, cout in _UP:
        wr, wi, br, bi = raw[name]                      # (cin, cout, 4, 4)
        # conv-transpose == lhs-dilated conv with flipped / in-out-swapped kernel
        wr_c = jnp.flip(wr, axis=(2, 3)).transpose(1, 0, 2, 3)
        wi_c = jnp.flip(wi, axis=(2, 3)).transpose(1, 0, 2, 3)
        blk = _block_oihw(wr_c, wi_c)                   # (2cout, 2cin, 4, 4)
        mat, (ho, wo) = _dense_operator(blk, 2 * cin, h, w,
                                        stride=1, padding=2, lhs_dilation=2)
        bias = jnp.repeat(jnp.concatenate([br, bi]), ho * wo)
        prepared.append((mat.astype(jnp.bfloat16),
                         bias.reshape(1, -1).astype(jnp.float32)))
        h, w = ho, wo
    return tuple(prepared)


# ----------------------------------------------------------------------------
# Deterministic parameter init in torch-module shapes.
# ----------------------------------------------------------------------------
def _init_complex_conv(key, weight_shape, cout):
    k1, k2, k3, k4 = jax.random.split(key, 4)
    fan_in = weight_shape[1] * weight_shape[2] * weight_shape[3]
    bound = 1.0 / (fan_in ** 0.5)
    wr = jax.random.uniform(k1, weight_shape, jnp.float32, -bound, bound)
    wi = jax.random.uniform(k2, weight_shape, jnp.float32, -bound, bound)
    br = jax.random.uniform(k3, (cout,), jnp.float32, -bound, bound)
    bi = jax.random.uniform(k4, (cout,), jnp.float32, -bound, bound)
    return wr, wi, br, bi


def init_params(key):
    keys = jax.random.split(key, 8)
    return {
        # ComplexConv2d(in, out, 3, stride=2, padding=1): weight (out, in, 3, 3)
        "down1": _init_complex_conv(keys[0], (4, 1, 3, 3), 4),
        "down2": _init_complex_conv(keys[1], (8, 4, 3, 3), 8),
        "down3": _init_complex_conv(keys[2], (16, 8, 3, 3), 16),
        "down4": _init_complex_conv(keys[3], (32, 16, 3, 3), 32),
        # ComplexConvTranspose2d(in, out, 4, stride=2, padding=1): (in, out, 4, 4)
        "up4": _init_complex_conv(keys[4], (32, 16, 4, 4), 16),
        "up3": _init_complex_conv(keys[5], (16, 8, 4, 4), 8),
        "up2": _init_complex_conv(keys[6], (8, 4, 4, 4), 4),
        "up1": _init_complex_conv(keys[7], (4, 1, 4, 4), 1),
    }


# ----------------------------------------------------------------------------
# CCNN1 forward (complex input represented as a (real, imag) float32 pair).
# ----------------------------------------------------------------------------
def ccnn1_forward(params, xr, xi):
    n, _, h, w = xr.shape
    # flatten to [real | imag] channel-major (C, H, W) rows
    x = jnp.concatenate([xr, xi], axis=1).reshape(n, -1)      # (N, 2*H*W)
    m = ((n + 7) // 8) * 8                                    # pad rows to 8
    x = jnp.pad(x, ((0, m - n), (0, 0)))
    out = _fused_forward_call(x, params)                      # (m, 2*H*W) f32
    out = out[:n].reshape(n, 2, h, w)                         # [real | imag]
    # TODO(synk): atan2 epilogue kept as one tiny XLA elementwise op (not
    # relying on arctan2 lowering inside Mosaic); the whole conv hot path
    # runs inside the single Pallas kernel above.
    return jnp.arctan2(out[:, 1:2], out[:, 0:1])


if __name__ == "__main__":
    key = jax.random.PRNGKey(0)
    pkey, xrkey, xikey = jax.random.split(key, 3)
    raw_params = init_params(pkey)
    params = prepare_params(raw_params)    # one-time weight prep, outside jit

    N, C, H, W = 2, 1, 16, 16              # complex input x: (2, 1, 16, 16)
    xr = jax.random.normal(xrkey, (N, C, H, W), jnp.float32)
    xi = jax.random.normal(xikey, (N, C, H, W), jnp.float32)

    fwd = jax.jit(ccnn1_forward)
    out = fwd(params, xr, xi)
    jax.block_until_ready(out)
    assert out.shape == (N, 1, H, W) and out.dtype == jnp.float32
    print("KERNEL_OK")
</pallas_src>

<mosaic_0001>
module attributes {stable_mosaic.version = 11 : i64} {
  func.func @_ccnn1_fused_kernel(%arg0: i32, %arg1: memref<8x512xf32, #tpu.memory_space<vmem>>, %arg2: memref<512x512xbf16, #tpu.memory_space<vmem>>, %arg3: memref<1x512xf32, #tpu.memory_space<vmem>>, %arg4: memref<512x256xbf16, #tpu.memory_space<vmem>>, %arg5: memref<1x256xf32, #tpu.memory_space<vmem>>, %arg6: memref<256x128xbf16, #tpu.memory_space<vmem>>, %arg7: memref<1x128xf32, #tpu.memory_space<vmem>>, %arg8: memref<128x64xbf16, #tpu.memory_space<vmem>>, %arg9: memref<1x64xf32, #tpu.memory_space<vmem>>, %arg10: memref<64x128xbf16, #tpu.memory_space<vmem>>, %arg11: memref<1x128xf32, #tpu.memory_space<vmem>>, %arg12: memref<128x256xbf16, #tpu.memory_space<vmem>>, %arg13: memref<1x256xf32, #tpu.memory_space<vmem>>, %arg14: memref<256x512xbf16, #tpu.memory_space<vmem>>, %arg15: memref<1x512xf32, #tpu.memory_space<vmem>>, %arg16: memref<512x512xbf16, #tpu.memory_space<vmem>>, %arg17: memref<1x512xf32, #tpu.memory_space<vmem>>, %arg18: memref<8x512xf32, #tpu.memory_space<vmem>>) attributes {dimension_semantics = [#tpu.dimension_semantics<arbitrary>], iteration_bounds = array<i64: 1>, scalar_prefetch = 0 : i64, scratch_operands = 0 : i64, tpu.core_type = #tpu.core_type<tc>, window_params = [{pipeline_mode = #tpu.pipeline_mode<synchronous>, transform_indices = @transform_0, window_bounds = array<i64: 8, 512>}, {pipeline_mode = #tpu.pipeline_mode<synchronous>, transform_indices = @transform_1, window_bounds = array<i64: 512, 512>}, {pipeline_mode = #tpu.pipeline_mode<synchronous>, transform_indices = @transform_2, window_bounds = array<i64: 1, 512>}, {pipeline_mode = #tpu.pipeline_mode<synchronous>, transform_indices = @transform_3, window_bounds = array<i64: 512, 256>}, {pipeline_mode = #tpu.pipeline_mode<synchronous>, transform_indices = @transform_4, window_bounds = array<i64: 1, 256>}, {pipeline_mode = #tpu.pipeline_mode<synchronous>, transform_indices = @transform_5, window_bounds = array<i64: 256, 128>}, {pipeline_mode = #tpu.pipeline_mode<synchronous>, transform_indices = @transform_6, window_bounds = array<i64: 1, 128>}, {pipeline_mode = #tpu.pipeline_mode<synchronous>, transform_indices = @transform_7, window_bounds = array<i64: 128, 64>}, {pipeline_mode = #tpu.pipeline_mode<synchronous>, transform_indices = @transform_8, window_bounds = array<i64: 1, 64>}, {pipeline_mode = #tpu.pipeline_mode<synchronous>, transform_indices = @transform_9, window_bounds = array<i64: 64, 128>}, {pipeline_mode = #tpu.pipeline_mode<synchronous>, transform_indices = @transform_10, window_bounds = array<i64: 1, 128>}, {pipeline_mode = #tpu.pipeline_mode<synchronous>, transform_indices = @transform_11, window_bounds = array<i64: 128, 256>}, {pipeline_mode = #tpu.pipeline_mode<synchronous>, transform_indices = @transform_12, window_bounds = array<i64: 1, 256>}, {pipeline_mode = #tpu.pipeline_mode<synchronous>, transform_indices = @transform_13, window_bounds = array<i64: 256, 512>}, {pipeline_mode = #tpu.pipeline_mode<synchronous>, transform_indices = @transform_14, window_bounds = array<i64: 1, 512>}, {pipeline_mode = #tpu.pipeline_mode<synchronous>, transform_indices = @transform_15, window_bounds = array<i64: 512, 512>}, {pipeline_mode = #tpu.pipeline_mode<synchronous>, transform_indices = @transform_16, window_bounds = array<i64: 1, 512>}, {pipeline_mode = #tpu.pipeline_mode<synchronous>, transform_indices = @transform_17, window_bounds = array<i64: 8, 512>}]} {
    %c0 = arith.constant 0 : index
    %c0_0 = arith.constant 0 : index
    %0 = vector.load %arg1[%c0, %c0_0] : memref<8x512xf32, #tpu.memory_space<vmem>>, vector<8x512xf32>
    %1 = arith.truncf %0 : vector<8x512xf32> to vector<8x512xbf16>
    %c0_1 = arith.constant 0 : index
    %c0_2 = arith.constant 0 : index
    %2 = vector.load %arg2[%c0_1, %c0_2] : memref<512x512xbf16, #tpu.memory_space<vmem>>, vector<512x512xbf16>
    %cst = arith.constant dense<0.000000e+00> : vector<8x512xf32>
    %3 = tpu.matmul %1, %2, %cst {dimension_numbers = #tpu.dot_dimension_numbers<[1], [0], [0], [1], [0, 0, 1, 1], [], []>} : vector<8x512xbf16>, vector<512x512xbf16>, vector<8x512xf32> -> vector<8x512xf32>
    %c0_3 = arith.constant 0 : index
    %c0_4 = arith.constant 0 : index
    %4 = vector.load %arg3[%c0_3, %c0_4] : memref<1x512xf32, #tpu.memory_space<vmem>>, vector<1x512xf32>
    %5 = vector.broadcast %4 : vector<1x512xf32> to vector<8x512xf32>
    %6 = arith.addf %3, %5 : vector<8x512xf32>
    %cst_5 = arith.constant 0.000000e+00 : f32
    %7 = vector.broadcast %cst_5 : f32 to vector<8x512xf32>
    %8 = arith.maximumf %6, %7 : vector<8x512xf32>
    %9 = arith.truncf %8 : vector<8x512xf32> to vector<8x512xbf16>
    %c0_6 = arith.constant 0 : index
    %c0_7 = arith.constant 0 : index
    %10 = vector.load %arg4[%c0_6, %c0_7] : memref<512x256xbf16, #tpu.memory_space<vmem>>, vector<512x256xbf16>
    %cst_8 = arith.constant dense<0.000000e+00> : vector<8x256xf32>
    %11 = tpu.matmul %9, %10, %cst_8 {dimension_numbers = #tpu.dot_dimension_numbers<[1], [0], [0], [1], [0, 0, 1, 1], [], []>} : vector<8x512xbf16>, vector<512x256xbf16>, vector<8x256xf32> -> vector<8x256xf32>
    %c0_9 = arith.constant 0 : index
    %c0_10 = arith.constant 0 : index
    %12 = vector.load %arg5[%c0_9, %c0_10] : memref<1x256xf32, #tpu.memory_space<vmem>>, vector<1x256xf32>
    %13 = vector.broadcast %12 : vector<1x256xf32> to vector<8x256xf32>
    %14 = arith.addf %11, %13 : vector<8x256xf32>
    %cst_11 = arith.constant 0.000000e+00 : f32
    %15 = vector.broadcast %cst_11 : f32 to vector<8x256xf32>
    %16 = arith.maximumf %14, %15 : vector<8x256xf32>
    %17 = arith.truncf %16 : vector<8x256xf32> to vector<8x256xbf16>
    %c0_12 = arith.constant 0 : index
    %c0_13 = arith.constant 0 : index
    %18 = vector.load %arg6[%c0_12, %c0_13] : memref<256x128xbf16, #tpu.memory_space<vmem>>, vector<256x128xbf16>
    %cst_14 = arith.constant dense<0.000000e+00> : vector<8x128xf32>
    %19 = tpu.matmul %17, %18, %cst_14 {dimension_numbers = #tpu.dot_dimension_numbers<[1], [0], [0], [1], [0, 0, 1, 1], [], []>} : vector<8x256xbf16>, vector<256x128xbf16>, vector<8x128xf32> -> vector<8x128xf32>
    %c0_15 = arith.constant 0 : index
    %c0_16 = arith.constant 0 : index
    %20 = vector.load %arg7[%c0_15, %c0_16] : memref<1x128xf32, #tpu.memory_space<vmem>>, vector<1x128xf32>
    %21 = vector.broadcast %20 : vector<1x128xf32> to vector<8x128xf32>
    %22 = arith.addf %19, %21 : vector<8x128xf32>
    %cst_17 = arith.constant 0.000000e+00 : f32
    %23 = vector.broadcast %cst_17 : f32 to vector<8x128xf32>
    %24 = arith.maximumf %22, %23 : vector<8x128xf32>
    %25 = arith.truncf %24 : vector<8x128xf32> to vector<8x128xbf16>
    %c0_18 = arith.constant 0 : index
    %c0_19 = arith.constant 0 : index
    %26 = vector.load %arg8[%c0_18, %c0_19] : memref<128x64xbf16, #tpu.memory_space<vmem>>, vector<128x64xbf16>
    %cst_20 = arith.constant dense<0.000000e+00> : vector<8x64xf32>
    %27 = tpu.matmul %25, %26, %cst_20 {dimension_numbers = #tpu.dot_dimension_numbers<[1], [0], [0], [1], [0, 0, 1, 1], [], []>} : vector<8x128xbf16>, vector<128x64xbf16>, vector<8x64xf32> -> vector<8x64xf32>
    %c0_21 = arith.constant 0 : index
    %c0_22 = arith.constant 0 : index
    %28 = vector.load %arg9[%c0_21, %c0_22] : memref<1x64xf32, #tpu.memory_space<vmem>>, vector<1x64xf32>
    %29 = vector.broadcast %28 : vector<1x64xf32> to vector<8x64xf32>
    %30 = arith.addf %27, %29 : vector<8x64xf32>
    %cst_23 = arith.constant 0.000000e+00 : f32
    %31 = vector.broadcast %cst_23 : f32 to vector<8x64xf32>
    %32 = arith.maximumf %30, %31 : vector<8x64xf32>
    %33 = arith.truncf %32 : vector<8x64xf32> to vector<8x64xbf16>
    %c0_24 = arith.constant 0 : index
    %c0_25 = arith.constant 0 : index
    %34 = vector.load %arg10[%c0_24, %c0_25] : memref<64x128xbf16, #tpu.memory_space<vmem>>, vector<64x128xbf16>
    %cst_26 = arith.constant dense<0.000000e+00> : vector<8x128xf32>
    %35 = tpu.matmul %33, %34, %cst_26 {dimension_numbers = #tpu.dot_dimension_numbers<[1], [0], [0], [1], [0, 0, 1, 1], [], []>} : vector<8x64xbf16>, vector<64x128xbf16>, vector<8x128xf32> -> vector<8x128xf32>
    %c0_27 = arith.constant 0 : index
    %c0_28 = arith.constant 0 : index
    %36 = vector.load %arg11[%c0_27, %c0_28] : memref<1x128xf32, #tpu.memory_space<vmem>>, vector<1x128xf32>
    %37 = vector.broadcast %36 : vector<1x128xf32> to vector<8x128xf32>
    %38 = arith.addf %35, %37 : vector<8x128xf32>
    %cst_29 = arith.constant 0.000000e+00 : f32
    %39 = vector.broadcast %cst_29 : f32 to vector<8x128xf32>
    %40 = arith.maximumf %38, %39 : vector<8x128xf32>
    %41 = arith.addf %40, %24 : vector<8x128xf32>
    %42 = arith.truncf %41 : vector<8x128xf32> to vector<8x128xbf16>
    %c0_30 = arith.constant 0 : index
    %c0_31 = arith.constant 0 : index
    %43 = vector.load %arg12[%c0_30, %c0_31] : memref<128x256xbf16, #tpu.memory_space<vmem>>, vector<128x256xbf16>
    %cst_32 = arith.constant dense<0.000000e+00> : vector<8x256xf32>
    %44 = tpu.matmul %42, %43, %cst_32 {dimension_numbers = #tpu.dot_dimension_numbers<[1], [0], [0], [1], [0, 0, 1, 1], [], []>} : vector<8x128xbf16>, vector<128x256xbf16>, vector<8x256xf32> -> vector<8x256xf32>
    %c0_33 = arith.constant 0 : index
    %c0_34 = arith.constant 0 : index
    %45 = vector.load %arg13[%c0_33, %c0_34] : memref<1x256xf32, #tpu.memory_space<vmem>>, vector<1x256xf32>
    %46 = vector.broadcast %45 : vector<1x256xf32> to vector<8x256xf32>
    %47 = arith.addf %44, %46 : vector<8x256xf32>
    %cst_35 = arith.constant 0.000000e+00 : f32
    %48 = vector.broadcast %cst_35 : f32 to vector<8x256xf32>
    %49 = arith.maximumf %47, %48 : vector<8x256xf32>
    %50 = arith.addf %49, %16 : vector<8x256xf32>
    %51 = arith.truncf %50 : vector<8x256xf32> to vector<8x256xbf16>
    %c0_36 = arith.constant 0 : index
    %c0_37 = arith.constant 0 : index
    %52 = vector.load %arg14[%c0_36, %c0_37] : memref<256x512xbf16, #tpu.memory_space<vmem>>, vector<256x512xbf16>
    %cst_38 = arith.constant dense<0.000000e+00> : vector<8x512xf32>
    %53 = tpu.matmul %51, %52, %cst_38 {dimension_numbers = #tpu.dot_dimension_numbers<[1], [0], [0], [1], [0, 0, 1, 1], [], []>} : vector<8x256xbf16>, vector<256x512xbf16>, vector<8x512xf32> -> vector<8x512xf32>
    %c0_39 = arith.constant 0 : index
    %c0_40 = arith.constant 0 : index
    %54 = vector.load %arg15[%c0_39, %c0_40] : memref<1x512xf32, #tpu.memory_space<vmem>>, vector<1x512xf32>
    %55 = vector.broadcast %54 : vector<1x512xf32> to vector<8x512xf32>
    %56 = arith.addf %53, %55 : vector<8x512xf32>
    %cst_41 = arith.constant 0.000000e+00 : f32
    %57 = vector.broadcast %cst_41 : f32 to vector<8x512xf32>
    %58 = arith.maximumf %56, %57 : vector<8x512xf32>
    %59 = arith.addf %58, %8 : vector<8x512xf32>
    %60 = arith.truncf %59 : vector<8x512xf32> to vector<8x512xbf16>
    %c0_42 = arith.constant 0 : index
    %c0_43 = arith.constant 0 : index
    %61 = vector.load %arg16[%c0_42, %c0_43] : memref<512x512xbf16, #tpu.memory_space<vmem>>, vector<512x512xbf16>
    %cst_44 = arith.constant dense<0.000000e+00> : vector<8x512xf32>
    %62 = tpu.matmul %60, %61, %cst_44 {dimension_numbers = #tpu.dot_dimension_numbers<[1], [0], [0], [1], [0, 0, 1, 1], [], []>} : vector<8x512xbf16>, vector<512x512xbf16>, vector<8x512xf32> -> vector<8x512xf32>
    %c0_45 = arith.constant 0 : index
    %c0_46 = arith.constant 0 : index
    %63 = vector.load %arg17[%c0_45, %c0_46] : memref<1x512xf32, #tpu.memory_space<vmem>>, vector<1x512xf32>
    %64 = vector.broadcast %63 : vector<1x512xf32> to vector<8x512xf32>
    %65 = arith.addf %62, %64 : vector<8x512xf32>
    %c0_47 = arith.constant 0 : index
    %c0_48 = arith.constant 0 : index
    %66 = vector.load %arg18[%c0_47, %c0_48] : memref<8x512xf32, #tpu.memory_space<vmem>>, vector<8x512xf32>
    tpu.vector_store %arg18[%c0_47, %c0_48], %65 {strides = array<i32>} : memref<8x512xf32, #tpu.memory_space<vmem>>, vector<8x512xf32>,
    return
  }
  func.func @transform_0(%arg0: i32) -> (i32, i32) {
    %c0_i32 = arith.constant 0 : i32
    %c0_i32_0 = arith.constant 0 : i32
    %c0_i32_1 = arith.constant 0 : i32
    return %c0_i32, %c0_i32_0 : i32, i32
  }
  func.func @transform_1(%arg0: i32) -> (i32, i32) {
    %c0_i32 = arith.constant 0 : i32
    %c0_i32_0 = arith.constant 0 : i32
    %c0_i32_1 = arith.constant 0 : i32
    return %c0_i32, %c0_i32_0 : i32, i32
  }
  func.func @transform_2(%arg0: i32) -> (i32, i32) {
    %c0_i32 = arith.constant 0 : i32
    %c0_i32_0 = arith.constant 0 : i32
    %c0_i32_1 = arith.constant 0 : i32
    return %c0_i32, %c0_i32_0 : i32, i32
  }
  func.func @transform_3(%arg0: i32) -> (i32, i32) {
    %c0_i32 = arith.constant 0 : i32
    %c0_i32_0 = arith.constant 0 : i32
    %c0_i32_1 = arith.constant 0 : i32
    return %c0_i32, %c0_i32_0 : i32, i32
  }
  func.func @transform_4(%arg0: i32) -> (i32, i32) {
    %c0_i32 = arith.constant 0 : i32
    %c0_i32_0 = arith.constant 0 : i32
    %c0_i32_1 = arith.constant 0 : i32
    return %c0_i32, %c0_i32_0 : i32, i32
  }
  func.func @transform_5(%arg0: i32) -> (i32, i32) {
    %c0_i32 = arith.constant 0 : i32
    %c0_i32_0 = arith.constant 0 : i32
    %c0_i32_1 = arith.constant 0 : i32
    return %c0_i32, %c0_i32_0 : i32, i32
  }
  func.func @transform_6(%arg0: i32) -> (i32, i32) {
    %c0_i32 = arith.constant 0 : i32
    %c0_i32_0 = arith.constant 0 : i32
    %c0_i32_1 = arith.constant 0 : i32
    return %c0_i32, %c0_i32_0 : i32, i32
  }
  func.func @transform_7(%arg0: i32) -> (i32, i32) {
    %c0_i32 = arith.constant 0 : i32
    %c0_i32_0 = arith.constant 0 : i32
    %c0_i32_1 = arith.constant 0 : i32
    return %c0_i32, %c0_i32_0 : i32, i32
  }
  func.func @transform_8(%arg0: i32) -> (i32, i32) {
    %c0_i32 = arith.constant 0 : i32
    %c0_i32_0 = arith.constant 0 : i32
    %c0_i32_1 = arith.constant 0 : i32
    return %c0_i32, %c0_i32_0 : i32, i32
  }
  func.func @transform_9(%arg0: i32) -> (i32, i32) {
    %c0_i32 = arith.constant 0 : i32
    %c0_i32_0 = arith.constant 0 : i32
    %c0_i32_1 = arith.constant 0 : i32
    return %c0_i32, %c0_i32_0 : i32, i32
  }
  func.func @transform_10(%arg0: i32) -> (i32, i32) {
    %c0_i32 = arith.constant 0 : i32
    %c0_i32_0 = arith.constant 0 : i32
    %c0_i32_1 = arith.constant 0 : i32
    return %c0_i32, %c0_i32_0 : i32, i32
  }
  func.func @transform_11(%arg0: i32) -> (i32, i32) {
    %c0_i32 = arith.constant 0 : i32
    %c0_i32_0 = arith.constant 0 : i32
    %c0_i32_1 = arith.constant 0 : i32
    return %c0_i32, %c0_i32_0 : i32, i32
  }
  func.func @transform_12(%arg0: i32) -> (i32, i32) {
    %c0_i32 = arith.constant 0 : i32
    %c0_i32_0 = arith.constant 0 : i32
    %c0_i32_1 = arith.constant 0 : i32
    return %c0_i32, %c0_i32_0 : i32, i32
  }
  func.func @transform_13(%arg0: i32) -> (i32, i32) {
    %c0_i32 = arith.constant 0 : i32
    %c0_i32_0 = arith.constant 0 : i32
    %c0_i32_1 = arith.constant 0 : i32
    return %c0_i32, %c0_i32_0 : i32, i32
  }
  func.func @transform_14(%arg0: i32) -> (i32, i32) {
    %c0_i32 = arith.constant 0 : i32
    %c0_i32_0 = arith.constant 0 : i32
    %c0_i32_1 = arith.constant 0 : i32
    return %c0_i32, %c0_i32_0 : i32, i32
  }
  func.func @transform_15(%arg0: i32) -> (i32, i32) {
    %c0_i32 = arith.constant 0 : i32
    %c0_i32_0 = arith.constant 0 : i32
    %c0_i32_1 = arith.constant 0 : i32
    return %c0_i32, %c0_i32_0 : i32, i32
  }
  func.func @transform_16(%arg0: i32) -> (i32, i32) {
    %c0_i32 = arith.constant 0 : i32
    %c0_i32_0 = arith.constant 0 : i32
    %c0_i32_1 = arith.constant 0 : i32
    return %c0_i32, %c0_i32_0 : i32, i32
  }
  func.func @transform_17(%arg0: i32) -> (i32, i32) {
    %c0_i32 = arith.constant 0 : i32
    %c0_i32_0 = arith.constant 0 : i32
    %c0_i32_1 = arith.constant 0 : i32
    return %c0_i32, %c0_i32_0 : i32, i32
  }
}

</mosaic_0001>

<llo_original>
// kernel: ccnn1_forward.1
$region0: #{ccnn1_forward.1}
  #allocation0 [shape = 'u32[]', space=smem, size = 0x4, offset = 0x4, fixed_abs, tag = 'smem constant byte address 0x4 - core index']
  #allocation1 [shape = 'u32[144,128]{1,0:T(1,128)}', space=vmem, size = 0x12000, scoped, tag = 'internal scratch']
  %s0 = inlined_call_operand.vmem [shape: f32[8,512], index: 0, kind: input, shape index: {}]
  %s1 = inlined_call_operand.hbm [shape: bf16[512,512], index: 1, kind: input, shape index: {}]
  %s2 = inlined_call_operand.vmem [shape: f32[1,512], index: 2, kind: input, shape index: {}]
  %s3 = inlined_call_operand.hbm [shape: bf16[512,256], index: 3, kind: input, shape index: {}]
  %s4 = inlined_call_operand.vmem [shape: f32[1,256], index: 4, kind: input, shape index: {}]
  %s5 = inlined_call_operand.vmem [shape: bf16[256,128], index: 5, kind: input, shape index: {}]
  %s6 = inlined_call_operand.vmem [shape: f32[1,128], index: 6, kind: input, shape index: {}]
  %s7 = inlined_call_operand.vmem [shape: bf16[128,64], index: 7, kind: input, shape index: {}]
  %s8 = inlined_call_operand.hbm [shape: f32[1,64], index: 8, kind: input, shape index: {}]
  %s9 = inlined_call_operand.vmem [shape: bf16[64,128], index: 9, kind: input, shape index: {}]
  %s10 = inlined_call_operand.hbm [shape: f32[1,128], index: 10, kind: input, shape index: {}]
  %s11 = inlined_call_operand.vmem [shape: bf16[128,256], index: 11, kind: input, shape index: {}]
  %s12 = inlined_call_operand.vmem [shape: f32[1,256], index: 12, kind: input, shape index: {}]
  %s13 = inlined_call_operand.hbm [shape: bf16[256,512], index: 13, kind: input, shape index: {}]
  %s14 = inlined_call_operand.vmem [shape: f32[1,512], index: 14, kind: input, shape index: {}]
  %s15 = inlined_call_operand.hbm [shape: bf16[512,512], index: 15, kind: input, shape index: {}]
  %s16 = inlined_call_operand.vmem [shape: f32[1,512], index: 16, kind: input, shape index: {}]
  %s17 = inlined_call_operand.vmem [shape: f32[8,512], index: 17, kind: output, shape index: {}]
  %s18 = sld [smem:[#allocation0]]
  $region102: #{ccnn1_forward.1} parent=0
    _
  %s20 = ssub.s32 1, %s18
  %s21 = scalar_select 0, %s20, %s18
  $region1: #{ccnn1_forward.1} parent=0
    #allocation2 [shape = 'u8[524288]{0}', space=vmem, size = 0x80000, scoped, tag = 'input window, operand 1, single buffered']
    #allocation3 [shape = 's32[1]{0}', space=sflag, size = 0x4, scoped, tag = 'scoped memory for ccnn1_forward.1']
    #allocation4 [shape = 'u8[262144]{0}', space=vmem, size = 0x40000, scoped, tag = 'input window, operand 3, single buffered']
    #allocation5 [shape = 's32[1]{0}', space=sflag, size = 0x4, scoped, tag = 'scoped memory for ccnn1_forward.1']
    #allocation6 [shape = 'u8[512]{0}', space=vmem, size = 0x400, scoped, tag = 'input window, operand 8, single buffered']
    #allocation7 [shape = 'u8[512]{0}', space=vmem, size = 0x400, scoped, tag = 'input window, operand 10, single buffered']
    #allocation8 [shape = 's32[1]{0}', space=sflag, size = 0x4, scoped, tag = 'scoped memory for ccnn1_forward.1']
    #allocation9 [shape = 'u8[262144]{0}', space=vmem, size = 0x40000, scoped, tag = 'input window, operand 13, single buffered']
    #allocation10 [shape = 'u8[524288]{0}', space=vmem, size = 0x80000, scoped, tag = 'input window, operand 15, single buffered']
    #allocation11 [shape = 's32[1]{0}', space=sflag, size = 0x4, scoped, tag = 'scoped memory for ccnn1_forward.1']
    %22 = vsyncpa [#allocation3], 0
    %23 = vsyncpa [#allocation5], 0
    %24 = vsyncpa [#allocation8], 0
    %25 = vsyncpa [#allocation11], 0
    // Predicated region
    $region2: #{ccnn1_forward.1} parent=1 // pred_check
      _
    $region3: #{ccnn1_forward.1} parent=1 // pred_check_branch
      %27 = sbr.rel (0) target = $region5
    $region4: #{ccnn1_forward.1} parent=1 // pred_region
      _
    $region5: #{ccnn1_forward.1} parent=1 // pred_fallthru
      _
    // Predicated region
    $region6: #{ccnn1_forward.1} parent=1 // pred_check
      _
    $region7: #{ccnn1_forward.1} parent=1 // pred_check_branch
      %29 = sbr.rel (0) target = $region9
    $region8: #{ccnn1_forward.1} parent=1 // pred_region
      %s31 = ssub.s32 16384, 16384
      %32 = vsyncadd [#allocation3], %s31
      %s33 = sshll.u32 [#allocation2], 4
      %s34 = int_to_ptr.vmem [resolvable:$true] %s33
      %39 = dma.hbm_to_vmem [thread:$0]  %s1, 16384, %s34, [#allocation3], 256, 256, 16
    $region9: #{ccnn1_forward.1} parent=1 // pred_fallthru
      _
    // Predicated region
    $region10: #{ccnn1_forward.1} parent=1 // pred_check
      _
    $region11: #{ccnn1_forward.1} parent=1 // pred_check_branch
      %41 = sbr.rel (0) target = $region13
    $region12: #{ccnn1_forward.1} parent=1 // pred_region
      _
    $region13: #{ccnn1_forward.1} parent=1 // pred_fallthru
      _
    // Predicated region
    $region14: #{ccnn1_forward.1} parent=1 // pred_check
      _
    $region15: #{ccnn1_forward.1} parent=1 // pred_check_branch
      %43 = sbr.rel (0) target = $region17
    $region16: #{ccnn1_forward.1} parent=1 // pred_region
      %s45 = ssub.s32 8192, 8192
      %46 = vsyncadd [#allocation5], %s45
      %s47 = sshll.u32 [#allocation4], 4
      %s48 = int_to_ptr.vmem [resolvable:$true] %s47
      %53 = dma.hbm_to_vmem [thread:$0]  %s3, 8192, %s48, [#allocation5], 128, 128, 8
    $region17: #{ccnn1_forward.1} parent=1 // pred_fallthru
      _
    // Predicated region
    $region18: #{ccnn1_forward.1} parent=1 // pred_check
      _
    $region19: #{ccnn1_forward.1} parent=1 // pred_check_branch
      %55 = sbr.rel (0) target = $region21
    $region20: #{ccnn1_forward.1} parent=1 // pred_region
      _
    $region21: #{ccnn1_forward.1} parent=1 // pred_fallthru
      _
    // Predicated region
    $region22: #{ccnn1_forward.1} parent=1 // pred_check
      _
    $region23: #{ccnn1_forward.1} parent=1 // pred_check_branch
      %57 = sbr.rel (0) target = $region25
    $region24: #{ccnn1_forward.1} parent=1 // pred_region
      _
    $region25: #{ccnn1_forward.1} parent=1 // pred_fallthru
      _
    // Predicated region
    $region26: #{ccnn1_forward.1} parent=1 // pred_check
      _
    $region27: #{ccnn1_forward.1} parent=1 // pred_check_branch
      %59 = sbr.rel (0) target = $region29
    $region28: #{ccnn1_forward.1} parent=1 // pred_region
      _
    $region29: #{ccnn1_forward.1} parent=1 // pred_fallthru
      _
    // Predicated region
    $region30: #{ccnn1_forward.1} parent=1 // pred_check
      _
    $region31: #{ccnn1_forward.1} parent=1 // pred_check_branch
      %61 = sbr.rel (0) target = $region33
    $region32: #{ccnn1_forward.1} parent=1 // pred_region
      _
    $region33: #{ccnn1_forward.1} parent=1 // pred_fallthru
      _
    // Predicated region
    $region34: #{ccnn1_forward.1} parent=1 // pred_check
      _
    $region35: #{ccnn1_forward.1} parent=1 // pred_check_branch
      %63 = sbr.rel (0) target = $region37
    $region36: #{ccnn1_forward.1} parent=1 // pred_region
      %s65 = ssub.s32 16, 16
      %66 = vsyncadd [#allocation5], %s65
      %s68 = sshll.u32 [#allocation6], 4
      %s69 = int_to_ptr.vmem [resolvable:$true] %s68
      %71 = dma.hbm_to_vmem [thread:$0]  %s8, 16, %s69, [#allocation5]
    $region37: #{ccnn1_forward.1} parent=1 // pred_fallthru
      _
    // Predicated region
    $region38: #{ccnn1_forward.1} parent=1 // pred_check
      _
    $region39: #{ccnn1_forward.1} parent=1 // pred_check_branch
      %73 = sbr.rel (0) target = $region41
    $region40: #{ccnn1_forward.1} parent=1 // pred_region
      _
    $region41: #{ccnn1_forward.1} parent=1 // pred_fallthru
      _
    // Predicated region
    $region42: #{ccnn1_forward.1} parent=1 // pred_check
      _
    $region43: #{ccnn1_forward.1} parent=1 // pred_check_branch
      %75 = sbr.rel (0) target = $region45
    $region44: #{ccnn1_forward.1} parent=1 // pred_region
      %s77 = ssub.s32 16, 16
      %78 = vsyncadd [#allocation8], %s77
      %s80 = sshll.u32 [#allocation7], 4
      %s81 = int_to_ptr.vmem [resolvable:$true] %s80
      %83 = dma.hbm_to_vmem [thread:$0]  %s10, 16, %s81, [#allocation8]
    $region45: #{ccnn1_forward.1} parent=1 // pred_fallthru
      _
    // Predicated region
    $region46: #{ccnn1_forward.1} parent=1 // pred_check
      _
    $region47: #{ccnn1_forward.1} parent=1 // pred_check_branch
      %85 = sbr.rel (0) target = $region49
    $region48: #{ccnn1_forward.1} parent=1 // pred_region
      _
    $region49: #{ccnn1_forward.1} parent=1 // pred_fallthru
      _
    // Predicated region
    $region50: #{ccnn1_forward.1} parent=1 // pred_check
      _
    $region51: #{ccnn1_forward.1} parent=1 // pred_check_branch
      %87 = sbr.rel (0) target = $region53
    $region52: #{ccnn1_forward.1} parent=1 // pred_region
      _
    $region53: #{ccnn1_forward.1} parent=1 // pred_fallthru
      _
    // Predicated region
    $region54: #{ccnn1_forward.1} parent=1 // pred_check
      _
    $region55: #{ccnn1_forward.1} parent=1 // pred_check_branch
      %89 = sbr.rel (0) target = $region57
    $region56: #{ccnn1_forward.1} parent=1 // pred_region
      %s91 = ssub.s32 8192, 8192
      %92 = vsyncadd [#allocation8], %s91
      %s93 = sshll.u32 [#allocation9], 4
      %s94 = int_to_ptr.vmem [resolvable:$true] %s93
      %99 = dma.hbm_to_vmem [thread:$0]  %s13, 8192, %s94, [#allocation8], 256, 256, 16
    $region57: #{ccnn1_forward.1} parent=1 // pred_fallthru
      _
    // Predicated region
    $region58: #{ccnn1_forward.1} parent=1 // pred_check
      _
    $region59: #{ccnn1_forward.1} parent=1 // pred_check_branch
      %101 = sbr.rel (0) target = $region61
    $region60: #{ccnn1_forward.1} parent=1 // pred_region
      _
    $region61: #{ccnn1_forward.1} parent=1 // pred_fallthru
      _
    // Predicated region
    $region62: #{ccnn1_forward.1} parent=1 // pred_check
      _
    $region63: #{ccnn1_forward.1} parent=1 // pred_check_branch
      %103 = sbr.rel (0) target = $region65
    $region64: #{ccnn1_forward.1} parent=1 // pred_region
      %s105 = ssub.s32 16384, 16384
      %106 = vsyncadd [#allocation11], %s105
      %s107 = sshll.u32 [#allocation10], 4
      %s108 = int_to_ptr.vmem [resolvable:$true] %s107
      %113 = dma.hbm_to_vmem [thread:$0]  %s15, 16384, %s108, [#allocation11], 256, 256, 16
    $region65: #{ccnn1_forward.1} parent=1 // pred_fallthru
      _
    // Predicated region
    $region66: #{ccnn1_forward.1} parent=1 // pred_check
      _
    $region67: #{ccnn1_forward.1} parent=1 // pred_check_branch
      %115 = sbr.rel (0) target = $region69
    $region68: #{ccnn1_forward.1} parent=1 // pred_region
      _
    $region69: #{ccnn1_forward.1} parent=1 // pred_fallthru
      _
    // Predicated region
    $region70: #{ccnn1_forward.1} parent=1 // pred_check
      _
    $region71: #{ccnn1_forward.1} parent=1 // pred_check_branch
      %117 = sbr.rel (0) target = $region73
    $region72: #{ccnn1_forward.1} parent=1 // pred_region
      %118 = dma.done [#allocation3], 16384
    $region73: #{ccnn1_forward.1} parent=1 // pred_fallthru
      _
    // Predicated region
    $region74: #{ccnn1_forward.1} parent=1 // pred_check
      _
    $region75: #{ccnn1_forward.1} parent=1 // pred_check_branch
      %120 = sbr.rel (0) target = $region77
    $region76: #{ccnn1_forward.1} parent=1 // pred_region
      %121 = dma.done [#allocation5], 8192
    $region77: #{ccnn1_forward.1} parent=1 // pred_fallthru
      _
    // Predicated region
    $region78: #{ccnn1_forward.1} parent=1 // pred_check
      _
    $region79: #{ccnn1_forward.1} parent=1 // pred_check_branch
      %123 = sbr.rel (0) target = $region81
    $region80: #{ccnn1_forward.1} parent=1 // pred_region
      %124 = dma.done [#allocation5], 16
    $region81: #{ccnn1_forward.1} parent=1 // pred_fallthru
      _
    // Predicated region
    $region82: #{ccnn1_forward.1} parent=1 // pred_check
      _
    $region83: #{ccnn1_forward.1} parent=1 // pred_check_branch
      %126 = sbr.rel (0) target = $region85
    $region84: #{ccnn1_forward.1} parent=1 // pred_region
      %127 = dma.done [#allocation8], 16
    $region85: #{ccnn1_forward.1} parent=1 // pred_fallthru
      _
    // Predicated region
    $region86: #{ccnn1_forward.1} parent=1 // pred_check
      _
    $region87: #{ccnn1_forward.1} parent=1 // pred_check_branch
      %129 = sbr.rel (0) target = $region89
    $region88: #{ccnn1_forward.1} parent=1 // pred_region
      %130 = dma.done [#allocation8], 8192
    $region89: #{ccnn1_forward.1} parent=1 // pred_fallthru
      _
    // Predicated region
    $region90: #{ccnn1_forward.1} parent=1 // pred_check
      _
    $region91: #{ccnn1_forward.1} parent=1 // pred_check_branch
      %132 = sbr.rel (0) target = $region93
    $region92: #{ccnn1_forward.1} parent=1 // pred_region
      %133 = dma.done [#allocation11], 16384
    $region93: #{ccnn1_forward.1} parent=1 // pred_fallthru
      _
    %v135 = vld [vmem:[%s0] sm:$0xff]
    %v136 = vld [vmem:[%s0 + $0x8] sm:$0xff]
    %v137 = vld [vmem:[%s0 + $0x10] sm:$0xff]
    %v138 = vld [vmem:[%s0 + $0x18] sm:$0xff]
    %v139 = vpack.c.bf16 %v135, %v135
    %v140 = vpack.c.bf16 %v136, %v136
    %v141 = vpack.c.bf16 %v137, %v137
    %v142 = vpack.c.bf16 %v138, %v138
    %v143 = vld [vmem:[#allocation2] sm:$0xff]
    %v144 = vld [vmem:[#allocation2 + $0x8] sm:$0xff]
    %v145 = vld [vmem:[#allocation2 + $0x10] sm:$0xff]
    %v146 = vld [vmem:[#allocation2 + $0x18] sm:$0xff]
    %v147 = vld [vmem:[#allocation2 + $0x20] sm:$0xff]
    %v148 = vld [vmem:[#allocation2 + $0x28] sm:$0xff]
    %v149 = vld [vmem:[#allocation2 + $0x30] sm:$0xff]
    %v150 = vld [vmem:[#allocation2 + $0x38] sm:$0xff]
    %v151 = vld [vmem:[#allocation2 + $0x40] sm:$0xff]
    %v152 = vld [vmem:[#allocation2 + $0x48] sm:$0xff]
    %v153 = vld [vmem:[#allocation2 + $0x50] sm:$0xff]
    %v154 = vld [vmem:[#allocation2 + $0x58] sm:$0xff]
    %v155 = vld [vmem:[#allocation2 + $0x60] sm:$0xff]
    %v156 = vld [vmem:[#allocation2 + $0x68] sm:$0xff]
    %v157 = vld [vmem:[#allocation2 + $0x70] sm:$0xff]
    %v158 = vld [vmem:[#allocation2 + $0x78] sm:$0xff]
    %v159 = vld [vmem:[#allocation2 + $0x80] sm:$0xff]
    %v160 = vld [vmem:[#allocation2 + $0x88] sm:$0xff]
    %v161 = vld [vmem:[#allocation2 + $0x90] sm:$0xff]
    %v162 = vld [vmem:[#allocation2 + $0x98] sm:$0xff]
    %v163 = vld [vmem:[#allocation2 + $0xa0] sm:$0xff]
    %v164 = vld [vmem:[#allocation2 + $0xa8] sm:$0xff]
    %v165 = vld [vmem:[#allocation2 + $0xb0] sm:$0xff]
    %v166 = vld [vmem:[#allocation2 + $0xb8] sm:$0xff]
    %v167 = vld [vmem:[#allocation2 + $0xc0] sm:$0xff]
    %v168 = vld [vmem:[#allocation2 + $0xc8] sm:$0xff]
    %v169 = vld [vmem:[#allocation2 + $0xd0] sm:$0xff]
    %v170 = vld [vmem:[#allocation2 + $0xd8] sm:$0xff]
    %v171 = vld [vmem:[#allocation2 + $0xe0] sm:$0xff]
    %v172 = vld [vmem:[#allocation2 + $0xe8] sm:$0xff]
    %v173 = vld [vmem:[#allocation2 + $0xf0] sm:$0xff]
    %v174 = vld [vmem:[#allocation2 + $0xf8] sm:$0xff]
    %v175 = vld [vmem:[#allocation2 + $0x100] sm:$0xff]
    %v176 = vld [vmem:[#allocation2 + $0x108] sm:$0xff]
    %v177 = vld [vmem:[#allocation2 + $0x110] sm:$0xff]
    %v178 = vld [vmem:[#allocation2 + $0x118] sm:$0xff]
    %v179 = vld [vmem:[#allocation2 + $0x120] sm:$0xff]
    %v180 = vld [vmem:[#allocation2 + $0x128] sm:$0xff]
    %v181 = vld [vmem:[#allocation2 + $0x130] sm:$0xff]
    %v182 = vld [vmem:[#allocation2 + $0x138] sm:$0xff]
    %v183 = vld [vmem:[#allocation2 + $0x140] sm:$0xff]
    %v184 = vld [vmem:[#allocation2 + $0x148] sm:$0xff]
    %v185 = vld [vmem:[#allocation2 + $0x150] sm:$0xff]
    %v186 = vld [vmem:[#allocation2 + $0x158] sm:$0xff]
    %v187 = vld [vmem:[#allocation2 + $0x160] sm:$0xff]
    %v188 = vld [vmem:[#allocation2 + $0x168] sm:$0xff]
    %v189 = vld [vmem:[#allocation2 + $0x170] sm:$0xff]
    %v190 = vld [vmem:[#allocation2 + $0x178] sm:$0xff]
    %v191 = vld [vmem:[#allocation2 + $0x180] sm:$0xff]
    %v192 = vld [vmem:[#allocation2 + $0x188] sm:$0xff]
    %v193 = vld [vmem:[#allocation2 + $0x190] sm:$0xff]
    %v194 = vld [vmem:[#allocation2 + $0x198] sm:$0xff]
    %v195 = vld [vmem:[#allocation2 + $0x1a0] sm:$0xff]
    %v196 = vld [vmem:[#allocation2 + $0x1a8] sm:$0xff]
    %v197 = vld [vmem:[#allocation2 + $0x1b0] sm:$0xff]
    %v198 = vld [vmem:[#allocation2 + $0x1b8] sm:$0xff]
    %v199 = vld [vmem:[#allocation2 + $0x1c0] sm:$0xff]
    %v200 = vld [vmem:[#allocation2 + $0x1c8] sm:$0xff]
    %v201 = vld [vmem:[#allocation2 + $0x1d0] sm:$0xff]
    %v202 = vld [vmem:[#allocation2 + $0x1d8] sm:$0xff]
    %v203 = vld [vmem:[#allocation2 + $0x1e0] sm:$0xff]
    %v204 = vld [vmem:[#allocation2 + $0x1e8] sm:$0xff]
    %v205 = vld [vmem:[#allocation2 + $0x1f0] sm:$0xff]
    %v206 = vld [vmem:[#allocation2 + $0x1f8] sm:$0xff]
    %v207 = vld [vmem:[#allocation2 + $0x200] sm:$0xff]
    %v208 = vld [vmem:[#allocation2 + $0x208] sm:$0xff]
    %v209 = vld [vmem:[#allocation2 + $0x210] sm:$0xff]
    %v210 = vld [vmem:[#allocation2 + $0x218] sm:$0xff]
    %v211 = vld [vmem:[#allocation2 + $0x220] sm:$0xff]
    %v212 = vld [vmem:[#allocation2 + $0x228] sm:$0xff]
    %v213 = vld [vmem:[#allocation2 + $0x230] sm:$0xff]
    %v214 = vld [vmem:[#allocation2 + $0x238] sm:$0xff]
    %v215 = vld [vmem:[#allocation2 + $0x240] sm:$0xff]
    %v216 = vld [vmem:[#allocation2 + $0x248] sm:$0xff]
    %v217 = vld [vmem:[#allocation2 + $0x250] sm:$0xff]
    %v218 = vld [vmem:[#allocation2 + $0x258] sm:$0xff]
    %v219 = vld [vmem:[#allocation2 + $0x260] sm:$0xff]
    %v220 = vld [vmem:[#allocation2 + $0x268] sm:$0xff]
    %v221 = vld [vmem:[#allocation2 + $0x270] sm:$0xff]
    %v222 = vld [vmem:[#allocation2 + $0x278] sm:$0xff]
    %v223 = vld [vmem:[#allocation2 + $0x280] sm:$0xff]
    %v224 = vld [vmem:[#allocation2 + $0x288] sm:$0xff]
    %v225 = vld [vmem:[#allocation2 + $0x290] sm:$0xff]
    %v226 = vld [vmem:[#allocation2 + $0x298] sm:$0xff]
    %v227 = vld [vmem:[#allocation2 + $0x2a0] sm:$0xff]
    %v228 = vld [vmem:[#allocation2 + $0x2a8] sm:$0xff]
    %v229 = vld [vmem:[#allocation2 + $0x2b0] sm:$0xff]
    %v230 = vld [vmem:[#allocation2 + $0x2b8] sm:$0xff]
    %v231 = vld [vmem:[#allocation2 + $0x2c0] sm:$0xff]
    %v232 = vld [vmem:[#allocation2 + $0x2c8] sm:$0xff]
    %v233 = vld [vmem:[#allocation2 + $0x2d0] sm:$0xff]
    %v234 = vld [vmem:[#allocation2 + $0x2d8] sm:$0xff]
    %v235 = vld [vmem:[#allocation2 + $0x2e0] sm:$0xff]
    %v236 = vld [vmem:[#allocation2 + $0x2e8] sm:$0xff]
    %v237 = vld [vmem:[#allocation2 + $0x2f0] sm:$0xff]
    %v238 = vld [vmem:[#allocation2 + $0x2f8] sm:$0xff]
    %v239 = vld [vmem:[#allocation2 + $0x300] sm:$0xff]
    %v240 = vld [vmem:[#allocation2 + $0x308] sm:$0xff]
    %v241 = vld [vmem:[#allocation2 + $0x310] sm:$0xff]
    %v242 = vld [vmem:[#allocation2 + $0x318] sm:$0xff]
    %v243 = vld [vmem:[#allocation2 + $0x320] sm:$0xff]
    %v244 = vld [vmem:[#allocation2 + $0x328] sm:$0xff]
    %v245 = vld [vmem:[#allocation2 + $0x330] sm:$0xff]
    %v246 = vld [vmem:[#allocation2 + $0x338] sm:$0xff]
    %v247 = vld [vmem:[#allocation2 + $0x340] sm:$0xff]
    %v248 = vld [vmem:[#allocation2 + $0x348] sm:$0xff]
    %v249 = vld [vmem:[#allocation2 + $0x350] sm:$0xff]
    %v250 = vld [vmem:[#allocation2 + $0x358] sm:$0xff]
    %v251 = vld [vmem:[#allocation2 + $0x360] sm:$0xff]
    %v252 = vld [vmem:[#allocation2 + $0x368] sm:$0xff]
    %v253 = vld [vmem:[#allocation2 + $0x370] sm:$0xff]
    %v254 = vld [vmem:[#allocation2 + $0x378] sm:$0xff]
    %v255 = vld [vmem:[#allocation2 + $0x380] sm:$0xff]
    %v256 = vld [vmem:[#allocation2 + $0x388] sm:$0xff]
    %v257 = vld [vmem:[#allocation2 + $0x390] sm:$0xff]
    %v258 = vld [vmem:[#allocation2 + $0x398] sm:$0xff]
    %v259 = vld [vmem:[#allocation2 + $0x3a0] sm:$0xff]
    %v260 = vld [vmem:[#allocation2 + $0x3a8] sm:$0xff]
    %v261 = vld [vmem:[#allocation2 + $0x3b0] sm:$0xff]
    %v262 = vld [vmem:[#allocation2 + $0x3b8] sm:$0xff]
    %v263 = vld [vmem:[#allocation2 + $0x3c0] sm:$0xff]
    %v264 = vld [vmem:[#allocation2 + $0x3c8] sm:$0xff]
    %v265 = vld [vmem:[#allocation2 + $0x3d0] sm:$0xff]
    %v266 = vld [vmem:[#allocation2 + $0x3d8] sm:$0xff]
    %v267 = vld [vmem:[#allocation2 + $0x3e0] sm:$0xff]
    %v268 = vld [vmem:[#allocation2 + $0x3e8] sm:$0xff]
    %v269 = vld [vmem:[#allocation2 + $0x3f0] sm:$0xff]
    %v270 = vld [vmem:[#allocation2 + $0x3f8] sm:$0xff]
    %v271 = vld [vmem:[%s2] sm:$0xf]
    %v273 = vlaneseq
    %v274 = vshrl.u32 %v273, 7
    %v275 = vsub.s32 0, %v274
    %v276 = vrot.slane %v271, %v275
    %v277 = vlaneseq
    %v278 = vshrl.u32 %v277, 7
    %v279 = vsub.s32 1, %v278
    %v280 = vrot.slane %v271, %v279
    %v281 = vlaneseq
    %v282 = vshrl.u32 %v281, 7
    %v283 = vsub.s32 2, %v282
    %v284 = vrot.slane %v271, %v283
    %v285 = vlaneseq
    %v286 = vshrl.u32 %v285, 7
    %v287 = vsub.s32 3, %v286
    %v288 = vrot.slane %v271, %v287
    %v421 = vunpack.c.l.b16 %v143
    %v422 = vunpack.c.h.b16 %v143
    %v423 = vunpack.c.l.b16 %v144
    %v424 = vunpack.c.h.b16 %v144
    %v425 = vunpack.c.l.b16 %v145
    %v426 = vunpack.c.h.b16 %v145
    %v427 = vunpack.c.l.b16 %v146
    %v428 = vunpack.c.h.b16 %v146
    %v429 = vunpack.c.l.b16 %v147
    %v430 = vunpack.c.h.b16 %v147
    %v431 = vunpack.c.l.b16 %v148
    %v432 = vunpack.c.h.b16 %v148
    %v433 = vunpack.c.l.b16 %v149
    %v434 = vunpack.c.h.b16 %v149
    %v435 = vunpack.c.l.b16 %v150
    %v436 = vunpack.c.h.b16 %v150
    %v437 = vunpack.c.l.b16 %v151
    %v438 = vunpack.c.h.b16 %v151
    %v439 = vunpack.c.l.b16 %v152
    %v440 = vunpack.c.h.b16 %v152
    %v441 = vunpack.c.l.b16 %v153
    %v442 = vunpack.c.h.b16 %v153
    %v443 = vunpack.c.l.b16 %v154
    %v444 = vunpack.c.h.b16 %v154
    %v445 = vunpack.c.l.b16 %v155
    %v446 = vunpack.c.h.b16 %v155
    %v447 = vunpack.c.l.b16 %v156
    %v448 = vunpack.c.h.b16 %v156
    %v449 = vunpack.c.l.b16 %v157
    %v450 = vunpack.c.h.b16 %v157
    %v451 = vunpack.c.l.b16 %v158
    %v452 = vunpack.c.h.b16 %v158
    %v453 = vunpack.c.l.b16 %v159
    %v454 = vunpack.c.h.b16 %v159
    %v455 = vunpack.c.l.b16 %v160
    %v456 = vunpack.c.h.b16 %v160
    %v457 = vunpack.c.l.b16 %v161
    %v458 = vunpack.c.h.b16 %v161
    %v459 = vunpack.c.l.b16 %v162
    %v460 = vunpack.c.h.b16 %v162
    %v461 = vunpack.c.l.b16 %v163
    %v462 = vunpack.c.h.b16 %v163
    %v463 = vunpack.c.l.b16 %v164
    %v464 = vunpack.c.h.b16 %v164
    %v465 = vunpack.c.l.b16 %v165
    %v466 = vunpack.c.h.b16 %v165
    %v467 = vunpack.c.l.b16 %v166
    %v468 = vunpack.c.h.b16 %v166
    %v469 = vunpack.c.l.b16 %v167
    %v470 = vunpack.c.h.b16 %v167
    %v471 = vunpack.c.l.b16 %v168
    %v472 = vunpack.c.h.b16 %v168
    %v473 = vunpack.c.l.b16 %v169
    %v474 = vunpack.c.h.b16 %v169
    %v475 = vunpack.c.l.b16 %v170
    %v476 = vunpack.c.h.b16 %v170
    %v477 = vunpack.c.l.b16 %v171
    %v478 = vunpack.c.h.b16 %v171
    %v479 = vunpack.c.l.b16 %v172
    %v480 = vunpack.c.h.b16 %v172
    %v481 = vunpack.c.l.b16 %v173
    %v482 = vunpack.c.h.b16 %v173
    %v483 = vunpack.c.l.b16 %v174
    %v484 = vunpack.c.h.b16 %v174
    %v485 = vunpack.c.l.b16 %v175
    %v486 = vunpack.c.h.b16 %v175
    %v487 = vunpack.c.l.b16 %v176
    %v488 = vunpack.c.h.b16 %v176
    %v489 = vunpack.c.l.b16 %v177
    %v490 = vunpack.c.h.b16 %v177
    %v491 = vunpack.c.l.b16 %v178
    %v492 = vunpack.c.h.b16 %v178
    %v493 = vunpack.c.l.b16 %v179
    %v494 = vunpack.c.h.b16 %v179
    %v495 = vunpack.c.l.b16 %v180
    %v496 = vunpack.c.h.b16 %v180
    %v497 = vunpack.c.l.b16 %v181
    %v498 = vunpack.c.h.b16 %v181
    %v499 = vunpack.c.l.b16 %v182
    %v500 = vunpack.c.h.b16 %v182
    %v501 = vunpack.c.l.b16 %v183
    %v502 = vunpack.c.h.b16 %v183
    %v503 = vunpack.c.l.b16 %v184
    %v504 = vunpack.c.h.b16 %v184
    %v505 = vunpack.c.l.b16 %v185
    %v506 = vunpack.c.h.b16 %v185
    %v507 = vunpack.c.l.b16 %v186
    %v508 = vunpack.c.h.b16 %v186
    %v509 = vunpack.c.l.b16 %v187
    %v510 = vunpack.c.h.b16 %v187
    %v511 = vunpack.c.l.b16 %v188
    %v512 = vunpack.c.h.b16 %v188
    %v513 = vunpack.c.l.b16 %v189
    %v514 = vunpack.c.h.b16 %v189
    %v515 = vunpack.c.l.b16 %v190
    %v516 = vunpack.c.h.b16 %v190
    %v517 = vunpack.c.l.b16 %v191
    %v518 = vunpack.c.h.b16 %v191
    %v519 = vunpack.c.l.b16 %v192
    %v520 = vunpack.c.h.b16 %v192
    %v521 = vunpack.c.l.b16 %v193
    %v522 = vunpack.c.h.b16 %v193
    %v523 = vunpack.c.l.b16 %v194
    %v524 = vunpack.c.h.b16 %v194
    %v525 = vunpack.c.l.b16 %v195
    %v526 = vunpack.c.h.b16 %v195
    %v527 = vunpack.c.l.b16 %v196
    %v528 = vunpack.c.h.b16 %v196
    %v529 = vunpack.c.l.b16 %v197
    %v530 = vunpack.c.h.b16 %v197
    %v531 = vunpack.c.l.b16 %v198
    %v532 = vunpack.c.h.b16 %v198
    %v533 = vunpack.c.l.b16 %v199
    %v534 = vunpack.c.h.b16 %v199
    %v535 = vunpack.c.l.b16 %v200
    %v536 = vunpack.c.h.b16 %v200
    %v537 = vunpack.c.l.b16 %v201
    %v538 = vunpack.c.h.b16 %v201
    %v539 = vunpack.c.l.b16 %v202
    %v540 = vunpack.c.h.b16 %v202
    %v541 = vunpack.c.l.b16 %v203
    %v542 = vunpack.c.h.b16 %v203
    %v543 = vunpack.c.l.b16 %v204
    %v544 = vunpack.c.h.b16 %v204
    %v545 = vunpack.c.l.b16 %v205
    %v546 = vunpack.c.h.b16 %v205
    %v547 = vunpack.c.l.b16 %v206
    %v548 = vunpack.c.h.b16 %v206
    %v549 = vunpack.c.l.b16 %v207
    %v550 = vunpack.c.h.b16 %v207
    %v551 = vunpack.c.l.b16 %v208
    %v552 = vunpack.c.h.b16 %v208
    %v553 = vunpack.c.l.b16 %v209
    %v554 = vunpack.c.h.b16 %v209
    %v555 = vunpack.c.l.b16 %v210
    %v556 = vunpack.c.h.b16 %v210
    %v557 = vunpack.c.l.b16 %v211
    %v558 = vunpack.c.h.b16 %v211
    %v559 = vunpack.c.l.b16 %v212
    %v560 = vunpack.c.h.b16 %v212
    %v561 = vunpack.c.l.b16 %v213
    %v562 = vunpack.c.h.b16 %v213
    %v563 = vunpack.c.l.b16 %v214
    %v564 = vunpack.c.h.b16 %v214
    %v565 = vunpack.c.l.b16 %v215
    %v566 = vunpack.c.h.b16 %v215
    %v567 = vunpack.c.l.b16 %v216
    %v568 = vunpack.c.h.b16 %v216
    %v569 = vunpack.c.l.b16 %v217
    %v570 = vunpack.c.h.b16 %v217
    %v571 = vunpack.c.l.b16 %v218
    %v572 = vunpack.c.h.b16 %v218
    %v573 = vunpack.c.l.b16 %v219
    %v574 = vunpack.c.h.b16 %v219
    %v575 = vunpack.c.l.b16 %v220
    %v576 = vunpack.c.h.b16 %v220
    %v577 = vunpack.c.l.b16 %v221
    %v578 = vunpack.c.h.b16 %v221
    %v579 = vunpack.c.l.b16 %v222
    %v580 = vunpack.c.h.b16 %v222
    %v581 = vunpack.c.l.b16 %v223
    %v582 = vunpack.c.h.b16 %v223
    %v583 = vunpack.c.l.b16 %v224
    %v584 = vunpack.c.h.b16 %v224
    %v585 = vunpack.c.l.b16 %v225
    %v586 = vunpack.c.h.b16 %v225
    %v587 = vunpack.c.l.b16 %v226
    %v588 = vunpack.c.h.b16 %v226
    %v589 = vunpack.c.l.b16 %v227
    %v590 = vunpack.c.h.b16 %v227
    %v591 = vunpack.c.l.b16 %v228
    %v592 = vunpack.c.h.b16 %v228
    %v593 = vunpack.c.l.b16 %v229
    %v594 = vunpack.c.h.b16 %v229
    %v595 = vunpack.c.l.b16 %v230
    %v596 = vunpack.c.h.b16 %v230
    %v597 = vunpack.c.l.b16 %v231
    %v598 = vunpack.c.h.b16 %v231
    %v599 = vunpack.c.l.b16 %v232
    %v600 = vunpack.c.h.b16 %v232
    %v601 = vunpack.c.l.b16 %v233
    %v602 = vunpack.c.h.b16 %v233
    %v603 = vunpack.c.l.b16 %v234
    %v604 = vunpack.c.h.b16 %v234
    %v605 = vunpack.c.l.b16 %v235
    %v606 = vunpack.c.h.b16 %v235
    %v607 = vunpack.c.l.b16 %v236
    %v608 = vunpack.c.h.b16 %v236
    %v609 = vunpack.c.l.b16 %v237
    %v610 = vunpack.c.h.b16 %v237
    %v611 = vunpack.c.l.b16 %v238
    %v612 = vunpack.c.h.b16 %v238
    %v613 = vunpack.c.l.b16 %v239
    %v614 = vunpack.c.h.b16 %v239
    %v615 = vunpack.c.l.b16 %v240
    %v616 = vunpack.c.h.b16 %v240
    %v617 = vunpack.c.l.b16 %v241
    %v618 = vunpack.c.h.b16 %v241
    %v619 = vunpack.c.l.b16 %v242
    %v620 = vunpack.c.h.b16 %v242
    %v621 = vunpack.c.l.b16 %v243
    %v622 = vunpack.c.h.b16 %v243
    %v623 = vunpack.c.l.b16 %v244
    %v624 = vunpack.c.h.b16 %v244
    %v625 = vunpack.c.l.b16 %v245
    %v626 = vunpack.c.h.b16 %v245
    %v627 = vunpack.c.l.b16 %v246
    %v628 = vunpack.c.h.b16 %v246
    %v629 = vunpack.c.l.b16 %v247
    %v630 = vunpack.c.h.b16 %v247
    %v631 = vunpack.c.l.b16 %v248
    %v632 = vunpack.c.h.b16 %v248
    %v633 = vunpack.c.l.b16 %v249
    %v634 = vunpack.c.h.b16 %v249
    %v635 = vunpack.c.l.b16 %v250
    %v636 = vunpack.c.h.b16 %v250
    %v637 = vunpack.c.l.b16 %v251
    %v638 = vunpack.c.h.b16 %v251
    %v639 = vunpack.c.l.b16 %v252
    %v640 = vunpack.c.h.b16 %v252
    %v641 = vunpack.c.l.b16 %v253
    %v642 = vunpack.c.h.b16 %v253
    %v643 = vunpack.c.l.b16 %v254
    %v644 = vunpack.c.h.b16 %v254
    %v645 = vunpack.c.l.b16 %v255
    %v646 = vunpack.c.h.b16 %v255
    %v647 = vunpack.c.l.b16 %v256
    %v648 = vunpack.c.h.b16 %v256
    %v649 = vunpack.c.l.b16 %v257
    %v650 = vunpack.c.h.b16 %v257
    %v651 = vunpack.c.l.b16 %v258
    %v652 = vunpack.c.h.b16 %v258
    %v653 = vunpack.c.l.b16 %v259
    %v654 = vunpack.c.h.b16 %v259
    %v655 = vunpack.c.l.b16 %v260
    %v656 = vunpack.c.h.b16 %v260
    %v657 = vunpack.c.l.b16 %v261
    %v658 = vunpack.c.h.b16 %v261
    %v659 = vunpack.c.l.b16 %v262
    %v660 = vunpack.c.h.b16 %v262
    %v661 = vunpack.c.l.b16 %v263
    %v662 = vunpack.c.h.b16 %v263
    %v663 = vunpack.c.l.b16 %v264
    %v664 = vunpack.c.h.b16 %v264
    %v665 = vunpack.c.l.b16 %v265
    %v666 = vunpack.c.h.b16 %v265
    %v667 = vunpack.c.l.b16 %v266
    %v668 = vunpack.c.h.b16 %v266
    %v669 = vunpack.c.l.b16 %v267
    %v670 = vunpack.c.h.b16 %v267
    %v671 = vunpack.c.l.b16 %v268
    %v672 = vunpack.c.h.b16 %v268
    %v673 = vunpack.c.l.b16 %v269
    %v674 = vunpack.c.h.b16 %v269
    %v675 = vunpack.c.l.b16 %v270
    %v676 = vunpack.c.h.b16 %v270
    %v677 = vpack.c.b16 %v425, %v421
    %v678 = vpack.c.b16 %v426, %v422
    %v679 = vpack.c.b16 %v427, %v423
    %v680 = vpack.c.b16 %v428, %v424
    %v681 = vpack.c.b16 %v433, %v429
    %v682 = vpack.c.b16 %v434, %v430
    %v683 = vpack.c.b16 %v435, %v431
    %v684 = vpack.c.b16 %v436, %v432
    %v685 = vpack.c.b16 %v441, %v437
    %v686 = vpack.c.b16 %v442, %v438
    %v687 = vpack.c.b16 %v443, %v439
    %v688 = vpack.c.b16 %v444, %v440
    %v689 = vpack.c.b16 %v449, %v445
    %v690 = vpack.c.b16 %v450, %v446
    %v691 = vpack.c.b16 %v451, %v447
    %v692 = vpack.c.b16 %v452, %v448
    %v693 = vpack.c.b16 %v457, %v453
    %v694 = vpack.c.b16 %v458, %v454
    %v695 = vpack.c.b16 %v459, %v455
    %v696 = vpack.c.b16 %v460, %v456
    %v697 = vpack.c.b16 %v465, %v461
    %v698 = vpack.c.b16 %v466, %v462
    %v699 = vpack.c.b16 %v467, %v463
    %v700 = vpack.c.b16 %v468, %v464
    %v701 = vpack.c.b16 %v473, %v469
    %v702 = vpack.c.b16 %v474, %v470
    %v703 = vpack.c.b16 %v475, %v471
    %v704 = vpack.c.b16 %v476, %v472
    %v705 = vpack.c.b16 %v481, %v477
    %v706 = vpack.c.b16 %v482, %v478
    %v707 = vpack.c.b16 %v483, %v479
    %v708 = vpack.c.b16 %v484, %v480
    %v709 = vpack.c.b16 %v489, %v485
    %v710 = vpack.c.b16 %v490, %v486
    %v711 = vpack.c.b16 %v491, %v487
    %v712 = vpack.c.b16 %v492, %v488
    %v713 = vpack.c.b16 %v497, %v493
    %v714 = vpack.c.b16 %v498, %v494
    %v715 = vpack.c.b16 %v499, %v495
    %v716 = vpack.c.b16 %v500, %v496
    %v717 = vpack.c.b16 %v505, %v501
    %v718 = vpack.c.b16 %v506, %v502
    %v719 = vpack.c.b16 %v507, %v503
    %v720 = vpack.c.b16 %v508, %v504
    %v721 = vpack.c.b16 %v513, %v509
    %v722 = vpack.c.b16 %v514, %v510
    %v723 = vpack.c.b16 %v515, %v511
    %v724 = vpack.c.b16 %v516, %v512
    %v725 = vpack.c.b16 %v521, %v517
    %v726 = vpack.c.b16 %v522, %v518
    %v727 = vpack.c.b16 %v523, %v519
    %v728 = vpack.c.b16 %v524, %v520
    %v729 = vpack.c.b16 %v529, %v525
    %v730 = vpack.c.b16 %v530, %v526
    %v731 = vpack.c.b16 %v531, %v527
    %v732 = vpack.c.b16 %v532, %v528
    %v733 = vpack.c.b16 %v537, %v533
    %v734 = vpack.c.b16 %v538, %v534
    %v735 = vpack.c.b16 %v539, %v535
    %v736 = vpack.c.b16 %v540, %v536
    %v737 = vpack.c.b16 %v545, %v541
    %v738 = vpack.c.b16 %v546, %v542
    %v739 = vpack.c.b16 %v547, %v543
    %v740 = vpack.c.b16 %v548, %v544
    %v741 = vpack.c.b16 %v553, %v549
    %v742 = vpack.c.b16 %v554, %v550
    %v743 = vpack.c.b16 %v555, %v551
    %v744 = vpack.c.b16 %v556, %v552
    %v745 = vpack.c.b16 %v561, %v557
    %v746 = vpack.c.b16 %v562, %v558
    %v747 = vpack.c.b16 %v563, %v559
    %v748 = vpack.c.b16 %v564, %v560
    %v749 = vpack.c.b16 %v569, %v565
    %v750 = vpack.c.b16 %v570, %v566
    %v751 = vpack.c.b16 %v571, %v567
    %v752 = vpack.c.b16 %v572, %v568
    %v753 = vpack.c.b16 %v577, %v573
    %v754 = vpack.c.b16 %v578, %v574
    %v755 = vpack.c.b16 %v579, %v575
    %v756 = vpack.c.b16 %v580, %v576
    %v757 = vpack.c.b16 %v585, %v581
    %v758 = vpack.c.b16 %v586, %v582
    %v759 = vpack.c.b16 %v587, %v583
    %v760 = vpack.c.b16 %v588, %v584
    %v761 = vpack.c.b16 %v593, %v589
    %v762 = vpack.c.b16 %v594, %v590
    %v763 = vpack.c.b16 %v595, %v591
    %v764 = vpack.c.b16 %v596, %v592
    %v765 = vpack.c.b16 %v601, %v597
    %v766 = vpack.c.b16 %v602, %v598
    %v767 = vpack.c.b16 %v603, %v599
    %v768 = vpack.c.b16 %v604, %v600
    %v769 = vpack.c.b16 %v609, %v605
    %v770 = vpack.c.b16 %v610, %v606
    %v771 = vpack.c.b16 %v611, %v607
    %v772 = vpack.c.b16 %v612, %v608
    %v773 = vpack.c.b16 %v617, %v613
    %v774 = vpack.c.b16 %v618, %v614
    %v775 = vpack.c.b16 %v619, %v615
    %v776 = vpack.c.b16 %v620, %v616
    %v777 = vpack.c.b16 %v625, %v621
    %v778 = vpack.c.b16 %v626, %v622
    %v779 = vpack.c.b16 %v627, %v623
    %v780 = vpack.c.b16 %v628, %v624
    %v781 = vpack.c.b16 %v633, %v629
    %v782 = vpack.c.b16 %v634, %v630
    %v783 = vpack.c.b16 %v635, %v631
    %v784 = vpack.c.b16 %v636, %v632
    %v785 = vpack.c.b16 %v641, %v637
    %v786 = vpack.c.b16 %v642, %v638
    %v787 = vpack.c.b16 %v643, %v639
    %v788 = vpack.c.b16 %v644, %v640
    %v789 = vpack.c.b16 %v649, %v645
    %v790 = vpack.c.b16 %v650, %v646
    %v791 = vpack.c.b16 %v651, %v647
    %v792 = vpack.c.b16 %v652, %v648
    %v793 = vpack.c.b16 %v657, %v653
    %v794 = vpack.c.b16 %v658, %v654
    %v795 = vpack.c.b16 %v659, %v655
    %v796 = vpack.c.b16 %v660, %v656
    %v797 = vpack.c.b16 %v665, %v661
    %v798 = vpack.c.b16 %v666, %v662
    %v799 = vpack.c.b16 %v667, %v663
    %v800 = vpack.c.b16 %v668, %v664
    %v801 = vpack.c.b16 %v673, %v669
    %v802 = vpack.c.b16 %v674, %v670
    %v803 = vpack.c.b16 %v675, %v671
    %v804 = vpack.c.b16 %v676, %v672
    %933 = vmatprep.subr.bf16.mxu0 %v678
    %934 = vmatpush1.bf16.msra.mxu0 %v677
    %935 = vmatprep.subr.bf16.mxu0 %v682
    %936 = vmatpush1.bf16.msra.mxu0 %v681
    %937 = vmatprep.subr.bf16.mxu0 %v686
    %938 = vmatpush1.bf16.msra.mxu0 %v685
    %939 = vmatprep.subr.bf16.mxu0 %v690
    %940 = vmatpush1.bf16.msra.mxu0 %v689
    %941 = vmatprep.subr.bf16.mxu0 %v694
    %942 = vmatpush1.bf16.msra.mxu0 %v693
    %943 = vmatprep.subr.bf16.mxu0 %v698
    %944 = vmatpush1.bf16.msra.mxu0 %v697
    %945 = vmatprep.subr.bf16.mxu0 %v702
    %946 = vmatpush1.bf16.msra.mxu0 %v701
    %947 = vmatprep.subr.bf16.mxu0 %v706
    %948 = vmatpush1.bf16.msra.mxu0 %v705
    %949 = vmatprep.subr.bf16.mxu0 %v710
    %950 = vmatpush1.bf16.msra.mxu0 %v709
    %951 = vmatprep.subr.bf16.mxu0 %v714
    %952 = vmatpush1.bf16.msra.mxu0 %v713
    %953 = vmatprep.subr.bf16.mxu0 %v718
    %954 = vmatpush1.bf16.msra.mxu0 %v717
    %955 = vmatprep.subr.bf16.mxu0 %v722
    %956 = vmatpush1.bf16.msra.mxu0 %v721
    %957 = vmatprep.subr.bf16.mxu0 %v726
    %958 = vmatpush1.bf16.msra.mxu0 %v725
    %959 = vmatprep.subr.bf16.mxu0 %v730
    %960 = vmatpush1.bf16.msra.mxu0 %v729
    %961 = vmatprep.subr.bf16.mxu0 %v734
    %962 = vmatpush1.bf16.msra.mxu0 %v733
    %963 = vmatprep.subr.bf16.mxu0 %v738
    %964 = vmatpush1.bf16.msra.mxu0 %v737
    %965 = vmatprep.mubr.bf16.mxu0 %v140
    %966 = vmatmul.mubr.bf16.gmra.mrb[0].mxu0 %v139
    %v967 = vpop.f32.mrb[0].mxu0
    %v968 = vadd.f32 %v276, %v967
    %v969 = vpop.f32.mrb[0].mxu0
    %v970 = vadd.f32 %v280, %v969
    %v971 = vpop.f32.mrb[0].mxu0
    %v972 = vpop.f32.mrb[0].mxu0
    %973 = vdwg.mxu0
    %974 = vmatprep.subr.bf16.mxu0 %v742
    %975 = vmatpush1.bf16.msra.mxu0 %v741
    %976 = vmatprep.subr.bf16.mxu0 %v746
    %977 = vmatpush1.bf16.msra.mxu0 %v745
    %978 = vmatprep.subr.bf16.mxu0 %v750
    %979 = vmatpush1.bf16.msra.mxu0 %v749
    %980 = vmatprep.subr.bf16.mxu0 %v754
    %981 = vmatpush1.bf16.msra.mxu0 %v753
    %982 = vmatprep.subr.bf16.mxu0 %v758
    %983 = vmatpush1.bf16.msra.mxu0 %v757
    %984 = vmatprep.subr.bf16.mxu0 %v762
    %985 = vmatpush1.bf16.msra.mxu0 %v761
    %986 = vmatprep.subr.bf16.mxu0 %v766
    %987 = vmatpush1.bf16.msra.mxu0 %v765
    %988 = vmatprep.subr.bf16.mxu0 %v770
    %989 = vmatpush1.bf16.msra.mxu0 %v769
    %990 = vmatprep.subr.bf16.mxu0 %v774
    %991 = vmatpush1.bf16.msra.mxu0 %v773
    %992 = vmatprep.subr.bf16.mxu0 %v778
    %993 = vmatpush1.bf16.msra.mxu0 %v777
    %994 = vmatprep.subr.bf16.mxu0 %v782
    %995 = vmatpush1.bf16.msra.mxu0 %v781
    %996 = vmatprep.subr.bf16.mxu0 %v786
    %997 = vmatpush1.bf16.msra.mxu0 %v785
    %998 = vmatprep.subr.bf16.mxu0 %v790
    %999 = vmatpush1.bf16.msra.mxu0 %v789
    %1000 = vmatprep.subr.bf16.mxu0 %v794
    %1001 = vmatpush1.bf16.msra.mxu0 %v793
    %1002 = vmatprep.subr.bf16.mxu0 %v798
    %1003 = vmatpush1.bf16.msra.mxu0 %v797
    %1004 = vmatprep.subr.bf16.mxu0 %v802
    %1005 = vmatpush1.bf16.msra.mxu0 %v801
    %1006 = vmatprep.mubr.bf16.mxu0 %v142
    %1007 = vmatmul.mubr.bf16.gmra.mrb[0].mxu0 %v141
    %v1008 = vpop.f32.mrb[0].mxu0
    %v1009 = vadd.f32 %v968, %v1008
    %v1010 = vpop.f32.mrb[0].mxu0
    %v1011 = vadd.f32 %v970, %v1010
    %v1012 = vpop.f32.mrb[0].mxu0
    %v1013 = vpop.f32.mrb[0].mxu0
    %1014 = vdwg.mxu0
    %1015 = vmatprep.subr.bf16.mxu0 %v680
    %1016 = vmatpush1.bf16.msra.mxu0 %v679
    %1017 = vmatprep.subr.bf16.mxu0 %v684
    %1018 = vmatpush1.bf16.msra.mxu0 %v683
    %1019 = vmatprep.subr.bf16.mxu0 %v688
    %1020 = vmatpush1.bf16.msra.mxu0 %v687
    %1021 = vmatprep.subr.bf16.mxu0 %v692
    %1022 = vmatpush1.bf16.msra.mxu0 %v691
    %1023 = vmatprep.subr.bf16.mxu0 %v696
    %1024 = vmatpush1.bf16.msra.mxu0 %v695
    %1025 = vmatprep.subr.bf16.mxu0 %v700
    %1026 = vmatpush1.bf16.msra.mxu0 %v699
    %1027 = vmatprep.subr.bf16.mxu0 %v704
    %1028 = vmatpush1.bf16.msra.mxu0 %v703
    %1029 = vmatprep.subr.bf16.mxu0 %v708
    %1030 = vmatpush1.bf16.msra.mxu0 %v707
    %1031 = vmatprep.subr.bf16.mxu0 %v712
    %1032 = vmatpush1.bf16.msra.mxu0 %v711
    %1033 = vmatprep.subr.bf16.mxu0 %v716
    %1034 = vmatpush1.bf16.msra.mxu0 %v715
    %1035 = vmatprep.subr.bf16.mxu0 %v720
    %1036 = vmatpush1.bf16.msra.mxu0 %v719
    %1037 = vmatprep.subr.bf16.mxu0 %v724
    %1038 = vmatpush1.bf16.msra.mxu0 %v723
    %1039 = vmatprep.subr.bf16.mxu0 %v728
    %1040 = vmatpush1.bf16.msra.mxu0 %v727
    %1041 = vmatprep.subr.bf16.mxu0 %v732
    %1042 = vmatpush1.bf16.msra.mxu0 %v731
    %1043 = vmatprep.subr.bf16.mxu0 %v736
    %1044 = vmatpush1.bf16.msra.mxu0 %v735
    %1045 = vmatprep.subr.bf16.mxu0 %v740
    %1046 = vmatpush1.bf16.msra.mxu0 %v739
    %1047 = vmatprep.mubr.bf16.mxu0 %v140
    %1048 = vmatmul.mubr.bf16.gmra.mrb[0].mxu0 %v139
    %v1049 = vpop.f32.mrb[0].mxu0
    %v1050 = vadd.f32 %v284, %v1049
    %v1051 = vpop.f32.mrb[0].mxu0
    %v1052 = vadd.f32 %v288, %v1051
    %v1053 = vpop.f32.mrb[0].mxu0
    %v1054 = vpop.f32.mrb[0].mxu0
    %1055 = vdwg.mxu0
    %1056 = vmatprep.subr.bf16.mxu0 %v744
    %1057 = vmatpush1.bf16.msra.mxu0 %v743
    %1058 = vmatprep.subr.bf16.mxu0 %v748
    %1059 = vmatpush1.bf16.msra.mxu0 %v747
    %1060 = vmatprep.subr.bf16.mxu0 %v752
    %1061 = vmatpush1.bf16.msra.mxu0 %v751
    %1062 = vmatprep.subr.bf16.mxu0 %v756
    %1063 = vmatpush1.bf16.msra.mxu0 %v755
    %1064 = vmatprep.subr.bf16.mxu0 %v760
    %1065 = vmatpush1.bf16.msra.mxu0 %v759
    %1066 = vmatprep.subr.bf16.mxu0 %v764
    %1067 = vmatpush1.bf16.msra.mxu0 %v763
    %1068 = vmatprep.subr.bf16.mxu0 %v768
    %1069 = vmatpush1.bf16.msra.mxu0 %v767
    %1070 = vmatprep.subr.bf16.mxu0 %v772
    %1071 = vmatpush1.bf16.msra.mxu0 %v771
    %1072 = vmatprep.subr.bf16.mxu0 %v776
    %1073 = vmatpush1.bf16.msra.mxu0 %v775
    %1074 = vmatprep.subr.bf16.mxu0 %v780
    %1075 = vmatpush1.bf16.msra.mxu0 %v779
    %1076 = vmatprep.subr.bf16.mxu0 %v784
    %1077 = vmatpush1.bf16.msra.mxu0 %v783
    %1078 = vmatprep.subr.bf16.mxu0 %v788
    %1079 = vmatpush1.bf16.msra.mxu0 %v787
    %1080 = vmatprep.subr.bf16.mxu0 %v792
    %1081 = vmatpush1.bf16.msra.mxu0 %v791
    %1082 = vmatprep.subr.bf16.mxu0 %v796
    %1083 = vmatpush1.bf16.msra.mxu0 %v795
    %1084 = vmatprep.subr.bf16.mxu0 %v800
    %1085 = vmatpush1.bf16.msra.mxu0 %v799
    %1086 = vmatprep.subr.bf16.mxu0 %v804
    %1087 = vmatpush1.bf16.msra.mxu0 %v803
    %1088 = vmatprep.mubr.bf16.mxu0 %v142
    %1089 = vmatmul.mubr.bf16.gmra.mrb[0].mxu0 %v141
    %v1090 = vpop.f32.mrb[0].mxu0
    %v1091 = vadd.f32 %v1050, %v1090
    %v1092 = vpop.f32.mrb[0].mxu0
    %v1093 = vadd.f32 %v1052, %v1092
    %v1094 = vpop.f32.mrb[0].mxu0
    %v1095 = vpop.f32.mrb[0].mxu0
    %1096 = vdwg.mxu0
    %v1097 = vmax.f32 %v1009, 0.0
    %v1098 = vmax.f32 %v1011, 0.0
    %v1099 = vmax.f32 %v1091, 0.0
    %v1100 = vmax.f32 %v1093, 0.0
    %v1101 = vpack.c.bf16 %v1097, %v1097
    %v1102 = vpack.c.bf16 %v1098, %v1098
    %v1103 = vpack.c.bf16 %v1099, %v1099
    %v1104 = vpack.c.bf16 %v1100, %v1100
    %v1105 = vld [vmem:[#allocation4] sm:$0xff]
    %v1106 = vld [vmem:[#allocation4 + $0x8] sm:$0xff]
    %v1107 = vld [vmem:[#allocation4 + $0x10] sm:$0xff]
    %v1108 = vld [vmem:[#allocation4 + $0x18] sm:$0xff]
    %v1109 = vld [vmem:[#allocation4 + $0x20] sm:$0xff]
    %v1110 = vld [vmem:[#allocation4 + $0x28] sm:$0xff]
    %v1111 = vld [vmem:[#allocation4 + $0x30] sm:$0xff]
    %v1112 = vld [vmem:[#allocation4 + $0x38] sm:$0xff]
    %v1113 = vld [vmem:[#allocation4 + $0x40] sm:$0xff]
    %v1114 = vld [vmem:[#allocation4 + $0x48] sm:$0xff]
    %v1115 = vld [vmem:[#allocation4 + $0x50] sm:$0xff]
    %v1116 = vld [vmem:[#allocation4 + $0x58] sm:$0xff]
    %v1117 = vld [vmem:[#allocation4 + $0x60] sm:$0xff]
    %v1118 = vld [vmem:[#allocation4 + $0x68] sm:$0xff]
    %v1119 = vld [vmem:[#allocation4 + $0x70] sm:$0xff]
    %v1120 = vld [vmem:[#allocation4 + $0x78] sm:$0xff]
    %v1121 = vld [vmem:[#allocation4 + $0x80] sm:$0xff]
    %v1122 = vld [vmem:[#allocation4 + $0x88] sm:$0xff]
    %v1123 = vld [vmem:[#allocation4 + $0x90] sm:$0xff]
    %v1124 = vld [vmem:[#allocation4 + $0x98] sm:$0xff]
    %v1125 = vld [vmem:[#allocation4 + $0xa0] sm:$0xff]
    %v1126 = vld [vmem:[#allocation4 + $0xa8] sm:$0xff]
    %v1127 = vld [vmem:[#allocation4 + $0xb0] sm:$0xff]
    %v1128 = vld [vmem:[#allocation4 + $0xb8] sm:$0xff]
    %v1129 = vld [vmem:[#allocation4 + $0xc0] sm:$0xff]
    %v1130 = vld [vmem:[#allocation4 + $0xc8] sm:$0xff]
    %v1131 = vld [vmem:[#allocation4 + $0xd0] sm:$0xff]
    %v1132 = vld [vmem:[#allocation4 + $0xd8] sm:$0xff]
    %v1133 = vld [vmem:[#allocation4 + $0xe0] sm:$0xff]
    %v1134 = vld [vmem:[#allocation4 + $0xe8] sm:$0xff]
    %v1135 = vld [vmem:[#allocation4 + $0xf0] sm:$0xff]
    %v1136 = vld [vmem:[#allocation4 + $0xf8] sm:$0xff]
    %v1137 = vld [vmem:[#allocation4 + $0x100] sm:$0xff]
    %v1138 = vld [vmem:[#allocation4 + $0x108] sm:$0xff]
    %v1139 = vld [vmem:[#allocation4 + $0x110] sm:$0xff]
    %v1140 = vld [vmem:[#allocation4 + $0x118] sm:$0xff]
    %v1141 = vld [vmem:[#allocation4 + $0x120] sm:$0xff]
    %v1142 = vld [vmem:[#allocation4 + $0x128] sm:$0xff]
    %v1143 = vld [vmem:[#allocation4 + $0x130] sm:$0xff]
    %v1144 = vld [vmem:[#allocation4 + $0x138] sm:$0xff]
    %v1145 = vld [vmem:[#allocation4 + $0x140] sm:$0xff]
    %v1146 = vld [vmem:[#allocation4 + $0x148] sm:$0xff]
    %v1147 = vld [vmem:[#allocation4 + $0x150] sm:$0xff]
    %v1148 = vld [vmem:[#allocation4 + $0x158] sm:$0xff]
    %v1149 = vld [vmem:[#allocation4 + $0x160] sm:$0xff]
    %v1150 = vld [vmem:[#allocation4 + $0x168] sm:$0xff]
    %v1151 = vld [vmem:[#allocation4 + $0x170] sm:$0xff]
    %v1152 = vld [vmem:[#allocation4 + $0x178] sm:$0xff]
    %v1153 = vld [vmem:[#allocation4 + $0x180] sm:$0xff]
    %v1154 = vld [vmem:[#allocation4 + $0x188] sm:$0xff]
    %v1155 = vld [vmem:[#allocation4 + $0x190] sm:$0xff]
    %v1156 = vld [vmem:[#allocation4 + $0x198] sm:$0xff]
    %v1157 = vld [vmem:[#allocation4 + $0x1a0] sm:$0xff]
    %v1158 = vld [vmem:[#allocation4 + $0x1a8] sm:$0xff]
    %v1159 = vld [vmem:[#allocation4 + $0x1b0] sm:$0xff]
    %v1160 = vld [vmem:[#allocation4 + $0x1b8] sm:$0xff]
    %v1161 = vld [vmem:[#allocation4 + $0x1c0] sm:$0xff]
    %v1162 = vld [vmem:[#allocation4 + $0x1c8] sm:$0xff]
    %v1163 = vld [vmem:[#allocation4 + $0x1d0] sm:$0xff]
    %v1164 = vld [vmem:[#allocation4 + $0x1d8] sm:$0xff]
    %v1165 = vld [vmem:[#allocation4 + $0x1e0] sm:$0xff]
    %v1166 = vld [vmem:[#allocation4 + $0x1e8] sm:$0xff]
    %v1167 = vld [vmem:[#allocation4 + $0x1f0] sm:$0xff]
    %v1168 = vld [vmem:[#allocation4 + $0x1f8] sm:$0xff]
    %v1169 = vld [vmem:[%s4] sm:$0x3]
    %v1171 = vlaneseq
    %v1172 = vshrl.u32 %v1171, 7
    %v1173 = vsub.s32 0, %v1172
    %v1174 = vrot.slane %v1169, %v1173
    %v1175 = vlaneseq
    %v1176 = vshrl.u32 %v1175, 7
    %v1177 = vsub.s32 1, %v1176
    %v1178 = vrot.slane %v1169, %v1177
    %v1245 = vunpack.c.l.b16 %v1105
    %v1246 = vunpack.c.h.b16 %v1105
    %v1247 = vunpack.c.l.b16 %v1106
    %v1248 = vunpack.c.h.b16 %v1106
    %v1249 = vunpack.c.l.b16 %v1107
    %v1250 = vunpack.c.h.b16 %v1107
    %v1251 = vunpack.c.l.b16 %v1108
    %v1252 = vunpack.c.h.b16 %v1108
    %v1253 = vunpack.c.l.b16 %v1109
    %v1254 = vunpack.c.h.b16 %v1109
    %v1255 = vunpack.c.l.b16 %v1110
    %v1256 = vunpack.c.h.b16 %v1110
    %v1257 = vunpack.c.l.b16 %v1111
    %v1258 = vunpack.c.h.b16 %v1111
    %v1259 = vunpack.c.l.b16 %v1112
    %v1260 = vunpack.c.h.b16 %v1112
    %v1261 = vunpack.c.l.b16 %v1113
    %v1262 = vunpack.c.h.b16 %v1113
    %v1263 = vunpack.c.l.b16 %v1114
    %v1264 = vunpack.c.h.b16 %v1114
    %v1265 = vunpack.c.l.b16 %v1115
    %v1266 = vunpack.c.h.b16 %v1115
    %v1267 = vunpack.c.l.b16 %v1116
    %v1268 = vunpack.c.h.b16 %v1116
    %v1269 = vunpack.c.l.b16 %v1117
    %v1270 = vunpack.c.h.b16 %v1117
    %v1271 = vunpack.c.l.b16 %v1118
    %v1272 = vunpack.c.h.b16 %v1118
    %v1273 = vunpack.c.l.b16 %v1119
    %v1274 = vunpack.c.h.b16 %v1119
    %v1275 = vunpack.c.l.b16 %v1120
    %v1276 = vunpack.c.h.b16 %v1120
    %v1277 = vunpack.c.l.b16 %v1121
    %v1278 = vunpack.c.h.b16 %v1121
    %v1279 = vunpack.c.l.b16 %v1122
    %v1280 = vunpack.c.h.b16 %v1122
    %v1281 = vunpack.c.l.b16 %v1123
    %v1282 = vunpack.c.h.b16 %v1123
    %v1283 = vunpack.c.l.b16 %v1124
    %v1284 = vunpack.c.h.b16 %v1124
    %v1285 = vunpack.c.l.b16 %v1125
    %v1286 = vunpack.c.h.b16 %v1125
    %v1287 = vunpack.c.l.b16 %v1126
    %v1288 = vunpack.c.h.b16 %v1126
    %v1289 = vunpack.c.l.b16 %v1127
    %v1290 = vunpack.c.h.b16 %v1127
    %v1291 = vunpack.c.l.b16 %v1128
    %v1292 = vunpack.c.h.b16 %v1128
    %v1293 = vunpack.c.l.b16 %v1129
    %v1294 = vunpack.c.h.b16 %v1129
    %v1295 = vunpack.c.l.b16 %v1130
    %v1296 = vunpack.c.h.b16 %v1130
    %v1297 = vunpack.c.l.b16 %v1131
    %v1298 = vunpack.c.h.b16 %v1131
    %v1299 = vunpack.c.l.b16 %v1132
    %v1300 = vunpack.c.h.b16 %v1132
    %v1301 = vunpack.c.l.b16 %v1133
    %v1302 = vunpack.c.h.b16 %v1133
    %v1303 = vunpack.c.l.b16 %v1134
    %v1304 = vunpack.c.h.b16 %v1134
    %v1305 = vunpack.c.l.b16 %v1135
    %v1306 = vunpack.c.h.b16 %v1135
    %v1307 = vunpack.c.l.b16 %v1136
    %v1308 = vunpack.c.h.b16 %v1136
    %v1309 = vunpack.c.l.b16 %v1137
    %v1310 = vunpack.c.h.b16 %v1137
    %v1311 = vunpack.c.l.b16 %v1138
    %v1312 = vunpack.c.h.b16 %v1138
    %v1313 = vunpack.c.l.b16 %v1139
    %v1314 = vunpack.c.h.b16 %v1139
    %v1315 = vunpack.c.l.b16 %v1140
    %v1316 = vunpack.c.h.b16 %v1140
    %v1317 = vunpack.c.l.b16 %v1141
    %v1318 = vunpack.c.h.b16 %v1141
    %v1319 = vunpack.c.l.b16 %v1142
    %v1320 = vunpack.c.h.b16 %v1142
    %v1321 = vunpack.c.l.b16 %v1143
    %v1322 = vunpack.c.h.b16 %v1143
    %v1323 = vunpack.c.l.b16 %v1144
    %v1324 = vunpack.c.h.b16 %v1144
    %v1325 = vunpack.c.l.b16 %v1145
    %v1326 = vunpack.c.h.b16 %v1145
    %v1327 = vunpack.c.l.b16 %v1146
    %v1328 = vunpack.c.h.b16 %v1146
    %v1329 = vunpack.c.l.b16 %v1147
    %v1330 = vunpack.c.h.b16 %v1147
    %v1331 = vunpack.c.l.b16 %v1148
    %v1332 = vunpack.c.h.b16 %v1148
    %v1333 = vunpack.c.l.b16 %v1149
    %v1334 = vunpack.c.h.b16 %v1149
    %v1335 = vunpack.c.l.b16 %v1150
    %v1336 = vunpack.c.h.b16 %v1150
    %v1337 = vunpack.c.l.b16 %v1151
    %v1338 = vunpack.c.h.b16 %v1151
    %v1339 = vunpack.c.l.b16 %v1152
    %v1340 = vunpack.c.h.b16 %v1152
    %v1341 = vunpack.c.l.b16 %v1153
    %v1342 = vunpack.c.h.b16 %v1153
    %v1343 = vunpack.c.l.b16 %v1154
    %v1344 = vunpack.c.h.b16 %v1154
    %v1345 = vunpack.c.l.b16 %v1155
    %v1346 = vunpack.c.h.b16 %v1155
    %v1347 = vunpack.c.l.b16 %v1156
    %v1348 = vunpack.c.h.b16 %v1156
    %v1349 = vunpack.c.l.b16 %v1157
    %v1350 = vunpack.c.h.b16 %v1157
    %v1351 = vunpack.c.l.b16 %v1158
    %v1352 = vunpack.c.h.b16 %v1158
    %v1353 = vunpack.c.l.b16 %v1159
    %v1354 = vunpack.c.h.b16 %v1159
    %v1355 = vunpack.c.l.b16 %v1160
    %v1356 = vunpack.c.h.b16 %v1160
    %v1357 = vunpack.c.l.b16 %v1161
    %v1358 = vunpack.c.h.b16 %v1161
    %v1359 = vunpack.c.l.b16 %v1162
    %v1360 = vunpack.c.h.b16 %v1162
    %v1361 = vunpack.c.l.b16 %v1163
    %v1362 = vunpack.c.h.b16 %v1163
    %v1363 = vunpack.c.l.b16 %v1164
    %v1364 = vunpack.c.h.b16 %v1164
    %v1365 = vunpack.c.l.b16 %v1165
    %v1366 = vunpack.c.h.b16 %v1165
    %v1367 = vunpack.c.l.b16 %v1166
    %v1368 = vunpack.c.h.b16 %v1166
    %v1369 = vunpack.c.l.b16 %v1167
    %v1370 = vunpack.c.h.b16 %v1167
    %v1371 = vunpack.c.l.b16 %v1168
    %v1372 = vunpack.c.h.b16 %v1168
    %v1373 = vpack.c.b16 %v1247, %v1245
    %v1374 = vpack.c.b16 %v1248, %v1246
    %v1375 = vpack.c.b16 %v1251, %v1249
    %v1376 = vpack.c.b16 %v1252, %v1250
    %v1377 = vpack.c.b16 %v1255, %v1253
    %v1378 = vpack.c.b16 %v1256, %v1254
    %v1379 = vpack.c.b16 %v1259, %v1257
    %v1380 = vpack.c.b16 %v1260, %v1258
    %v1381 = vpack.c.b16 %v1263, %v1261
    %v1382 = vpack.c.b16 %v1264, %v1262
    %v1383 = vpack.c.b16 %v1267, %v1265
    %v1384 = vpack.c.b16 %v1268, %v1266
    %v1385 = vpack.c.b16 %v1271, %v1269
    %v1386 = vpack.c.b16 %v1272, %v1270
    %v1387 = vpack.c.b16 %v1275, %v1273
    %v1388 = vpack.c.b16 %v1276, %v1274
    %v1389 = vpack.c.b16 %v1279, %v1277
    %v1390 = vpack.c.b16 %v1280, %v1278
    %v1391 = vpack.c.b16 %v1283, %v1281
    %v1392 = vpack.c.b16 %v1284, %v1282
    %v1393 = vpack.c.b16 %v1287, %v1285
    %v1394 = vpack.c.b16 %v1288, %v1286
    %v1395 = vpack.c.b16 %v1291, %v1289
    %v1396 = vpack.c.b16 %v1292, %v1290
    %v1397 = vpack.c.b16 %v1295, %v1293
    %v1398 = vpack.c.b16 %v1296, %v1294
    %v1399 = vpack.c.b16 %v1299, %v1297
    %v1400 = vpack.c.b16 %v1300, %v1298
    %v1401 = vpack.c.b16 %v1303, %v1301
    %v1402 = vpack.c.b16 %v1304, %v1302
    %v1403 = vpack.c.b16 %v1307, %v1305
    %v1404 = vpack.c.b16 %v1308, %v1306
    %v1405 = vpack.c.b16 %v1311, %v1309
    %v1406 = vpack.c.b16 %v1312, %v1310
    %v1407 = vpack.c.b16 %v1315, %v1313
    %v1408 = vpack.c.b16 %v1316, %v1314
    %v1409 = vpack.c.b16 %v1319, %v1317
    %v1410 = vpack.c.b16 %v1320, %v1318
    %v1411 = vpack.c.b16 %v1323, %v1321
    %v1412 = vpack.c.b16 %v1324, %v1322
    %v1413 = vpack.c.b16 %v1327, %v1325
    %v1414 = vpack.c.b16 %v1328, %v1326
    %v1415 = vpack.c.b16 %v1331, %v1329
    %v1416 = vpack.c.b16 %v1332, %v1330
    %v1417 = vpack.c.b16 %v1335, %v1333
    %v1418 = vpack.c.b16 %v1336, %v1334
    %v1419 = vpack.c.b16 %v1339, %v1337
    %v1420 = vpack.c.b16 %v1340, %v1338
    %v1421 = vpack.c.b16 %v1343, %v1341
    %v1422 = vpack.c.b16 %v1344, %v1342
    %v1423 = vpack.c.b16 %v1347, %v1345
    %v1424 = vpack.c.b16 %v1348, %v1346
    %v1425 = vpack.c.b16 %v1351, %v1349
    %v1426 = vpack.c.b16 %v1352, %v1350
    %v1427 = vpack.c.b16 %v1355, %v1353
    %v1428 = vpack.c.b16 %v1356, %v1354
    %v1429 = vpack.c.b16 %v1359, %v1357
    %v1430 = vpack.c.b16 %v1360, %v1358
    %v1431 = vpack.c.b16 %v1363, %v1361
    %v1432 = vpack.c.b16 %v1364, %v1362
    %v1433 = vpack.c.b16 %v1367, %v1365
    %v1434 = vpack.c.b16 %v1368, %v1366
    %v1435 = vpack.c.b16 %v1371, %v1369
    %v1436 = vpack.c.b16 %v1372, %v1370
    %1501 = vmatprep.subr.bf16.mxu0 %v1374
    %1502 = vmatpush1.bf16.msra.mxu0 %v1373
    %1503 = vmatprep.subr.bf16.mxu0 %v1376
    %1504 = vmatpush1.bf16.msra.mxu0 %v1375
    %1505 = vmatprep.subr.bf16.mxu0 %v1378
    %1506 = vmatpush1.bf16.msra.mxu0 %v1377
    %1507 = vmatprep.subr.bf16.mxu0 %v1380
    %1508 = vmatpush1.bf16.msra.mxu0 %v1379
    %1509 = vmatprep.subr.bf16.mxu0 %v1382
    %1510 = vmatpush1.bf16.msra.mxu0 %v1381
    %1511 = vmatprep.subr.bf16.mxu0 %v1384
    %1512 = vmatpush1.bf16.msra.mxu0 %v1383
    %1513 = vmatprep.subr.bf16.mxu0 %v1386
    %1514 = vmatpush1.bf16.msra.mxu0 %v1385
    %1515 = vmatprep.subr.bf16.mxu0 %v1388
    %1516 = vmatpush1.bf16.msra.mxu0 %v1387
    %1517 = vmatprep.subr.bf16.mxu0 %v1390
    %1518 = vmatpush1.bf16.msra.mxu0 %v1389
    %1519 = vmatprep.subr.bf16.mxu0 %v1392
    %1520 = vmatpush1.bf16.msra.mxu0 %v1391
    %1521 = vmatprep.subr.bf16.mxu0 %v1394
    %1522 = vmatpush1.bf16.msra.mxu0 %v1393
    %1523 = vmatprep.subr.bf16.mxu0 %v1396
    %1524 = vmatpush1.bf16.msra.mxu0 %v1395
    %1525 = vmatprep.subr.bf16.mxu0 %v1398
    %1526 = vmatpush1.bf16.msra.mxu0 %v1397
    %1527 = vmatprep.subr.bf16.mxu0 %v1400
    %1528 = vmatpush1.bf16.msra.mxu0 %v1399
    %1529 = vmatprep.subr.bf16.mxu0 %v1402
    %1530 = vmatpush1.bf16.msra.mxu0 %v1401
    %1531 = vmatprep.subr.bf16.mxu0 %v1404
    %1532 = vmatpush1.bf16.msra.mxu0 %v1403
    %1533 = vmatprep.mubr.bf16.mxu0 %v1102
    %1534 = vmatmul.mubr.bf16.gmra.mrb[0].mxu0 %v1101
    %v1535 = vpop.f32.mrb[0].mxu0
    %v1536 = vadd.f32 %v1174, %v1535
    %v1537 = vpop.f32.mrb[0].mxu0
    %v1538 = vadd.f32 %v1178, %v1537
    %v1539 = vpop.f32.mrb[0].mxu0
    %v1540 = vpop.f32.mrb[0].mxu0
    %1541 = vdwg.mxu0
    %1542 = vmatprep.subr.bf16.mxu0 %v1406
    %1543 = vmatpush1.bf16.msra.mxu0 %v1405
    %1544 = vmatprep.subr.bf16.mxu0 %v1408
    %1545 = vmatpush1.bf16.msra.mxu0 %v1407
    %1546 = vmatprep.subr.bf16.mxu0 %v1410
    %1547 = vmatpush1.bf16.msra.mxu0 %v1409
    %1548 = vmatprep.subr.bf16.mxu0 %v1412
    %1549 = vmatpush1.bf16.msra.mxu0 %v1411
    %1550 = vmatprep.subr.bf16.mxu0 %v1414
    %1551 = vmatpush1.bf16.msra.mxu0 %v1413
    %1552 = vmatprep.subr.bf16.mxu0 %v1416
    %1553 = vmatpush1.bf16.msra.mxu0 %v1415
    %1554 = vmatprep.subr.bf16.mxu0 %v1418
    %1555 = vmatpush1.bf16.msra.mxu0 %v1417
    %1556 = vmatprep.subr.bf16.mxu0 %v1420
    %1557 = vmatpush1.bf16.msra.mxu0 %v1419
    %1558 = vmatprep.subr.bf16.mxu0 %v1422
    %1559 = vmatpush1.bf16.msra.mxu0 %v1421
    %1560 = vmatprep.subr.bf16.mxu0 %v1424
    %1561 = vmatpush1.bf16.msra.mxu0 %v1423
    %1562 = vmatprep.subr.bf16.mxu0 %v1426
    %1563 = vmatpush1.bf16.msra.mxu0 %v1425
    %1564 = vmatprep.subr.bf16.mxu0 %v1428
    %1565 = vmatpush1.bf16.msra.mxu0 %v1427
    %1566 = vmatprep.subr.bf16.mxu0 %v1430
    %1567 = vmatpush1.bf16.msra.mxu0 %v1429
    %1568 = vmatprep.subr.bf16.mxu0 %v1432
    %1569 = vmatpush1.bf16.msra.mxu0 %v1431
    %1570 = vmatprep.subr.bf16.mxu0 %v1434
    %1571 = vmatpush1.bf16.msra.mxu0 %v1433
    %1572 = vmatprep.subr.bf16.mxu0 %v1436
    %1573 = vmatpush1.bf16.msra.mxu0 %v1435
    %1574 = vmatprep.mubr.bf16.mxu0 %v1104
    %1575 = vmatmul.mubr.bf16.gmra.mrb[0].mxu0 %v1103
    %v1576 = vpop.f32.mrb[0].mxu0
    %v1577 = vadd.f32 %v1536, %v1576
    %v1578 = vpop.f32.mrb[0].mxu0
    %v1579 = vadd.f32 %v1538, %v1578
    %v1580 = vpop.f32.mrb[0].mxu0
    %v1581 = vpop.f32.mrb[0].mxu0
    %1582 = vdwg.mxu0
    %v1583 = vmax.f32 %v1577, 0.0
    %v1584 = vmax.f32 %v1579, 0.0
    %v1585 = vpack.c.bf16 %v1583, %v1583
    %v1586 = vpack.c.bf16 %v1584, %v1584
    %v1587 = vld [vmem:[%s5] sm:$0xf]
    %v1588 = vld [vmem:[%s5 + $0x4] sm:$0xf]
    %v1589 = vld [vmem:[%s5 + $0x8] sm:$0xf]
    %v1590 = vld [vmem:[%s5 + $0xc] sm:$0xf]
    %v1591 = vld [vmem:[%s5 + $0x10] sm:$0xf]
    %v1592 = vld [vmem:[%s5 + $0x14] sm:$0xf]
    %v1593 = vld [vmem:[%s5 + $0x18] sm:$0xf]
    %v1594 = vld [vmem:[%s5 + $0x1c] sm:$0xf]
    %v1595 = vld [vmem:[%s5 + $0x20] sm:$0xf]
    %v1596 = vld [vmem:[%s5 + $0x24] sm:$0xf]
    %v1597 = vld [vmem:[%s5 + $0x28] sm:$0xf]
    %v1598 = vld [vmem:[%s5 + $0x2c] sm:$0xf]
    %v1599 = vld [vmem:[%s5 + $0x30] sm:$0xf]
    %v1600 = vld [vmem:[%s5 + $0x34] sm:$0xf]
    %v1601 = vld [vmem:[%s5 + $0x38] sm:$0xf]
    %v1602 = vld [vmem:[%s5 + $0x3c] sm:$0xf]
    %v1603 = vld [vmem:[%s5 + $0x40] sm:$0xf]
    %v1604 = vld [vmem:[%s5 + $0x44] sm:$0xf]
    %v1605 = vld [vmem:[%s5 + $0x48] sm:$0xf]
    %v1606 = vld [vmem:[%s5 + $0x4c] sm:$0xf]
    %v1607 = vld [vmem:[%s5 + $0x50] sm:$0xf]
    %v1608 = vld [vmem:[%s5 + $0x54] sm:$0xf]
    %v1609 = vld [vmem:[%s5 + $0x58] sm:$0xf]
    %v1610 = vld [vmem:[%s5 + $0x5c] sm:$0xf]
    %v1611 = vld [vmem:[%s5 + $0x60] sm:$0xf]
    %v1612 = vld [vmem:[%s5 + $0x64] sm:$0xf]
    %v1613 = vld [vmem:[%s5 + $0x68] sm:$0xf]
    %v1614 = vld [vmem:[%s5 + $0x6c] sm:$0xf]
    %v1615 = vld [vmem:[%s5 + $0x70] sm:$0xf]
    %v1616 = vld [vmem:[%s5 + $0x74] sm:$0xf]
    %v1617 = vld [vmem:[%s5 + $0x78] sm:$0xf]
    %v1618 = vld [vmem:[%s5 + $0x7c] sm:$0xf]
    %v1619 = vld [vmem:[%s6] sm:$0x1]
    %v1621 = vlaneseq
    %v1622 = vshrl.u32 %v1621, 7
    %v1623 = vsub.s32 0, %v1622
    %v1624 = vrot.slane %v1619, %v1623
    %v1658 = vunpack.c.l.b16 %v1587
    %v1659 = vunpack.c.l.b16 %v1588
    %v1660 = vunpack.c.l.b16 %v1589
    %v1661 = vunpack.c.l.b16 %v1590
    %v1662 = vunpack.c.l.b16 %v1591
    %v1663 = vunpack.c.l.b16 %v1592
    %v1664 = vunpack.c.l.b16 %v1593
    %v1665 = vunpack.c.l.b16 %v1594
    %v1666 = vunpack.c.l.b16 %v1595
    %v1667 = vunpack.c.l.b16 %v1596
    %v1668 = vunpack.c.l.b16 %v1597
    %v1669 = vunpack.c.l.b16 %v1598
    %v1670 = vunpack.c.l.b16 %v1599
    %v1671 = vunpack.c.l.b16 %v1600
    %v1672 = vunpack.c.l.b16 %v1601
    %v1673 = vunpack.c.l.b16 %v1602
    %v1674 = vunpack.c.l.b16 %v1603
    %v1675 = vunpack.c.l.b16 %v1604
    %v1676 = vunpack.c.l.b16 %v1605
    %v1677 = vunpack.c.l.b16 %v1606
    %v1678 = vunpack.c.l.b16 %v1607
    %v1679 = vunpack.c.l.b16 %v1608
    %v1680 = vunpack.c.l.b16 %v1609
    %v1681 = vunpack.c.l.b16 %v1610
    %v1682 = vunpack.c.l.b16 %v1611
    %v1683 = vunpack.c.l.b16 %v1612
    %v1684 = vunpack.c.l.b16 %v1613
    %v1685 = vunpack.c.l.b16 %v1614
    %v1686 = vunpack.c.l.b16 %v1615
    %v1687 = vunpack.c.l.b16 %v1616
    %v1688 = vunpack.c.l.b16 %v1617
    %v1689 = vunpack.c.l.b16 %v1618
    %v1690 = vpack.c.b16 %v1659, %v1658
    %v1691 = vpack.c.b16 %v1661, %v1660
    %v1692 = vpack.c.b16 %v1663, %v1662
    %v1693 = vpack.c.b16 %v1665, %v1664
    %v1694 = vpack.c.b16 %v1667, %v1666
    %v1695 = vpack.c.b16 %v1669, %v1668
    %v1696 = vpack.c.b16 %v1671, %v1670
    %v1697 = vpack.c.b16 %v1673, %v1672
    %v1698 = vpack.c.b16 %v1675, %v1674
    %v1699 = vpack.c.b16 %v1677, %v1676
    %v1700 = vpack.c.b16 %v1679, %v1678
    %v1701 = vpack.c.b16 %v1681, %v1680
    %v1702 = vpack.c.b16 %v1683, %v1682
    %v1703 = vpack.c.b16 %v1685, %v1684
    %v1704 = vpack.c.b16 %v1687, %v1686
    %v1705 = vpack.c.b16 %v1689, %v1688
    %1722 = vmatprep.subr.bf16.mxu0 0
    %1723 = vmatpush1.bf16.msra.mxu0 %v1690
    %1724 = vmatprep.subr.bf16.mxu0 0
    %1725 = vmatpush1.bf16.msra.mxu0 %v1691
    %1726 = vmatprep.subr.bf16.mxu0 0
    %1727 = vmatpush1.bf16.msra.mxu0 %v1692
    %1728 = vmatprep.subr.bf16.mxu0 0
    %1729 = vmatpush1.bf16.msra.mxu0 %v1693
    %1730 = vmatprep.subr.bf16.mxu0 0
    %1731 = vmatpush1.bf16.msra.mxu0 %v1694
    %1732 = vmatprep.subr.bf16.mxu0 0
    %1733 = vmatpush1.bf16.msra.mxu0 %v1695
    %1734 = vmatprep.subr.bf16.mxu0 0
    %1735 = vmatpush1.bf16.msra.mxu0 %v1696
    %1736 = vmatprep.subr.bf16.mxu0 0
    %1737 = vmatpush1.bf16.msra.mxu0 %v1697
    %1738 = vmatprep.subr.bf16.mxu0 0
    %1739 = vmatpush1.bf16.msra.mxu0 %v1698
    %1740 = vmatprep.subr.bf16.mxu0 0
    %1741 = vmatpush1.bf16.msra.mxu0 %v1699
    %1742 = vmatprep.subr.bf16.mxu0 0
    %1743 = vmatpush1.bf16.msra.mxu0 %v1700
    %1744 = vmatprep.subr.bf16.mxu0 0
    %1745 = vmatpush1.bf16.msra.mxu0 %v1701
    %1746 = vmatprep.subr.bf16.mxu0 0
    %1747 = vmatpush1.bf16.msra.mxu0 %v1702
    %1748 = vmatprep.subr.bf16.mxu0 0
    %1749 = vmatpush1.bf16.msra.mxu0 %v1703
    %1750 = vmatprep.subr.bf16.mxu0 0
    %1751 = vmatpush1.bf16.msra.mxu0 %v1704
    %1752 = vmatprep.subr.bf16.mxu0 0
    %1753 = vmatpush1.bf16.msra.mxu0 %v1705
    %1754 = vmatprep.mubr.bf16.mxu0 %v1586
    %1755 = vmatmul.mubr.bf16.gmra.mrb[0].mxu0 %v1585
    %v1756 = vpop.f32.mrb[0].mxu0
    %v1757 = vadd.f32 %v1624, %v1756
    %v1758 = vpop.f32.mrb[0].mxu0
    %v1759 = vpop.f32.mrb[0].mxu0
    %v1760 = vpop.f32.mrb[0].mxu0
    %1761 = vdwg.mxu0
    %v1762 = vmax.f32 %v1757, 0.0
    %v1763 = vpack.c.bf16 %v1762, %v1762
    %v1764 = vld [vmem:[%s7] sm:$0xf]
    %v1765 = vld [vmem:[%s7 + $0x4] sm:$0xf]
    %v1766 = vld [vmem:[%s7 + $0x8] sm:$0xf]
    %v1767 = vld [vmem:[%s7 + $0xc] sm:$0xf]
    %v1768 = vld [vmem:[%s7 + $0x10] sm:$0xf]
    %v1769 = vld [vmem:[%s7 + $0x14] sm:$0xf]
    %v1770 = vld [vmem:[%s7 + $0x18] sm:$0xf]
    %v1771 = vld [vmem:[%s7 + $0x1c] sm:$0xf]
    %v1772 = vld [vmem:[%s7 + $0x20] sm:$0xf]
    %v1773 = vld [vmem:[%s7 + $0x24] sm:$0xf]
    %v1774 = vld [vmem:[%s7 + $0x28] sm:$0xf]
    %v1775 = vld [vmem:[%s7 + $0x2c] sm:$0xf]
    %v1776 = vld [vmem:[%s7 + $0x30] sm:$0xf]
    %v1777 = vld [vmem:[%s7 + $0x34] sm:$0xf]
    %v1778 = vld [vmem:[%s7 + $0x38] sm:$0xf]
    %v1779 = vld [vmem:[%s7 + $0x3c] sm:$0xf]
    %v1780 = vld [vmem:[#allocation6] sm:$0x1]
    %v1782 = vlaneseq
    %v1783 = vshrl.u32 %v1782, 7
    %v1784 = vsub.s32 0, %v1783
    %v1785 = vrot.slane %v1780, %v1784
    %v1803 = vunpack.c.l.b16 %v1764
    %v1804 = vunpack.c.l.b16 %v1765
    %v1805 = vunpack.c.l.b16 %v1766
    %v1806 = vunpack.c.l.b16 %v1767
    %v1807 = vunpack.c.l.b16 %v1768
    %v1808 = vunpack.c.l.b16 %v1769
    %v1809 = vunpack.c.l.b16 %v1770
    %v1810 = vunpack.c.l.b16 %v1771
    %v1811 = vunpack.c.l.b16 %v1772
    %v1812 = vunpack.c.l.b16 %v1773
    %v1813 = vunpack.c.l.b16 %v1774
    %v1814 = vunpack.c.l.b16 %v1775
    %v1815 = vunpack.c.l.b16 %v1776
    %v1816 = vunpack.c.l.b16 %v1777
    %v1817 = vunpack.c.l.b16 %v1778
    %v1818 = vunpack.c.l.b16 %v1779
    %v1819 = vpack.c.b16 %v1804, %v1803
    %v1820 = vpack.c.b16 %v1806, %v1805
    %v1821 = vpack.c.b16 %v1808, %v1807
    %v1822 = vpack.c.b16 %v1810, %v1809
    %v1823 = vpack.c.b16 %v1812, %v1811
    %v1824 = vpack.c.b16 %v1814, %v1813
    %v1825 = vpack.c.b16 %v1816, %v1815
    %v1826 = vpack.c.b16 %v1818, %v1817
    %1835 = vmatprep.subr.bf16.mxu0 0
    %1836 = vmatpush1.bf16.msra.mxu0 %v1819
    %1837 = vmatprep.subr.bf16.mxu0 0
    %1838 = vmatpush1.bf16.msra.mxu0 %v1820
    %1839 = vmatprep.subr.bf16.mxu0 0
    %1840 = vmatpush1.bf16.msra.mxu0 %v1821
    %1841 = vmatprep.subr.bf16.mxu0 0
    %1842 = vmatpush1.bf16.msra.mxu0 %v1822
    %1843 = vmatprep.subr.bf16.mxu0 0
    %1844 = vmatpush1.bf16.msra.mxu0 %v1823
    %1845 = vmatprep.subr.bf16.mxu0 0
    %1846 = vmatpush1.bf16.msra.mxu0 %v1824
    %1847 = vmatprep.subr.bf16.mxu0 0
    %1848 = vmatpush1.bf16.msra.mxu0 %v1825
    %1849 = vmatprep.subr.bf16.mxu0 0
    %1850 = vmatpush1.bf16.msra.mxu0 %v1826
    %1851 = vmatprep.subr.bf16.mxu0 0
    %1852 = vmatpush1.bf16.msra.mxu0 0
    %1853 = vmatprep.subr.bf16.mxu0 0
    %1854 = vmatpush1.bf16.msra.mxu0 0
    %1855 = vmatprep.subr.bf16.mxu0 0
    %1856 = vmatpush1.bf16.msra.mxu0 0
    %1857 = vmatprep.subr.bf16.mxu0 0
    %1858 = vmatpush1.bf16.msra.mxu0 0
    %1859 = vmatprep.subr.bf16.mxu0 0
    %1860 = vmatpush1.bf16.msra.mxu0 0
    %1861 = vmatprep.subr.bf16.mxu0 0
    %1862 = vmatpush1.bf16.msra.mxu0 0
    %1863 = vmatprep.subr.bf16.mxu0 0
    %1864 = vmatpush1.bf16.msra.mxu0 0
    %1865 = vmatprep.subr.bf16.mxu0 0
    %1866 = vmatpush1.bf16.msra.mxu0 0
    %1867 = vmatprep.mubr.bf16.mxu0 0
    %1868 = vmatmul.mubr.bf16.gmra.mrb[0].mxu0 %v1763
    %v1869 = vpop.f32.mrb[0].mxu0
    %v1870 = vadd.f32 %v1785, %v1869
    %v1871 = vpop.f32.mrb[0].mxu0
    %v1872 = vpop.f32.mrb[0].mxu0
    %v1873 = vpop.f32.mrb[0].mxu0
    %1874 = vdwg.mxu0
    %v1875 = vmax.f32 %v1870, 0.0
    %v1876 = vpack.c.bf16 %v1875, %v1875
    %v1877 = vld [vmem:[%s9] sm:$0xf]
    %v1878 = vld [vmem:[%s9 + $0x4] sm:$0xf]
    %v1879 = vld [vmem:[%s9 + $0x8] sm:$0xf]
    %v1880 = vld [vmem:[%s9 + $0xc] sm:$0xf]
    %v1881 = vld [vmem:[%s9 + $0x10] sm:$0xf]
    %v1882 = vld [vmem:[%s9 + $0x14] sm:$0xf]
    %v1883 = vld [vmem:[%s9 + $0x18] sm:$0xf]
    %v1884 = vld [vmem:[%s9 + $0x1c] sm:$0xf]
    %v1885 = vld [vmem:[#allocation7] sm:$0x1]
    %v1887 = vlaneseq
    %v1888 = vshrl.u32 %v1887, 7
    %v1889 = vsub.s32 0, %v1888
    %v1890 = vrot.slane %v1885, %v1889
    %v1900 = vunpack.c.l.b16 %v1877
    %v1901 = vunpack.c.l.b16 %v1878
    %v1902 = vunpack.c.l.b16 %v1879
    %v1903 = vunpack.c.l.b16 %v1880
    %v1904 = vunpack.c.l.b16 %v1881
    %v1905 = vunpack.c.l.b16 %v1882
    %v1906 = vunpack.c.l.b16 %v1883
    %v1907 = vunpack.c.l.b16 %v1884
    %v1908 = vpack.c.b16 %v1901, %v1900
    %v1909 = vpack.c.b16 %v1903, %v1902
    %v1910 = vpack.c.b16 %v1905, %v1904
    %v1911 = vpack.c.b16 %v1907, %v1906
    %vm1916 = vcmask 523264
    %v1918 = vsel %vm1916, %v1876, 0
    %1920 = vmatprep.subr.bf16.mxu0 0
    %1921 = vmatpush1.bf16.msra.mxu0 %v1908
    %1922 = vmatprep.subr.bf16.mxu0 0
    %1923 = vmatpush1.bf16.msra.mxu0 %v1909
    %1924 = vmatprep.subr.bf16.mxu0 0
    %1925 = vmatpush1.bf16.msra.mxu0 %v1910
    %1926 = vmatprep.subr.bf16.mxu0 0
    %1927 = vmatpush1.bf16.msra.mxu0 %v1911
    %1928 = vmatprep.subr.bf16.mxu0 0
    %1929 = vmatpush1.bf16.msra.mxu0 0
    %1930 = vmatprep.subr.bf16.mxu0 0
    %1931 = vmatpush1.bf16.msra.mxu0 0
    %1932 = vmatprep.subr.bf16.mxu0 0
    %1933 = vmatpush1.bf16.msra.mxu0 0
    %1934 = vmatprep.subr.bf16.mxu0 0
    %1935 = vmatpush1.bf16.msra.mxu0 0
    %1936 = vmatprep.subr.bf16.mxu0 0
    %1937 = vmatpush1.bf16.msra.mxu0 0
    %1938 = vmatprep.subr.bf16.mxu0 0
    %1939 = vmatpush1.bf16.msra.mxu0 0
    %1940 = vmatprep.subr.bf16.mxu0 0
    %1941 = vmatpush1.bf16.msra.mxu0 0
    %1942 = vmatprep.subr.bf16.mxu0 0
    %1943 = vmatpush1.bf16.msra.mxu0 0
    %1944 = vmatprep.subr.bf16.mxu0 0
    %1945 = vmatpush1.bf16.msra.mxu0 0
    %1946 = vmatprep.subr.bf16.mxu0 0
    %1947 = vmatpush1.bf16.msra.mxu0 0
    %1948 = vmatprep.subr.bf16.mxu0 0
    %1949 = vmatpush1.bf16.msra.mxu0 0
    %1950 = vmatprep.subr.bf16.mxu0 0
    %1951 = vmatpush1.bf16.msra.mxu0 0
    %1952 = vmatprep.mubr.bf16.mxu0 0
    %1953 = vmatmul.mubr.bf16.gmra.mrb[0].mxu0 %v1918
    %v1954 = vpop.f32.mrb[0].mxu0
    %v1955 = vadd.f32 %v1890, %v1954
    %v1956 = vpop.f32.mrb[0].mxu0
    %v1957 = vpop.f32.mrb[0].mxu0
    %v1958 = vpop.f32.mrb[0].mxu0
    %1959 = vdwg.mxu0
    %v1960 = vmax.f32 %v1955, 0.0
    %v1961 = vadd.f32 %v1960, %v1762
    %v1962 = vpack.c.bf16 %v1961, %v1961
    %v1963 = vld [vmem:[%s11] sm:$0xff]
    %v1964 = vld [vmem:[%s11 + $0x8] sm:$0xff]
    %v1965 = vld [vmem:[%s11 + $0x10] sm:$0xff]
    %v1966 = vld [vmem:[%s11 + $0x18] sm:$0xff]
    %v1967 = vld [vmem:[%s11 + $0x20] sm:$0xff]
    %v1968 = vld [vmem:[%s11 + $0x28] sm:$0xff]
    %v1969 = vld [vmem:[%s11 + $0x30] sm:$0xff]
    %v1970 = vld [vmem:[%s11 + $0x38] sm:$0xff]
    %v1971 = vld [vmem:[%s11 + $0x40] sm:$0xff]
    %v1972 = vld [vmem:[%s11 + $0x48] sm:$0xff]
    %v1973 = vld [vmem:[%s11 + $0x50] sm:$0xff]
    %v1974 = vld [vmem:[%s11 + $0x58] sm:$0xff]
    %v1975 = vld [vmem:[%s11 + $0x60] sm:$0xff]
    %v1976 = vld [vmem:[%s11 + $0x68] sm:$0xff]
    %v1977 = vld [vmem:[%s11 + $0x70] sm:$0xff]
    %v1978 = vld [vmem:[%s11 + $0x78] sm:$0xff]
    %v1979 = vld [vmem:[%s12] sm:$0x3]
    %v1981 = vlaneseq
    %v1982 = vshrl.u32 %v1981, 7
    %v1983 = vsub.s32 0, %v1982
    %v1984 = vrot.slane %v1979, %v1983
    %v1985 = vlaneseq
    %v1986 = vshrl.u32 %v1985, 7
    %v1987 = vsub.s32 1, %v1986
    %v1988 = vrot.slane %v1979, %v1987
    %v2007 = vunpack.c.l.b16 %v1963
    %v2008 = vunpack.c.h.b16 %v1963
    %v2009 = vunpack.c.l.b16 %v1964
    %v2010 = vunpack.c.h.b16 %v1964
    %v2011 = vunpack.c.l.b16 %v1965
    %v2012 = vunpack.c.h.b16 %v1965
    %v2013 = vunpack.c.l.b16 %v1966
    %v2014 = vunpack.c.h.b16 %v1966
    %v2015 = vunpack.c.l.b16 %v1967
    %v2016 = vunpack.c.h.b16 %v1967
    %v2017 = vunpack.c.l.b16 %v1968
    %v2018 = vunpack.c.h.b16 %v1968
    %v2019 = vunpack.c.l.b16 %v1969
    %v2020 = vunpack.c.h.b16 %v1969
    %v2021 = vunpack.c.l.b16 %v1970
    %v2022 = vunpack.c.h.b16 %v1970
    %v2023 = vunpack.c.l.b16 %v1971
    %v2024 = vunpack.c.h.b16 %v1971
    %v2025 = vunpack.c.l.b16 %v1972
    %v2026 = vunpack.c.h.b16 %v1972
    %v2027 = vunpack.c.l.b16 %v1973
    %v2028 = vunpack.c.h.b16 %v1973
    %v2029 = vunpack.c.l.b16 %v1974
    %v2030 = vunpack.c.h.b16 %v1974
    %v2031 = vunpack.c.l.b16 %v1975
    %v2032 = vunpack.c.h.b16 %v1975
    %v2033 = vunpack.c.l.b16 %v1976
    %v2034 = vunpack.c.h.b16 %v1976
    %v2035 = vunpack.c.l.b16 %v1977
    %v2036 = vunpack.c.h.b16 %v1977
    %v2037 = vunpack.c.l.b16 %v1978
    %v2038 = vunpack.c.h.b16 %v1978
    %v2039 = vpack.c.b16 %v2009, %v2007
    %v2040 = vpack.c.b16 %v2010, %v2008
    %v2041 = vpack.c.b16 %v2013, %v2011
    %v2042 = vpack.c.b16 %v2014, %v2012
    %v2043 = vpack.c.b16 %v2017, %v2015
    %v2044 = vpack.c.b16 %v2018, %v2016
    %v2045 = vpack.c.b16 %v2021, %v2019
    %v2046 = vpack.c.b16 %v2022, %v2020
    %v2047 = vpack.c.b16 %v2025, %v2023
    %v2048 = vpack.c.b16 %v2026, %v2024
    %v2049 = vpack.c.b16 %v2029, %v2027
    %v2050 = vpack.c.b16 %v2030, %v2028
    %v2051 = vpack.c.b16 %v2033, %v2031
    %v2052 = vpack.c.b16 %v2034, %v2032
    %v2053 = vpack.c.b16 %v2037, %v2035
    %v2054 = vpack.c.b16 %v2038, %v2036
    %2071 = vmatprep.subr.bf16.mxu0 %v2040
    %2072 = vmatpush1.bf16.msra.mxu0 %v2039
    %2073 = vmatprep.subr.bf16.mxu0 %v2042
    %2074 = vmatpush1.bf16.msra.mxu0 %v2041
    %2075 = vmatprep.subr.bf16.mxu0 %v2044
    %2076 = vmatpush1.bf16.msra.mxu0 %v2043
    %2077 = vmatprep.subr.bf16.mxu0 %v2046
    %2078 = vmatpush1.bf16.msra.mxu0 %v2045
    %2079 = vmatprep.subr.bf16.mxu0 %v2048
    %2080 = vmatpush1.bf16.msra.mxu0 %v2047
    %2081 = vmatprep.subr.bf16.mxu0 %v2050
    %2082 = vmatpush1.bf16.msra.mxu0 %v2049
    %2083 = vmatprep.subr.bf16.mxu0 %v2052
    %2084 = vmatpush1.bf16.msra.mxu0 %v2051
    %2085 = vmatprep.subr.bf16.mxu0 %v2054
    %2086 = vmatpush1.bf16.msra.mxu0 %v2053
    %2087 = vmatprep.subr.bf16.mxu0 0
    %2088 = vmatpush1.bf16.msra.mxu0 0
    %2089 = vmatprep.subr.bf16.mxu0 0
    %2090 = vmatpush1.bf16.msra.mxu0 0
    %2091 = vmatprep.subr.bf16.mxu0 0
    %2092 = vmatpush1.bf16.msra.mxu0 0
    %2093 = vmatprep.subr.bf16.mxu0 0
    %2094 = vmatpush1.bf16.msra.mxu0 0
    %2095 = vmatprep.subr.bf16.mxu0 0
    %2096 = vmatpush1.bf16.msra.mxu0 0
    %2097 = vmatprep.subr.bf16.mxu0 0
    %2098 = vmatpush1.bf16.msra.mxu0 0
    %2099 = vmatprep.subr.bf16.mxu0 0
    %2100 = vmatpush1.bf16.msra.mxu0 0
    %2101 = vmatprep.subr.bf16.mxu0 0
    %2102 = vmatpush1.bf16.msra.mxu0 0
    %2103 = vmatprep.mubr.bf16.mxu0 0
    %2104 = vmatmul.mubr.bf16.gmra.mrb[0].mxu0 %v1962
    %v2105 = vpop.f32.mrb[0].mxu0
    %v2106 = vadd.f32 %v1984, %v2105
    %v2107 = vpop.f32.mrb[0].mxu0
    %v2108 = vadd.f32 %v1988, %v2107
    %v2109 = vpop.f32.mrb[0].mxu0
    %v2110 = vpop.f32.mrb[0].mxu0
    %2111 = vdwg.mxu0
    %v2112 = vmax.f32 %v2106, 0.0
    %v2113 = vmax.f32 %v2108, 0.0
    %v2114 = vadd.f32 %v2112, %v1583
    %v2115 = vadd.f32 %v2113, %v1584
    %v2116 = vpack.c.bf16 %v2114, %v2114
    %v2117 = vpack.c.bf16 %v2115, %v2115
    %v2118 = vld [vmem:[#allocation9] sm:$0xff]
    %v2119 = vld [vmem:[#allocation9 + $0x8] sm:$0xff]
    %v2120 = vld [vmem:[#allocation9 + $0x10] sm:$0xff]
    %v2121 = vld [vmem:[#allocation9 + $0x18] sm:$0xff]
    %v2122 = vld [vmem:[#allocation9 + $0x20] sm:$0xff]
    %v2123 = vld [vmem:[#allocation9 + $0x28] sm:$0xff]
    %v2124 = vld [vmem:[#allocation9 + $0x30] sm:$0xff]
    %v2125 = vld [vmem:[#allocation9 + $0x38] sm:$0xff]
    %v2126 = vld [vmem:[#allocation9 + $0x40] sm:$0xff]
    %v2127 = vld [vmem:[#allocation9 + $0x48] sm:$0xff]
    %v2128 = vld [vmem:[#allocation9 + $0x50] sm:$0xff]
    %v2129 = vld [vmem:[#allocation9 + $0x58] sm:$0xff]
    %v2130 = vld [vmem:[#allocation9 + $0x60] sm:$0xff]
    %v2131 = vld [vmem:[#allocation9 + $0x68] sm:$0xff]
    %v2132 = vld [vmem:[#allocation9 + $0x70] sm:$0xff]
    %v2133 = vld [vmem:[#allocation9 + $0x78] sm:$0xff]
    %v2134 = vld [vmem:[#allocation9 + $0x80] sm:$0xff]
    %v2135 = vld [vmem:[#allocation9 + $0x88] sm:$0xff]
    %v2136 = vld [vmem:[#allocation9 + $0x90] sm:$0xff]
    %v2137 = vld [vmem:[#allocation9 + $0x98] sm:$0xff]
    %v2138 = vld [vmem:[#allocation9 + $0xa0] sm:$0xff]
    %v2139 = vld [vmem:[#allocation9 + $0xa8] sm:$0xff]
    %v2140 = vld [vmem:[#allocation9 + $0xb0] sm:$0xff]
    %v2141 = vld [vmem:[#allocation9 + $0xb8] sm:$0xff]
    %v2142 = vld [vmem:[#allocation9 + $0xc0] sm:$0xff]
    %v2143 = vld [vmem:[#allocation9 + $0xc8] sm:$0xff]
    %v2144 = vld [vmem:[#allocation9 + $0xd0] sm:$0xff]
    %v2145 = vld [vmem:[#allocation9 + $0xd8] sm:$0xff]
    %v2146 = vld [vmem:[#allocation9 + $0xe0] sm:$0xff]
    %v2147 = vld [vmem:[#allocation9 + $0xe8] sm:$0xff]
    %v2148 = vld [vmem:[#allocation9 + $0xf0] sm:$0xff]
    %v2149 = vld [vmem:[#allocation9 + $0xf8] sm:$0xff]
    %v2150 = vld [vmem:[#allocation9 + $0x100] sm:$0xff]
    %v2151 = vld [vmem:[#allocation9 + $0x108] sm:$0xff]
    %v2152 = vld [vmem:[#allocation9 + $0x110] sm:$0xff]
    %v2153 = vld [vmem:[#allocation9 + $0x118] sm:$0xff]
    %v2154 = vld [vmem:[#allocation9 + $0x120] sm:$0xff]
    %v2155 = vld [vmem:[#allocation9 + $0x128] sm:$0xff]
    %v2156 = vld [vmem:[#allocation9 + $0x130] sm:$0xff]
    %v2157 = vld [vmem:[#allocation9 + $0x138] sm:$0xff]
    %v2158 = vld [vmem:[#allocation9 + $0x140] sm:$0xff]
    %v2159 = vld [vmem:[#allocation9 + $0x148] sm:$0xff]
    %v2160 = vld [vmem:[#allocation9 + $0x150] sm:$0xff]
    %v2161 = vld [vmem:[#allocation9 + $0x158] sm:$0xff]
    %v2162 = vld [vmem:[#allocation9 + $0x160] sm:$0xff]
    %v2163 = vld [vmem:[#allocation9 + $0x168] sm:$0xff]
    %v2164 = vld [vmem:[#allocation9 + $0x170] sm:$0xff]
    %v2165 = vld [vmem:[#allocation9 + $0x178] sm:$0xff]
    %v2166 = vld [vmem:[#allocation9 + $0x180] sm:$0xff]
    %v2167 = vld [vmem:[#allocation9 + $0x188] sm:$0xff]
    %v2168 = vld [vmem:[#allocation9 + $0x190] sm:$0xff]
    %v2169 = vld [vmem:[#allocation9 + $0x198] sm:$0xff]
    %v2170 = vld [vmem:[#allocation9 + $0x1a0] sm:$0xff]
    %v2171 = vld [vmem:[#allocation9 + $0x1a8] sm:$0xff]
    %v2172 = vld [vmem:[#allocation9 + $0x1b0] sm:$0xff]
    %v2173 = vld [vmem:[#allocation9 + $0x1b8] sm:$0xff]
    %v2174 = vld [vmem:[#allocation9 + $0x1c0] sm:$0xff]
    %v2175 = vld [vmem:[#allocation9 + $0x1c8] sm:$0xff]
    %v2176 = vld [vmem:[#allocation9 + $0x1d0] sm:$0xff]
    %v2177 = vld [vmem:[#allocation9 + $0x1d8] sm:$0xff]
    %v2178 = vld [vmem:[#allocation9 + $0x1e0] sm:$0xff]
    %v2179 = vld [vmem:[#allocation9 + $0x1e8] sm:$0xff]
    %v2180 = vld [vmem:[#allocation9 + $0x1f0] sm:$0xff]
    %v2181 = vld [vmem:[#allocation9 + $0x1f8] sm:$0xff]
    %v2182 = vld [vmem:[%s14] sm:$0xf]
    %v2184 = vlaneseq
    %v2185 = vshrl.u32 %v2184, 7
    %v2186 = vsub.s32 0, %v2185
    %v2187 = vrot.slane %v2182, %v2186
    %v2188 = vlaneseq
    %v2189 = vshrl.u32 %v2188, 7
    %v2190 = vsub.s32 1, %v2189
    %v2191 = vrot.slane %v2182, %v2190
    %v2192 = vlaneseq
    %v2193 = vshrl.u32 %v2192, 7
    %v2194 = vsub.s32 2, %v2193
    %v2195 = vrot.slane %v2182, %v2194
    %v2196 = vlaneseq
    %v2197 = vshrl.u32 %v2196, 7
    %v2198 = vsub.s32 3, %v2197
    %v2199 = vrot.slane %v2182, %v2198
    %v2268 = vunpack.c.l.b16 %v2118
    %v2269 = vunpack.c.h.b16 %v2118
    %v2270 = vunpack.c.l.b16 %v2119
    %v2271 = vunpack.c.h.b16 %v2119
    %v2272 = vunpack.c.l.b16 %v2120
    %v2273 = vunpack.c.h.b16 %v2120
    %v2274 = vunpack.c.l.b16 %v2121
    %v2275 = vunpack.c.h.b16 %v2121
    %v2276 = vunpack.c.l.b16 %v2122
    %v2277 = vunpack.c.h.b16 %v2122
    %v2278 = vunpack.c.l.b16 %v2123
    %v2279 = vunpack.c.h.b16 %v2123
    %v2280 = vunpack.c.l.b16 %v2124
    %v2281 = vunpack.c.h.b16 %v2124
    %v2282 = vunpack.c.l.b16 %v2125
    %v2283 = vunpack.c.h.b16 %v2125
    %v2284 = vunpack.c.l.b16 %v2126
    %v2285 = vunpack.c.h.b16 %v2126
    %v2286 = vunpack.c.l.b16 %v2127
    %v2287 = vunpack.c.h.b16 %v2127
    %v2288 = vunpack.c.l.b16 %v2128
    %v2289 = vunpack.c.h.b16 %v2128
    %v2290 = vunpack.c.l.b16 %v2129
    %v2291 = vunpack.c.h.b16 %v2129
    %v2292 = vunpack.c.l.b16 %v2130
    %v2293 = vunpack.c.h.b16 %v2130
    %v2294 = vunpack.c.l.b16 %v2131
    %v2295 = vunpack.c.h.b16 %v2131
    %v2296 = vunpack.c.l.b16 %v2132
    %v2297 = vunpack.c.h.b16 %v2132
    %v2298 = vunpack.c.l.b16 %v2133
    %v2299 = vunpack.c.h.b16 %v2133
    %v2300 = vunpack.c.l.b16 %v2134
    %v2301 = vunpack.c.h.b16 %v2134
    %v2302 = vunpack.c.l.b16 %v2135
    %v2303 = vunpack.c.h.b16 %v2135
    %v2304 = vunpack.c.l.b16 %v2136
    %v2305 = vunpack.c.h.b16 %v2136
    %v2306 = vunpack.c.l.b16 %v2137
    %v2307 = vunpack.c.h.b16 %v2137
    %v2308 = vunpack.c.l.b16 %v2138
    %v2309 = vunpack.c.h.b16 %v2138
    %v2310 = vunpack.c.l.b16 %v2139
    %v2311 = vunpack.c.h.b16 %v2139
    %v2312 = vunpack.c.l.b16 %v2140
    %v2313 = vunpack.c.h.b16 %v2140
    %v2314 = vunpack.c.l.b16 %v2141
    %v2315 = vunpack.c.h.b16 %v2141
    %v2316 = vunpack.c.l.b16 %v2142
    %v2317 = vunpack.c.h.b16 %v2142
    %v2318 = vunpack.c.l.b16 %v2143
    %v2319 = vunpack.c.h.b16 %v2143
    %v2320 = vunpack.c.l.b16 %v2144
    %v2321 = vunpack.c.h.b16 %v2144
    %v2322 = vunpack.c.l.b16 %v2145
    %v2323 = vunpack.c.h.b16 %v2145
    %v2324 = vunpack.c.l.b16 %v2146
    %v2325 = vunpack.c.h.b16 %v2146
    %v2326 = vunpack.c.l.b16 %v2147
    %v2327 = vunpack.c.h.b16 %v2147
    %v2328 = vunpack.c.l.b16 %v2148
    %v2329 = vunpack.c.h.b16 %v2148
    %v2330 = vunpack.c.l.b16 %v2149
    %v2331 = vunpack.c.h.b16 %v2149
    %v2332 = vunpack.c.l.b16 %v2150
    %v2333 = vunpack.c.h.b16 %v2150
    %v2334 = vunpack.c.l.b16 %v2151
    %v2335 = vunpack.c.h.b16 %v2151
    %v2336 = vunpack.c.l.b16 %v2152
    %v2337 = vunpack.c.h.b16 %v2152
    %v2338 = vunpack.c.l.b16 %v2153
    %v2339 = vunpack.c.h.b16 %v2153
    %v2340 = vunpack.c.l.b16 %v2154
    %v2341 = vunpack.c.h.b16 %v2154
    %v2342 = vunpack.c.l.b16 %v2155
    %v2343 = vunpack.c.h.b16 %v2155
    %v2344 = vunpack.c.l.b16 %v2156
    %v2345 = vunpack.c.h.b16 %v2156
    %v2346 = vunpack.c.l.b16 %v2157
    %v2347 = vunpack.c.h.b16 %v2157
    %v2348 = vunpack.c.l.b16 %v2158
    %v2349 = vunpack.c.h.b16 %v2158
    %v2350 = vunpack.c.l.b16 %v2159
    %v2351 = vunpack.c.h.b16 %v2159
    %v2352 = vunpack.c.l.b16 %v2160
    %v2353 = vunpack.c.h.b16 %v2160
    %v2354 = vunpack.c.l.b16 %v2161
    %v2355 = vunpack.c.h.b16 %v2161
    %v2356 = vunpack.c.l.b16 %v2162
    %v2357 = vunpack.c.h.b16 %v2162
    %v2358 = vunpack.c.l.b16 %v2163
    %v2359 = vunpack.c.h.b16 %v2163
    %v2360 = vunpack.c.l.b16 %v2164
    %v2361 = vunpack.c.h.b16 %v2164
    %v2362 = vunpack.c.l.b16 %v2165
    %v2363 = vunpack.c.h.b16 %v2165
    %v2364 = vunpack.c.l.b16 %v2166
    %v2365 = vunpack.c.h.b16 %v2166
    %v2366 = vunpack.c.l.b16 %v2167
    %v2367 = vunpack.c.h.b16 %v2167
    %v2368 = vunpack.c.l.b16 %v2168
    %v2369 = vunpack.c.h.b16 %v2168
    %v2370 = vunpack.c.l.b16 %v2169
    %v2371 = vunpack.c.h.b16 %v2169
    %v2372 = vunpack.c.l.b16 %v2170
    %v2373 = vunpack.c.h.b16 %v2170
    %v2374 = vunpack.c.l.b16 %v2171
    %v2375 = vunpack.c.h.b16 %v2171
    %v2376 = vunpack.c.l.b16 %v2172
    %v2377 = vunpack.c.h.b16 %v2172
    %v2378 = vunpack.c.l.b16 %v2173
    %v2379 = vunpack.c.h.b16 %v2173
    %v2380 = vunpack.c.l.b16 %v2174
    %v2381 = vunpack.c.h.b16 %v2174
    %v2382 = vunpack.c.l.b16 %v2175
    %v2383 = vunpack.c.h.b16 %v2175
    %v2384 = vunpack.c.l.b16 %v2176
    %v2385 = vunpack.c.h.b16 %v2176
    %v2386 = vunpack.c.l.b16 %v2177
    %v2387 = vunpack.c.h.b16 %v2177
    %v2388 = vunpack.c.l.b16 %v2178
    %v2389 = vunpack.c.h.b16 %v2178
    %v2390 = vunpack.c.l.b16 %v2179
    %v2391 = vunpack.c.h.b16 %v2179
    %v2392 = vunpack.c.l.b16 %v2180
    %v2393 = vunpack.c.h.b16 %v2180
    %v2394 = vunpack.c.l.b16 %v2181
    %v2395 = vunpack.c.h.b16 %v2181
    %v2396 = vpack.c.b16 %v2272, %v2268
    %v2397 = vpack.c.b16 %v2273, %v2269
    %v2398 = vpack.c.b16 %v2274, %v2270
    %v2399 = vpack.c.b16 %v2275, %v2271
    %v2400 = vpack.c.b16 %v2280, %v2276
    %v2401 = vpack.c.b16 %v2281, %v2277
    %v2402 = vpack.c.b16 %v2282, %v2278
    %v2403 = vpack.c.b16 %v2283, %v2279
    %v2404 = vpack.c.b16 %v2288, %v2284
    %v2405 = vpack.c.b16 %v2289, %v2285
    %v2406 = vpack.c.b16 %v2290, %v2286
    %v2407 = vpack.c.b16 %v2291, %v2287
    %v2408 = vpack.c.b16 %v2296, %v2292
    %v2409 = vpack.c.b16 %v2297, %v2293
    %v2410 = vpack.c.b16 %v2298, %v2294
    %v2411 = vpack.c.b16 %v2299, %v2295
    %v2412 = vpack.c.b16 %v2304, %v2300
    %v2413 = vpack.c.b16 %v2305, %v2301
    %v2414 = vpack.c.b16 %v2306, %v2302
    %v2415 = vpack.c.b16 %v2307, %v2303
    %v2416 = vpack.c.b16 %v2312, %v2308
    %v2417 = vpack.c.b16 %v2313, %v2309
    %v2418 = vpack.c.b16 %v2314, %v2310
    %v2419 = vpack.c.b16 %v2315, %v2311
    %v2420 = vpack.c.b16 %v2320, %v2316
    %v2421 = vpack.c.b16 %v2321, %v2317
    %v2422 = vpack.c.b16 %v2322, %v2318
    %v2423 = vpack.c.b16 %v2323, %v2319
    %v2424 = vpack.c.b16 %v2328, %v2324
    %v2425 = vpack.c.b16 %v2329, %v2325
    %v2426 = vpack.c.b16 %v2330, %v2326
    %v2427 = vpack.c.b16 %v2331, %v2327
    %v2428 = vpack.c.b16 %v2336, %v2332
    %v2429 = vpack.c.b16 %v2337, %v2333
    %v2430 = vpack.c.b16 %v2338, %v2334
    %v2431 = vpack.c.b16 %v2339, %v2335
    %v2432 = vpack.c.b16 %v2344, %v2340
    %v2433 = vpack.c.b16 %v2345, %v2341
    %v2434 = vpack.c.b16 %v2346, %v2342
    %v2435 = vpack.c.b16 %v2347, %v2343
    %v2436 = vpack.c.b16 %v2352, %v2348
    %v2437 = vpack.c.b16 %v2353, %v2349
    %v2438 = vpack.c.b16 %v2354, %v2350
    %v2439 = vpack.c.b16 %v2355, %v2351
    %v2440 = vpack.c.b16 %v2360, %v2356
    %v2441 = vpack.c.b16 %v2361, %v2357
    %v2442 = vpack.c.b16 %v2362, %v2358
    %v2443 = vpack.c.b16 %v2363, %v2359
    %v2444 = vpack.c.b16 %v2368, %v2364
    %v2445 = vpack.c.b16 %v2369, %v2365
    %v2446 = vpack.c.b16 %v2370, %v2366
    %v2447 = vpack.c.b16 %v2371, %v2367
    %v2448 = vpack.c.b16 %v2376, %v2372
    %v2449 = vpack.c.b16 %v2377, %v2373
    %v2450 = vpack.c.b16 %v2378, %v2374
    %v2451 = vpack.c.b16 %v2379, %v2375
    %v2452 = vpack.c.b16 %v2384, %v2380
    %v2453 = vpack.c.b16 %v2385, %v2381
    %v2454 = vpack.c.b16 %v2386, %v2382
    %v2455 = vpack.c.b16 %v2387, %v2383
    %v2456 = vpack.c.b16 %v2392, %v2388
    %v2457 = vpack.c.b16 %v2393, %v2389
    %v2458 = vpack.c.b16 %v2394, %v2390
    %v2459 = vpack.c.b16 %v2395, %v2391
    %2524 = vmatprep.subr.bf16.mxu0 %v2397
    %2525 = vmatpush1.bf16.msra.mxu0 %v2396
    %2526 = vmatprep.subr.bf16.mxu0 %v2401
    %2527 = vmatpush1.bf16.msra.mxu0 %v2400
    %2528 = vmatprep.subr.bf16.mxu0 %v2405
    %2529 = vmatpush1.bf16.msra.mxu0 %v2404
    %2530 = vmatprep.subr.bf16.mxu0 %v2409
    %2531 = vmatpush1.bf16.msra.mxu0 %v2408
    %2532 = vmatprep.subr.bf16.mxu0 %v2413
    %2533 = vmatpush1.bf16.msra.mxu0 %v2412
    %2534 = vmatprep.subr.bf16.mxu0 %v2417
    %2535 = vmatpush1.bf16.msra.mxu0 %v2416
    %2536 = vmatprep.subr.bf16.mxu0 %v2421
    %2537 = vmatpush1.bf16.msra.mxu0 %v2420
    %2538 = vmatprep.subr.bf16.mxu0 %v2425
    %2539 = vmatpush1.bf16.msra.mxu0 %v2424
    %2540 = vmatprep.subr.bf16.mxu0 %v2429
    %2541 = vmatpush1.bf16.msra.mxu0 %v2428
    %2542 = vmatprep.subr.bf16.mxu0 %v2433
    %2543 = vmatpush1.bf16.msra.mxu0 %v2432
    %2544 = vmatprep.subr.bf16.mxu0 %v2437
    %2545 = vmatpush1.bf16.msra.mxu0 %v2436
    %2546 = vmatprep.subr.bf16.mxu0 %v2441
    %2547 = vmatpush1.bf16.msra.mxu0 %v2440
    %2548 = vmatprep.subr.bf16.mxu0 %v2445
    %2549 = vmatpush1.bf16.msra.mxu0 %v2444
    %2550 = vmatprep.subr.bf16.mxu0 %v2449
    %2551 = vmatpush1.bf16.msra.mxu0 %v2448
    %2552 = vmatprep.subr.bf16.mxu0 %v2453
    %2553 = vmatpush1.bf16.msra.mxu0 %v2452
    %2554 = vmatprep.subr.bf16.mxu0 %v2457
    %2555 = vmatpush1.bf16.msra.mxu0 %v2456
    %2556 = vmatprep.mubr.bf16.mxu0 %v2117
    %2557 = vmatmul.mubr.bf16.gmra.mrb[0].mxu0 %v2116
    %v2558 = vpop.f32.mrb[0].mxu0
    %v2559 = vadd.f32 %v2187, %v2558
    %v2560 = vpop.f32.mrb[0].mxu0
    %v2561 = vadd.f32 %v2191, %v2560
    %v2562 = vpop.f32.mrb[0].mxu0
    %v2563 = vpop.f32.mrb[0].mxu0
    %2564 = vdwg.mxu0
    %2565 = vmatprep.subr.bf16.mxu0 %v2399
    %2566 = vmatpush1.bf16.msra.mxu0 %v2398
    %2567 = vmatprep.subr.bf16.mxu0 %v2403
    %2568 = vmatpush1.bf16.msra.mxu0 %v2402
    %2569 = vmatprep.subr.bf16.mxu0 %v2407
    %2570 = vmatpush1.bf16.msra.mxu0 %v2406
    %2571 = vmatprep.subr.bf16.mxu0 %v2411
    %2572 = vmatpush1.bf16.msra.mxu0 %v2410
    %2573 = vmatprep.subr.bf16.mxu0 %v2415
    %2574 = vmatpush1.bf16.msra.mxu0 %v2414
    %2575 = vmatprep.subr.bf16.mxu0 %v2419
    %2576 = vmatpush1.bf16.msra.mxu0 %v2418
    %2577 = vmatprep.subr.bf16.mxu0 %v2423
    %2578 = vmatpush1.bf16.msra.mxu0 %v2422
    %2579 = vmatprep.subr.bf16.mxu0 %v2427
    %2580 = vmatpush1.bf16.msra.mxu0 %v2426
    %2581 = vmatprep.subr.bf16.mxu0 %v2431
    %2582 = vmatpush1.bf16.msra.mxu0 %v2430
    %2583 = vmatprep.subr.bf16.mxu0 %v2435
    %2584 = vmatpush1.bf16.msra.mxu0 %v2434
    %2585 = vmatprep.subr.bf16.mxu0 %v2439
    %2586 = vmatpush1.bf16.msra.mxu0 %v2438
    %2587 = vmatprep.subr.bf16.mxu0 %v2443
    %2588 = vmatpush1.bf16.msra.mxu0 %v2442
    %2589 = vmatprep.subr.bf16.mxu0 %v2447
    %2590 = vmatpush1.bf16.msra.mxu0 %v2446
    %2591 = vmatprep.subr.bf16.mxu0 %v2451
    %2592 = vmatpush1.bf16.msra.mxu0 %v2450
    %2593 = vmatprep.subr.bf16.mxu0 %v2455
    %2594 = vmatpush1.bf16.msra.mxu0 %v2454
    %2595 = vmatprep.subr.bf16.mxu0 %v2459
    %2596 = vmatpush1.bf16.msra.mxu0 %v2458
    %2597 = vmatprep.mubr.bf16.mxu0 %v2117
    %2598 = vmatmul.mubr.bf16.gmra.mrb[0].mxu0 %v2116
    %v2599 = vpop.f32.mrb[0].mxu0
    %v2600 = vadd.f32 %v2195, %v2599
    %v2601 = vpop.f32.mrb[0].mxu0
    %v2602 = vadd.f32 %v2199, %v2601
    %v2603 = vpop.f32.mrb[0].mxu0
    %v2604 = vpop.f32.mrb[0].mxu0
    %2605 = vdwg.mxu0
    %v2606 = vmax.f32 %v2559, 0.0
    %v2607 = vmax.f32 %v2561, 0.0
    %v2608 = vmax.f32 %v2600, 0.0
    %v2609 = vmax.f32 %v2602, 0.0
    %v2610 = vadd.f32 %v2606, %v1097
    %v2611 = vadd.f32 %v2607, %v1098
    %v2612 = vadd.f32 %v2608, %v1099
    %v2613 = vadd.f32 %v2609, %v1100
    %v2614 = vpack.c.bf16 %v2610, %v2610
    %v2615 = vpack.c.bf16 %v2611, %v2611
    %v2616 = vpack.c.bf16 %v2612, %v2612
    %v2617 = vpack.c.bf16 %v2613, %v2613
    %v2618 = vld [vmem:[#allocation10] sm:$0xff]
    %v2619 = vld [vmem:[#allocation10 + $0x8] sm:$0xff]
    %v2620 = vld [vmem:[#allocation10 + $0x10] sm:$0xff]
    %v2621 = vld [vmem:[#allocation10 + $0x18] sm:$0xff]
    %v2622 = vld [vmem:[#allocation10 + $0x20] sm:$0xff]
    %v2623 = vld [vmem:[#allocation10 + $0x28] sm:$0xff]
    %v2624 = vld [vmem:[#allocation10 + $0x30] sm:$0xff]
    %v2625 = vld [vmem:[#allocation10 + $0x38] sm:$0xff]
    %v2626 = vld [vmem:[#allocation10 + $0x40] sm:$0xff]
    %v2627 = vld [vmem:[#allocation10 + $0x48] sm:$0xff]
    %v2628 = vld [vmem:[#allocation10 + $0x50] sm:$0xff]
    %v2629 = vld [vmem:[#allocation10 + $0x58] sm:$0xff]
    %v2630 = vld [vmem:[#allocation10 + $0x60] sm:$0xff]
    %v2631 = vld [vmem:[#allocation10 + $0x68] sm:$0xff]
    %v2632 = vld [vmem:[#allocation10 + $0x70] sm:$0xff]
    %v2633 = vld [vmem:[#allocation10 + $0x78] sm:$0xff]
    %v2634 = vld [vmem:[#allocation10 + $0x80] sm:$0xff]
    %v2635 = vld [vmem:[#allocation10 + $0x88] sm:$0xff]
    %v2636 = vld [vmem:[#allocation10 + $0x90] sm:$0xff]
    %v2637 = vld [vmem:[#allocation10 + $0x98] sm:$0xff]
    %v2638 = vld [vmem:[#allocation10 + $0xa0] sm:$0xff]
    %v2639 = vld [vmem:[#allocation10 + $0xa8] sm:$0xff]
    %v2640 = vld [vmem:[#allocation10 + $0xb0] sm:$0xff]
    %v2641 = vld [vmem:[#allocation10 + $0xb8] sm:$0xff]
    %v2642 = vld [vmem:[#allocation10 + $0xc0] sm:$0xff]
    %v2643 = vld [vmem:[#allocation10 + $0xc8] sm:$0xff]
    %v2644 = vld [vmem:[#allocation10 + $0xd0] sm:$0xff]
    %v2645 = vld [vmem:[#allocation10 + $0xd8] sm:$0xff]
    %v2646 = vld [vmem:[#allocation10 + $0xe0] sm:$0xff]
    %v2647 = vld [vmem:[#allocation10 + $0xe8] sm:$0xff]
    %v2648 = vld [vmem:[#allocation10 + $0xf0] sm:$0xff]
    %v2649 = vld [vmem:[#allocation10 + $0xf8] sm:$0xff]
    %v2650 = vld [vmem:[#allocation10 + $0x100] sm:$0xff]
    %v2651 = vld [vmem:[#allocation10 + $0x108] sm:$0xff]
    %v2652 = vld [vmem:[#allocation10 + $0x110] sm:$0xff]
    %v2653 = vld [vmem:[#allocation10 + $0x118] sm:$0xff]
    %v2654 = vld [vmem:[#allocation10 + $0x120] sm:$0xff]
    %v2655 = vld [vmem:[#allocation10 + $0x128] sm:$0xff]
    %v2656 = vld [vmem:[#allocation10 + $0x130] sm:$0xff]
    %v2657 = vld [vmem:[#allocation10 + $0x138] sm:$0xff]
    %v2658 = vld [vmem:[#allocation10 + $0x140] sm:$0xff]
    %v2659 = vld [vmem:[#allocation10 + $0x148] sm:$0xff]
    %v2660 = vld [vmem:[#allocation10 + $0x150] sm:$0xff]
    %v2661 = vld [vmem:[#allocation10 + $0x158] sm:$0xff]
    %v2662 = vld [vmem:[#allocation10 + $0x160] sm:$0xff]
    %v2663 = vld [vmem:[#allocation10 + $0x168] sm:$0xff]
    %v2664 = vld [vmem:[#allocation10 + $0x170] sm:$0xff]
    %v2665 = vld [vmem:[#allocation10 + $0x178] sm:$0xff]
    %v2666 = vld [vmem:[#allocation10 + $0x180] sm:$0xff]
    %v2667 = vld [vmem:[#allocation10 + $0x188] sm:$0xff]
    %v2668 = vld [vmem:[#allocation10 + $0x190] sm:$0xff]
    %v2669 = vld [vmem:[#allocation10 + $0x198] sm:$0xff]
    %v2670 = vld [vmem:[#allocation10 + $0x1a0] sm:$0xff]
    %v2671 = vld [vmem:[#allocation10 + $0x1a8] sm:$0xff]
    %v2672 = vld [vmem:[#allocation10 + $0x1b0] sm:$0xff]
    %v2673 = vld [vmem:[#allocation10 + $0x1b8] sm:$0xff]
    %v2674 = vld [vmem:[#allocation10 + $0x1c0] sm:$0xff]
    %v2675 = vld [vmem:[#allocation10 + $0x1c8] sm:$0xff]
    %v2676 = vld [vmem:[#allocation10 + $0x1d0] sm:$0xff]
    %v2677 = vld [vmem:[#allocation10 + $0x1d8] sm:$0xff]
    %v2678 = vld [vmem:[#allocation10 + $0x1e0] sm:$0xff]
    %v2679 = vld [vmem:[#allocation10 + $0x1e8] sm:$0xff]
    %v2680 = vld [vmem:[#allocation10 + $0x1f0] sm:$0xff]
    %v2681 = vld [vmem:[#allocation10 + $0x1f8] sm:$0xff]
    %v2682 = vld [vmem:[#allocation10 + $0x200] sm:$0xff]
    %v2683 = vld [vmem:[#allocation10 + $0x208] sm:$0xff]
    %v2684 = vld [vmem:[#allocation10 + $0x210] sm:$0xff]
    %v2685 = vld [vmem:[#allocation10 + $0x218] sm:$0xff]
    %v2686 = vld [vmem:[#allocation10 + $0x220] sm:$0xff]
    %v2687 = vld [vmem:[#allocation10 + $0x228] sm:$0xff]
    %v2688 = vld [vmem:[#allocation10 + $0x230] sm:$0xff]
    %v2689 = vld [vmem:[#allocation10 + $0x238] sm:$0xff]
    %v2690 = vld [vmem:[#allocation10 + $0x240] sm:$0xff]
    %v2691 = vld [vmem:[#allocation10 + $0x248] sm:$0xff]
    %v2692 = vld [vmem:[#allocation10 + $0x250] sm:$0xff]
    %v2693 = vld [vmem:[#allocation10 + $0x258] sm:$0xff]
    %v2694 = vld [vmem:[#allocation10 + $0x260] sm:$0xff]
    %v2695 = vld [vmem:[#allocation10 + $0x268] sm:$0xff]
    %v2696 = vld [vmem:[#allocation10 + $0x270] sm:$0xff]
    %v2697 = vld [vmem:[#allocation10 + $0x278] sm:$0xff]
    %v2698 = vld [vmem:[#allocation10 + $0x280] sm:$0xff]
    %v2699 = vld [vmem:[#allocation10 + $0x288] sm:$0xff]
    %v2700 = vld [vmem:[#allocation10 + $0x290] sm:$0xff]
    %v2701 = vld [vmem:[#allocation10 + $0x298] sm:$0xff]
    %v2702 = vld [vmem:[#allocation10 + $0x2a0] sm:$0xff]
    %v2703 = vld [vmem:[#allocation10 + $0x2a8] sm:$0xff]
    %v2704 = vld [vmem:[#allocation10 + $0x2b0] sm:$0xff]
    %v2705 = vld [vmem:[#allocation10 + $0x2b8] sm:$0xff]
    %v2706 = vld [vmem:[#allocation10 + $0x2c0] sm:$0xff]
    %v2707 = vld [vmem:[#allocation10 + $0x2c8] sm:$0xff]
    %v2708 = vld [vmem:[#allocation10 + $0x2d0] sm:$0xff]
    %v2709 = vld [vmem:[#allocation10 + $0x2d8] sm:$0xff]
    %v2710 = vld [vmem:[#allocation10 + $0x2e0] sm:$0xff]
    %v2711 = vld [vmem:[#allocation10 + $0x2e8] sm:$0xff]
    %v2712 = vld [vmem:[#allocation10 + $0x2f0] sm:$0xff]
    %v2713 = vld [vmem:[#allocation10 + $0x2f8] sm:$0xff]
    %v2714 = vld [vmem:[#allocation10 + $0x300] sm:$0xff]
    %v2715 = vld [vmem:[#allocation10 + $0x308] sm:$0xff]
    %v2716 = vld [vmem:[#allocation10 + $0x310] sm:$0xff]
    %v2717 = vld [vmem:[#allocation10 + $0x318] sm:$0xff]
    %v2718 = vld [vmem:[#allocation10 + $0x320] sm:$0xff]
    %v2719 = vld [vmem:[#allocation10 + $0x328] sm:$0xff]
    %v2720 = vld [vmem:[#allocation10 + $0x330] sm:$0xff]
    %v2721 = vld [vmem:[#allocation10 + $0x338] sm:$0xff]
    %v2722 = vld [vmem:[#allocation10 + $0x340] sm:$0xff]
    %v2723 = vld [vmem:[#allocation10 + $0x348] sm:$0xff]
    %v2724 = vld [vmem:[#allocation10 + $0x350] sm:$0xff]
    %v2725 = vld [vmem:[#allocation10 + $0x358] sm:$0xff]
    %v2726 = vld [vmem:[#allocation10 + $0x360] sm:$0xff]
    %v2727 = vld [vmem:[#allocation10 + $0x368] sm:$0xff]
    %v2728 = vld [vmem:[#allocation10 + $0x370] sm:$0xff]
    %v2729 = vld [vmem:[#allocation10 + $0x378] sm:$0xff]
    %v2730 = vld [vmem:[#allocation10 + $0x380] sm:$0xff]
    %v2731 = vld [vmem:[#allocation10 + $0x388] sm:$0xff]
    %v2732 = vld [vmem:[#allocation10 + $0x390] sm:$0xff]
    %v2733 = vld [vmem:[#allocation10 + $0x398] sm:$0xff]
    %v2734 = vld [vmem:[#allocation10 + $0x3a0] sm:$0xff]
    %v2735 = vld [vmem:[#allocation10 + $0x3a8] sm:$0xff]
    %v2736 = vld [vmem:[#allocation10 + $0x3b0] sm:$0xff]
    %v2737 = vld [vmem:[#allocation10 + $0x3b8] sm:$0xff]
    %v2738 = vld [vmem:[#allocation10 + $0x3c0] sm:$0xff]
    %v2739 = vld [vmem:[#allocation10 + $0x3c8] sm:$0xff]
    %v2740 = vld [vmem:[#allocation10 + $0x3d0] sm:$0xff]
    %v2741 = vld [vmem:[#allocation10 + $0x3d8] sm:$0xff]
    %v2742 = vld [vmem:[#allocation10 + $0x3e0] sm:$0xff]
    %v2743 = vld [vmem:[#allocation10 + $0x3e8] sm:$0xff]
    %v2744 = vld [vmem:[#allocation10 + $0x3f0] sm:$0xff]
    %v2745 = vld [vmem:[#allocation10 + $0x3f8] sm:$0xff]
    %v2746 = vld [vmem:[%s16] sm:$0xf]
    %v2748 = vlaneseq
    %v2749 = vshrl.u32 %v2748, 7
    %v2750 = vsub.s32 0, %v2749
    %v2751 = vrot.slane %v2746, %v2750
    %v2752 = vlaneseq
    %v2753 = vshrl.u32 %v2752, 7
    %v2754 = vsub.s32 1, %v2753
    %v2755 = vrot.slane %v2746, %v2754
    %v2756 = vlaneseq
    %v2757 = vshrl.u32 %v2756, 7
    %v2758 = vsub.s32 2, %v2757
    %v2759 = vrot.slane %v2746, %v2758
    %v2760 = vlaneseq
    %v2761 = vshrl.u32 %v2760, 7
    %v2762 = vsub.s32 3, %v2761
    %v2763 = vrot.slane %v2746, %v2762
    %v2896 = vunpack.c.l.b16 %v2618
    %v2897 = vunpack.c.h.b16 %v2618
    %v2898 = vunpack.c.l.b16 %v2619
    %v2899 = vunpack.c.h.b16 %v2619
    %v2900 = vunpack.c.l.b16 %v2620
    %v2901 = vunpack.c.h.b16 %v2620
    %v2902 = vunpack.c.l.b16 %v2621
    %v2903 = vunpack.c.h.b16 %v2621
    %v2904 = vunpack.c.l.b16 %v2622
    %v2905 = vunpack.c.h.b16 %v2622
    %v2906 = vunpack.c.l.b16 %v2623
    %v2907 = vunpack.c.h.b16 %v2623
    %v2908 = vunpack.c.l.b16 %v2624
    %v2909 = vunpack.c.h.b16 %v2624
    %v2910 = vunpack.c.l.b16 %v2625
    %v2911 = vunpack.c.h.b16 %v2625
    %v2912 = vunpack.c.l.b16 %v2626
    %v2913 = vunpack.c.h.b16 %v2626
    %v2914 = vunpack.c.l.b16 %v2627
    %v2915 = vunpack.c.h.b16 %v2627
    %v2916 = vunpack.c.l.b16 %v2628
    %v2917 = vunpack.c.h.b16 %v2628
    %v2918 = vunpack.c.l.b16 %v2629
    %v2919 = vunpack.c.h.b16 %v2629
    %v2920 = vunpack.c.l.b16 %v2630
    %v2921 = vunpack.c.h.b16 %v2630
    %v2922 = vunpack.c.l.b16 %v2631
    %v2923 = vunpack.c.h.b16 %v2631
    %v2924 = vunpack.c.l.b16 %v2632
    %v2925 = vunpack.c.h.b16 %v2632
    %v2926 = vunpack.c.l.b16 %v2633
    %v2927 = vunpack.c.h.b16 %v2633
    %v2928 = vunpack.c.l.b16 %v2634
    %v2929 = vunpack.c.h.b16 %v2634
    %v2930 = vunpack.c.l.b16 %v2635
    %v2931 = vunpack.c.h.b16 %v2635
    %v2932 = vunpack.c.l.b16 %v2636
    %v2933 = vunpack.c.h.b16 %v2636
    %v2934 = vunpack.c.l.b16 %v2637
    %v2935 = vunpack.c.h.b16 %v2637
    %v2936 = vunpack.c.l.b16 %v2638
    %v2937 = vunpack.c.h.b16 %v2638
    %v2938 = vunpack.c.l.b16 %v2639
    %v2939 = vunpack.c.h.b16 %v2639
    %v2940 = vunpack.c.l.b16 %v2640
    %v2941 = vunpack.c.h.b16 %v2640
    %v2942 = vunpack.c.l.b16 %v2641
    %v2943 = vunpack.c.h.b16 %v2641
    %v2944 = vunpack.c.l.b16 %v2642
    %v2945 = vunpack.c.h.b16 %v2642
    %v2946 = vunpack.c.l.b16 %v2643
    %v2947 = vunpack.c.h.b16 %v2643
    %v2948 = vunpack.c.l.b16 %v2644
    %v2949 = vunpack.c.h.b16 %v2644
    %v2950 = vunpack.c.l.b16 %v2645
    %v2951 = vunpack.c.h.b16 %v2645
    %v2952 = vunpack.c.l.b16 %v2646
    %v2953 = vunpack.c.h.b16 %v2646
    %v2954 = vunpack.c.l.b16 %v2647
    %v2955 = vunpack.c.h.b16 %v2647
    %v2956 = vunpack.c.l.b16 %v2648
    %v2957 = vunpack.c.h.b16 %v2648
    %v2958 = vunpack.c.l.b16 %v2649
    %v2959 = vunpack.c.h.b16 %v2649
    %v2960 = vunpack.c.l.b16 %v2650
    %v2961 = vunpack.c.h.b16 %v2650
    %v2962 = vunpack.c.l.b16 %v2651
    %v2963 = vunpack.c.h.b16 %v2651
    %v2964 = vunpack.c.l.b16 %v2652
    %v2965 = vunpack.c.h.b16 %v2652
    %v2966 = vunpack.c.l.b16 %v2653
    %v2967 = vunpack.c.h.b16 %v2653
    %v2968 = vunpack.c.l.b16 %v2654
    %v2969 = vunpack.c.h.b16 %v2654
    %v2970 = vunpack.c.l.b16 %v2655
    %v2971 = vunpack.c.h.b16 %v2655
    %v2972 = vunpack.c.l.b16 %v2656
    %v2973 = vunpack.c.h.b16 %v2656
    %v2974 = vunpack.c.l.b16 %v2657
    %v2975 = vunpack.c.h.b16 %v2657
    %v2976 = vunpack.c.l.b16 %v2658
    %v2977 = vunpack.c.h.b16 %v2658
    %v2978 = vunpack.c.l.b16 %v2659
    %v2979 = vunpack.c.h.b16 %v2659
    %v2980 = vunpack.c.l.b16 %v2660
    %v2981 = vunpack.c.h.b16 %v2660
    %v2982 = vunpack.c.l.b16 %v2661
    %v2983 = vunpack.c.h.b16 %v2661
    %v2984 = vunpack.c.l.b16 %v2662
    %v2985 = vunpack.c.h.b16 %v2662
    %v2986 = vunpack.c.l.b16 %v2663
    %v2987 = vunpack.c.h.b16 %v2663
    %v2988 = vunpack.c.l.b16 %v2664
    %v2989 = vunpack.c.h.b16 %v2664
    %v2990 = vunpack.c.l.b16 %v2665
    %v2991 = vunpack.c.h.b16 %v2665
    %v2992 = vunpack.c.l.b16 %v2666
    %v2993 = vunpack.c.h.b16 %v2666
    %v2994 = vunpack.c.l.b16 %v2667
    %v2995 = vunpack.c.h.b16 %v2667
    %v2996 = vunpack.c.l.b16 %v2668
    %v2997 = vunpack.c.h.b16 %v2668
    %v2998 = vunpack.c.l.b16 %v2669
    %v2999 = vunpack.c.h.b16 %v2669
    %v3000 = vunpack.c.l.b16 %v2670
    %v3001 = vunpack.c.h.b16 %v2670
    %v3002 = vunpack.c.l.b16 %v2671
    %v3003 = vunpack.c.h.b16 %v2671
    %v3004 = vunpack.c.l.b16 %v2672
    %v3005 = vunpack.c.h.b16 %v2672
    %v3006 = vunpack.c.l.b16 %v2673
    %v3007 = vunpack.c.h.b16 %v2673
    %v3008 = vunpack.c.l.b16 %v2674
    %v3009 = vunpack.c.h.b16 %v2674
    %v3010 = vunpack.c.l.b16 %v2675
    %v3011 = vunpack.c.h.b16 %v2675
    %v3012 = vunpack.c.l.b16 %v2676
    %v3013 = vunpack.c.h.b16 %v2676
    %v3014 = vunpack.c.l.b16 %v2677
    %v3015 = vunpack.c.h.b16 %v2677
    %v3016 = vunpack.c.l.b16 %v2678
    %v3017 = vunpack.c.h.b16 %v2678
    %v3018 = vunpack.c.l.b16 %v2679
    %v3019 = vunpack.c.h.b16 %v2679
    %v3020 = vunpack.c.l.b16 %v2680
    %v3021 = vunpack.c.h.b16 %v2680
    %v3022 = vunpack.c.l.b16 %v2681
    %v3023 = vunpack.c.h.b16 %v2681
    %v3024 = vunpack.c.l.b16 %v2682
    %v3025 = vunpack.c.h.b16 %v2682
    %v3026 = vunpack.c.l.b16 %v2683
    %v3027 = vunpack.c.h.b16 %v2683
    %v3028 = vunpack.c.l.b16 %v2684
    %v3029 = vunpack.c.h.b16 %v2684
    %v3030 = vunpack.c.l.b16 %v2685
    %v3031 = vunpack.c.h.b16 %v2685
    %v3032 = vunpack.c.l.b16 %v2686
    %v3033 = vunpack.c.h.b16 %v2686
    %v3034 = vunpack.c.l.b16 %v2687
    %v3035 = vunpack.c.h.b16 %v2687
    %v3036 = vunpack.c.l.b16 %v2688
    %v3037 = vunpack.c.h.b16 %v2688
    %v3038 = vunpack.c.l.b16 %v2689
    %v3039 = vunpack.c.h.b16 %v2689
    %v3040 = vunpack.c.l.b16 %v2690
    %v3041 = vunpack.c.h.b16 %v2690
    %v3042 = vunpack.c.l.b16 %v2691
    %v3043 = vunpack.c.h.b16 %v2691
    %v3044 = vunpack.c.l.b16 %v2692
    %v3045 = vunpack.c.h.b16 %v2692
    %v3046 = vunpack.c.l.b16 %v2693
    %v3047 = vunpack.c.h.b16 %v2693
    %v3048 = vunpack.c.l.b16 %v2694
    %v3049 = vunpack.c.h.b16 %v2694
    %v3050 = vunpack.c.l.b16 %v2695
    %v3051 = vunpack.c.h.b16 %v2695
    %v3052 = vunpack.c.l.b16 %v2696
    %v3053 = vunpack.c.h.b16 %v2696
    %v3054 = vunpack.c.l.b16 %v2697
    %v3055 = vunpack.c.h.b16 %v2697
    %v3056 = vunpack.c.l.b16 %v2698
    %v3057 = vunpack.c.h.b16 %v2698
    %v3058 = vunpack.c.l.b16 %v2699
    %v3059 = vunpack.c.h.b16 %v2699
    %v3060 = vunpack.c.l.b16 %v2700
    %v3061 = vunpack.c.h.b16 %v2700
    %v3062 = vunpack.c.l.b16 %v2701
    %v3063 = vunpack.c.h.b16 %v2701
    %v3064 = vunpack.c.l.b16 %v2702
    %v3065 = vunpack.c.h.b16 %v2702
    %v3066 = vunpack.c.l.b16 %v2703
    %v3067 = vunpack.c.h.b16 %v2703
    %v3068 = vunpack.c.l.b16 %v2704
    %v3069 = vunpack.c.h.b16 %v2704
    %v3070 = vunpack.c.l.b16 %v2705
    %v3071 = vunpack.c.h.b16 %v2705
    %v3072 = vunpack.c.l.b16 %v2706
    %v3073 = vunpack.c.h.b16 %v2706
    %v3074 = vunpack.c.l.b16 %v2707
    %v3075 = vunpack.c.h.b16 %v2707
    %v3076 = vunpack.c.l.b16 %v2708
    %v3077 = vunpack.c.h.b16 %v2708
    %v3078 = vunpack.c.l.b16 %v2709
    %v3079 = vunpack.c.h.b16 %v2709
    %v3080 = vunpack.c.l.b16 %v2710
    %v3081 = vunpack.c.h.b16 %v2710
    %v3082 = vunpack.c.l.b16 %v2711
    %v3083 = vunpack.c.h.b16 %v2711
    %v3084 = vunpack.c.l.b16 %v2712
    %v3085 = vunpack.c.h.b16 %v2712
    %v3086 = vunpack.c.l.b16 %v2713
    %v3087 = vunpack.c.h.b16 %v2713
    %v3088 = vunpack.c.l.b16 %v2714
    %v3089 = vunpack.c.h.b16 %v2714
    %v3090 = vunpack.c.l.b16 %v2715
    %v3091 = vunpack.c.h.b16 %v2715
    %v3092 = vunpack.c.l.b16 %v2716
    %v3093 = vunpack.c.h.b16 %v2716
    %v3094 = vunpack.c.l.b16 %v2717
    %v3095 = vunpack.c.h.b16 %v2717
    %v3096 = vunpack.c.l.b16 %v2718
    %v3097 = vunpack.c.h.b16 %v2718
    %v3098 = vunpack.c.l.b16 %v2719
    %v3099 = vunpack.c.h.b16 %v2719
    %v3100 = vunpack.c.l.b16 %v2720
    %v3101 = vunpack.c.h.b16 %v2720
    %v3102 = vunpack.c.l.b16 %v2721
    %v3103 = vunpack.c.h.b16 %v2721
    %v3104 = vunpack.c.l.b16 %v2722
    %v3105 = vunpack.c.h.b16 %v2722
    %v3106 = vunpack.c.l.b16 %v2723
    %v3107 = vunpack.c.h.b16 %v2723
    %v3108 = vunpack.c.l.b16 %v2724
    %v3109 = vunpack.c.h.b16 %v2724
    %v3110 = vunpack.c.l.b16 %v2725
    %v3111 = vunpack.c.h.b16 %v2725
    %v3112 = vunpack.c.l.b16 %v2726
    %v3113 = vunpack.c.h.b16 %v2726
    %v3114 = vunpack.c.l.b16 %v2727
    %v3115 = vunpack.c.h.b16 %v2727
    %v3116 = vunpack.c.l.b16 %v2728
    %v3117 = vunpack.c.h.b16 %v2728
    %v3118 = vunpack.c.l.b16 %v2729
    %v3119 = vunpack.c.h.b16 %v2729
    %v3120 = vunpack.c.l.b16 %v2730
    %v3121 = vunpack.c.h.b16 %v2730
    %v3122 = vunpack.c.l.b16 %v2731
    %v3123 = vunpack.c.h.b16 %v2731
    %v3124 = vunpack.c.l.b16 %v2732
    %v3125 = vunpack.c.h.b16 %v2732
    %v3126 = vunpack.c.l.b16 %v2733
    %v3127 = vunpack.c.h.b16 %v2733
    %v3128 = vunpack.c.l.b16 %v2734
    %v3129 = vunpack.c.h.b16 %v2734
    %v3130 = vunpack.c.l.b16 %v2735
    %v3131 = vunpack.c.h.b16 %v2735
    %v3132 = vunpack.c.l.b16 %v2736
    %v3133 = vunpack.c.h.b16 %v2736
    %v3134 = vunpack.c.l.b16 %v2737
    %v3135 = vunpack.c.h.b16 %v2737
    %v3136 = vunpack.c.l.b16 %v2738
    %v3137 = vunpack.c.h.b16 %v2738
    %v3138 = vunpack.c.l.b16 %v2739
    %v3139 = vunpack.c.h.b16 %v2739
    %v3140 = vunpack.c.l.b16 %v2740
    %v3141 = vunpack.c.h.b16 %v2740
    %v3142 = vunpack.c.l.b16 %v2741
    %v3143 = vunpack.c.h.b16 %v2741
    %v3144 = vunpack.c.l.b16 %v2742
    %v3145 = vunpack.c.h.b16 %v2742
    %v3146 = vunpack.c.l.b16 %v2743
    %v3147 = vunpack.c.h.b16 %v2743
    %v3148 = vunpack.c.l.b16 %v2744
    %v3149 = vunpack.c.h.b16 %v2744
    %v3150 = vunpack.c.l.b16 %v2745
    %v3151 = vunpack.c.h.b16 %v2745
    %v3152 = vpack.c.b16 %v2900, %v2896
    %v3153 = vpack.c.b16 %v2901, %v2897
    %v3154 = vpack.c.b16 %v2902, %v2898
    %v3155 = vpack.c.b16 %v2903, %v2899
    %v3156 = vpack.c.b16 %v2908, %v2904
    %v3157 = vpack.c.b16 %v2909, %v2905
    %v3158 = vpack.c.b16 %v2910, %v2906
    %v3159 = vpack.c.b16 %v2911, %v2907
    %v3160 = vpack.c.b16 %v2916, %v2912
    %v3161 = vpack.c.b16 %v2917, %v2913
    %v3162 = vpack.c.b16 %v2918, %v2914
    %v3163 = vpack.c.b16 %v2919, %v2915
    %v3164 = vpack.c.b16 %v2924, %v2920
    %v3165 = vpack.c.b16 %v2925, %v2921
    %v3166 = vpack.c.b16 %v2926, %v2922
    %v3167 = vpack.c.b16 %v2927, %v2923
    %v3168 = vpack.c.b16 %v2932, %v2928
    %v3169 = vpack.c.b16 %v2933, %v2929
    %v3170 = vpack.c.b16 %v2934, %v2930
    %v3171 = vpack.c.b16 %v2935, %v2931
    %v3172 = vpack.c.b16 %v2940, %v2936
    %v3173 = vpack.c.b16 %v2941, %v2937
    %v3174 = vpack.c.b16 %v2942, %v2938
    %v3175 = vpack.c.b16 %v2943, %v2939
    %v3176 = vpack.c.b16 %v2948, %v2944
    %v3177 = vpack.c.b16 %v2949, %v2945
    %v3178 = vpack.c.b16 %v2950, %v2946
    %v3179 = vpack.c.b16 %v2951, %v2947
    %v3180 = vpack.c.b16 %v2956, %v2952
    %v3181 = vpack.c.b16 %v2957, %v2953
    %v3182 = vpack.c.b16 %v2958, %v2954
    %v3183 = vpack.c.b16 %v2959, %v2955
    %v3184 = vpack.c.b16 %v2964, %v2960
    %v3185 = vpack.c.b16 %v2965, %v2961
    %v3186 = vpack.c.b16 %v2966, %v2962
    %v3187 = vpack.c.b16 %v2967, %v2963
    %v3188 = vpack.c.b16 %v2972, %v2968
    %v3189 = vpack.c.b16 %v2973, %v2969
    %v3190 = vpack.c.b16 %v2974, %v2970
    %v3191 = vpack.c.b16 %v2975, %v2971
    %v3192 = vpack.c.b16 %v2980, %v2976
    %v3193 = vpack.c.b16 %v2981, %v2977
    %v3194 = vpack.c.b16 %v2982, %v2978
    %v3195 = vpack.c.b16 %v2983, %v2979
    %v3196 = vpack.c.b16 %v2988, %v2984
    %v3197 = vpack.c.b16 %v2989, %v2985
    %v3198 = vpack.c.b16 %v2990, %v2986
    %v3199 = vpack.c.b16 %v2991, %v2987
    %v3200 = vpack.c.b16 %v2996, %v2992
    %v3201 = vpack.c.b16 %v2997, %v2993
    %v3202 = vpack.c.b16 %v2998, %v2994
    %v3203 = vpack.c.b16 %v2999, %v2995
    %v3204 = vpack.c.b16 %v3004, %v3000
    %v3205 = vpack.c.b16 %v3005, %v3001
    %v3206 = vpack.c.b16 %v3006, %v3002
    %v3207 = vpack.c.b16 %v3007, %v3003
    %v3208 = vpack.c.b16 %v3012, %v3008
    %v3209 = vpack.c.b16 %v3013, %v3009
    %v3210 = vpack.c.b16 %v3014, %v3010
    %v3211 = vpack.c.b16 %v3015, %v3011
    %v3212 = vpack.c.b16 %v3020, %v3016
    %v3213 = vpack.c.b16 %v3021, %v3017
    %v3214 = vpack.c.b16 %v3022, %v3018
    %v3215 = vpack.c.b16 %v3023, %v3019
    %v3216 = vpack.c.b16 %v3028, %v3024
    %v3217 = vpack.c.b16 %v3029, %v3025
    %v3218 = vpack.c.b16 %v3030, %v3026
    %v3219 = vpack.c.b16 %v3031, %v3027
    %v3220 = vpack.c.b16 %v3036, %v3032
    %v3221 = vpack.c.b16 %v3037, %v3033
    %v3222 = vpack.c.b16 %v3038, %v3034
    %v3223 = vpack.c.b16 %v3039, %v3035
    %v3224 = vpack.c.b16 %v3044, %v3040
    %v3225 = vpack.c.b16 %v3045, %v3041
    %v3226 = vpack.c.b16 %v3046, %v3042
    %v3227 = vpack.c.b16 %v3047, %v3043
    %v3228 = vpack.c.b16 %v3052, %v3048
    %v3229 = vpack.c.b16 %v3053, %v3049
    %v3230 = vpack.c.b16 %v3054, %v3050
    %v3231 = vpack.c.b16 %v3055, %v3051
    %v3232 = vpack.c.b16 %v3060, %v3056
    %v3233 = vpack.c.b16 %v3061, %v3057
    %v3234 = vpack.c.b16 %v3062, %v3058
    %v3235 = vpack.c.b16 %v3063, %v3059
    %v3236 = vpack.c.b16 %v3068, %v3064
    %v3237 = vpack.c.b16 %v3069, %v3065
    %v3238 = vpack.c.b16 %v3070, %v3066
    %v3239 = vpack.c.b16 %v3071, %v3067
    %v3240 = vpack.c.b16 %v3076, %v3072
    %v3241 = vpack.c.b16 %v3077, %v3073
    %v3242 = vpack.c.b16 %v3078, %v3074
    %v3243 = vpack.c.b16 %v3079, %v3075
    %v3244 = vpack.c.b16 %v3084, %v3080
    %v3245 = vpack.c.b16 %v3085, %v3081
    %v3246 = vpack.c.b16 %v3086, %v3082
    %v3247 = vpack.c.b16 %v3087, %v3083
    %v3248 = vpack.c.b16 %v3092, %v3088
    %v3249 = vpack.c.b16 %v3093, %v3089
    %v3250 = vpack.c.b16 %v3094, %v3090
    %v3251 = vpack.c.b16 %v3095, %v3091
    %v3252 = vpack.c.b16 %v3100, %v3096
    %v3253 = vpack.c.b16 %v3101, %v3097
    %v3254 = vpack.c.b16 %v3102, %v3098
    %v3255 = vpack.c.b16 %v3103, %v3099
    %v3256 = vpack.c.b16 %v3108, %v3104
    %v3257 = vpack.c.b16 %v3109, %v3105
    %v3258 = vpack.c.b16 %v3110, %v3106
    %v3259 = vpack.c.b16 %v3111, %v3107
    %v3260 = vpack.c.b16 %v3116, %v3112
    %v3261 = vpack.c.b16 %v3117, %v3113
    %v3262 = vpack.c.b16 %v3118, %v3114
    %v3263 = vpack.c.b16 %v3119, %v3115
    %v3264 = vpack.c.b16 %v3124, %v3120
    %v3265 = vpack.c.b16 %v3125, %v3121
    %v3266 = vpack.c.b16 %v3126, %v3122
    %v3267 = vpack.c.b16 %v3127, %v3123
    %v3268 = vpack.c.b16 %v3132, %v3128
    %v3269 = vpack.c.b16 %v3133, %v3129
    %v3270 = vpack.c.b16 %v3134, %v3130
    %v3271 = vpack.c.b16 %v3135, %v3131
    %v3272 = vpack.c.b16 %v3140, %v3136
    %v3273 = vpack.c.b16 %v3141, %v3137
    %v3274 = vpack.c.b16 %v3142, %v3138
    %v3275 = vpack.c.b16 %v3143, %v3139
    %v3276 = vpack.c.b16 %v3148, %v3144
    %v3277 = vpack.c.b16 %v3149, %v3145
    %v3278 = vpack.c.b16 %v3150, %v3146
    %v3279 = vpack.c.b16 %v3151, %v3147
    %3408 = vmatprep.subr.bf16.mxu0 %v3153
    %3409 = vmatpush1.bf16.msra.mxu0 %v3152
    %3410 = vmatprep.subr.bf16.mxu0 %v3157
    %3411 = vmatpush1.bf16.msra.mxu0 %v3156
    %3412 = vmatprep.subr.bf16.mxu0 %v3161
    %3413 = vmatpush1.bf16.msra.mxu0 %v3160
    %3414 = vmatprep.subr.bf16.mxu0 %v3165
    %3415 = vmatpush1.bf16.msra.mxu0 %v3164
    %3416 = vmatprep.subr.bf16.mxu0 %v3169
    %3417 = vmatpush1.bf16.msra.mxu0 %v3168
    %3418 = vmatprep.subr.bf16.mxu0 %v3173
    %3419 = vmatpush1.bf16.msra.mxu0 %v3172
    %3420 = vmatprep.subr.bf16.mxu0 %v3177
    %3421 = vmatpush1.bf16.msra.mxu0 %v3176
    %3422 = vmatprep.subr.bf16.mxu0 %v3181
    %3423 = vmatpush1.bf16.msra.mxu0 %v3180
    %3424 = vmatprep.subr.bf16.mxu0 %v3185
    %3425 = vmatpush1.bf16.msra.mxu0 %v3184
    %3426 = vmatprep.subr.bf16.mxu0 %v3189
    %3427 = vmatpush1.bf16.msra.mxu0 %v3188
    %3428 = vmatprep.subr.bf16.mxu0 %v3193
    %3429 = vmatpush1.bf16.msra.mxu0 %v3192
    %3430 = vmatprep.subr.bf16.mxu0 %v3197
    %3431 = vmatpush1.bf16.msra.mxu0 %v3196
    %3432 = vmatprep.subr.bf16.mxu0 %v3201
    %3433 = vmatpush1.bf16.msra.mxu0 %v3200
    %3434 = vmatprep.subr.bf16.mxu0 %v3205
    %3435 = vmatpush1.bf16.msra.mxu0 %v3204
    %3436 = vmatprep.subr.bf16.mxu0 %v3209
    %3437 = vmatpush1.bf16.msra.mxu0 %v3208
    %3438 = vmatprep.subr.bf16.mxu0 %v3213
    %3439 = vmatpush1.bf16.msra.mxu0 %v3212
    %3440 = vmatprep.mubr.bf16.mxu0 %v2615
    %3441 = vmatmul.mubr.bf16.gmra.mrb[0].mxu0 %v2614
    %v3442 = vpop.f32.mrb[0].mxu0
    %v3443 = vadd.f32 %v2751, %v3442
    %v3444 = vpop.f32.mrb[0].mxu0
    %v3445 = vadd.f32 %v2755, %v3444
    %v3446 = vpop.f32.mrb[0].mxu0
    %v3447 = vpop.f32.mrb[0].mxu0
    %3448 = vdwg.mxu0
    %3449 = vmatprep.subr.bf16.mxu0 %v3217
    %3450 = vmatpush1.bf16.msra.mxu0 %v3216
    %3451 = vmatprep.subr.bf16.mxu0 %v3221
    %3452 = vmatpush1.bf16.msra.mxu0 %v3220
    %3453 = vmatprep.subr.bf16.mxu0 %v3225
    %3454 = vmatpush1.bf16.msra.mxu0 %v3224
    %3455 = vmatprep.subr.bf16.mxu0 %v3229
    %3456 = vmatpush1.bf16.msra.mxu0 %v3228
    %3457 = vmatprep.subr.bf16.mxu0 %v3233
    %3458 = vmatpush1.bf16.msra.mxu0 %v3232
    %3459 = vmatprep.subr.bf16.mxu0 %v3237
    %3460 = vmatpush1.bf16.msra.mxu0 %v3236
    %3461 = vmatprep.subr.bf16.mxu0 %v3241
    %3462 = vmatpush1.bf16.msra.mxu0 %v3240
    %3463 = vmatprep.subr.bf16.mxu0 %v3245
    %3464 = vmatpush1.bf16.msra.mxu0 %v3244
    %3465 = vmatprep.subr.bf16.mxu0 %v3249
    %3466 = vmatpush1.bf16.msra.mxu0 %v3248
    %3467 = vmatprep.subr.bf16.mxu0 %v3253
    %3468 = vmatpush1.bf16.msra.mxu0 %v3252
    %3469 = vmatprep.subr.bf16.mxu0 %v3257
    %3470 = vmatpush1.bf16.msra.mxu0 %v3256
    %3471 = vmatprep.subr.bf16.mxu0 %v3261
    %3472 = vmatpush1.bf16.msra.mxu0 %v3260
    %3473 = vmatprep.subr.bf16.mxu0 %v3265
    %3474 = vmatpush1.bf16.msra.mxu0 %v3264
    %3475 = vmatprep.subr.bf16.mxu0 %v3269
    %3476 = vmatpush1.bf16.msra.mxu0 %v3268
    %3477 = vmatprep.subr.bf16.mxu0 %v3273
    %3478 = vmatpush1.bf16.msra.mxu0 %v3272
    %3479 = vmatprep.subr.bf16.mxu0 %v3277
    %3480 = vmatpush1.bf16.msra.mxu0 %v3276
    %3481 = vmatprep.mubr.bf16.mxu0 %v2617
    %3482 = vmatmul.mubr.bf16.gmra.mrb[0].mxu0 %v2616
    %v3483 = vpop.f32.mrb[0].mxu0
    %v3484 = vadd.f32 %v3443, %v3483
    %v3485 = vpop.f32.mrb[0].mxu0
    %v3486 = vadd.f32 %v3445, %v3485
    %v3487 = vpop.f32.mrb[0].mxu0
    %v3488 = vpop.f32.mrb[0].mxu0
    %3489 = vdwg.mxu0
    %3490 = vmatprep.subr.bf16.mxu0 %v3155
    %3491 = vmatpush1.bf16.msra.mxu0 %v3154
    %3492 = vmatprep.subr.bf16.mxu0 %v3159
    %3493 = vmatpush1.bf16.msra.mxu0 %v3158
    %3494 = vmatprep.subr.bf16.mxu0 %v3163
    %3495 = vmatpush1.bf16.msra.mxu0 %v3162
    %3496 = vmatprep.subr.bf16.mxu0 %v3167
    %3497 = vmatpush1.bf16.msra.mxu0 %v3166
    %3498 = vmatprep.subr.bf16.mxu0 %v3171
    %3499 = vmatpush1.bf16.msra.mxu0 %v3170
    %3500 = vmatprep.subr.bf16.mxu0 %v3175
    %3501 = vmatpush1.bf16.msra.mxu0 %v3174
    %3502 = vmatprep.subr.bf16.mxu0 %v3179
    %3503 = vmatpush1.bf16.msra.mxu0 %v3178
    %3504 = vmatprep.subr.bf16.mxu0 %v3183
    %3505 = vmatpush1.bf16.msra.mxu0 %v3182
    %3506 = vmatprep.subr.bf16.mxu0 %v3187
    %3507 = vmatpush1.bf16.msra.mxu0 %v3186
    %3508 = vmatprep.subr.bf16.mxu0 %v3191
    %3509 = vmatpush1.bf16.msra.mxu0 %v3190
    %3510 = vmatprep.subr.bf16.mxu0 %v3195
    %3511 = vmatpush1.bf16.msra.mxu0 %v3194
    %3512 = vmatprep.subr.bf16.mxu0 %v3199
    %3513 = vmatpush1.bf16.msra.mxu0 %v3198
    %3514 = vmatprep.subr.bf16.mxu0 %v3203
    %3515 = vmatpush1.bf16.msra.mxu0 %v3202
    %3516 = vmatprep.subr.bf16.mxu0 %v3207
    %3517 = vmatpush1.bf16.msra.mxu0 %v3206
    %3518 = vmatprep.subr.bf16.mxu0 %v3211
    %3519 = vmatpush1.bf16.msra.mxu0 %v3210
    %3520 = vmatprep.subr.bf16.mxu0 %v3215
    %3521 = vmatpush1.bf16.msra.mxu0 %v3214
    %3522 = vmatprep.mubr.bf16.mxu0 %v2615
    %3523 = vmatmul.mubr.bf16.gmra.mrb[0].mxu0 %v2614
    %v3524 = vpop.f32.mrb[0].mxu0
    %v3525 = vadd.f32 %v2759, %v3524
    %v3526 = vpop.f32.mrb[0].mxu0
    %v3527 = vadd.f32 %v2763, %v3526
    %v3528 = vpop.f32.mrb[0].mxu0
    %v3529 = vpop.f32.mrb[0].mxu0
    %3530 = vdwg.mxu0
    %3531 = vmatprep.subr.bf16.mxu0 %v3219
    %3532 = vmatpush1.bf16.msra.mxu0 %v3218
    %3533 = vmatprep.subr.bf16.mxu0 %v3223
    %3534 = vmatpush1.bf16.msra.mxu0 %v3222
    %3535 = vmatprep.subr.bf16.mxu0 %v3227
    %3536 = vmatpush1.bf16.msra.mxu0 %v3226
    %3537 = vmatprep.subr.bf16.mxu0 %v3231
    %3538 = vmatpush1.bf16.msra.mxu0 %v3230
    %3539 = vmatprep.subr.bf16.mxu0 %v3235
    %3540 = vmatpush1.bf16.msra.mxu0 %v3234
    %3541 = vmatprep.subr.bf16.mxu0 %v3239
    %3542 = vmatpush1.bf16.msra.mxu0 %v3238
    %3543 = vmatprep.subr.bf16.mxu0 %v3243
    %3544 = vmatpush1.bf16.msra.mxu0 %v3242
    %3545 = vmatprep.subr.bf16.mxu0 %v3247
    %3546 = vmatpush1.bf16.msra.mxu0 %v3246
    %3547 = vmatprep.subr.bf16.mxu0 %v3251
    %3548 = vmatpush1.bf16.msra.mxu0 %v3250
    %3549 = vmatprep.subr.bf16.mxu0 %v3255
    %3550 = vmatpush1.bf16.msra.mxu0 %v3254
    %3551 = vmatprep.subr.bf16.mxu0 %v3259
    %3552 = vmatpush1.bf16.msra.mxu0 %v3258
    %3553 = vmatprep.subr.bf16.mxu0 %v3263
    %3554 = vmatpush1.bf16.msra.mxu0 %v3262
    %3555 = vmatprep.subr.bf16.mxu0 %v3267
    %3556 = vmatpush1.bf16.msra.mxu0 %v3266
    %3557 = vmatprep.subr.bf16.mxu0 %v3271
    %3558 = vmatpush1.bf16.msra.mxu0 %v3270
    %3559 = vmatprep.subr.bf16.mxu0 %v3275
    %3560 = vmatpush1.bf16.msra.mxu0 %v3274
    %3561 = vmatprep.subr.bf16.mxu0 %v3279
    %3562 = vmatpush1.bf16.msra.mxu0 %v3278
    %3563 = vmatprep.mubr.bf16.mxu0 %v2617
    %3564 = vmatmul.mubr.bf16.gmra.mrb[0].mxu0 %v2616
    %v3565 = vpop.f32.mrb[0].mxu0
    %v3566 = vadd.f32 %v3525, %v3565
    %v3567 = vpop.f32.mrb[0].mxu0
    %v3568 = vadd.f32 %v3527, %v3567
    %v3569 = vpop.f32.mrb[0].mxu0
    %v3570 = vpop.f32.mrb[0].mxu0
    %3571 = vdwg.mxu0
    %3572 = vst [vmem:[%s17] sm:$0xff] %v3484
    %3573 = vst [vmem:[%s17 + $0x8] sm:$0xff] %v3486
    %3574 = vst [vmem:[%s17 + $0x10] sm:$0xff] %v3566
    %3575 = vst [vmem:[%s17 + $0x18] sm:$0xff] %v3568
    // Predicated region
    $region94: #{ccnn1_forward.1} parent=1 // pred_check
      _
    $region95: #{ccnn1_forward.1} parent=1 // pred_check_branch
      %3577 = sbr.rel (0) target = $region97
    $region96: #{ccnn1_forward.1} parent=1 // pred_region
      _
    $region97: #{ccnn1_forward.1} parent=1 // pred_fallthru
      _
    // Predicated region
    $region98: #{ccnn1_forward.1} parent=1 // pred_check
      _
    $region99: #{ccnn1_forward.1} parent=1 // pred_check_branch
      %3579 = sbr.rel (0) target = $region101
    $region100: #{ccnn1_forward.1} parent=1 // pred_region
      _
    $region101: #{ccnn1_forward.1} parent=1 // pred_fallthru
      _
    %3580 = vsyncpa [#allocation3], 1
    %3581 = vsyncpa [#allocation5], 1
    %3582 = vsyncpa [#allocation8], 1
    %3583 = vsyncpa [#allocation11], 1

</llo_original>
